<compile_context>
chip_gen: v5e
topology: v5e:2x2
jax: 0.10.0
libtpu: 0.0.40
codegen_flags: <defaults>
</compile_context>

<pallas_src>
import jax
import jax.numpy as jnp
from jax.experimental import pallas as pl
from jax.experimental.pallas import tpu as pltpu


# ----------------------------------------------------------------------------
# Fused Pallas kernel: conv1 -> ReLU -> conv2 -> ReLU -> GAP -> FC
# ----------------------------------------------------------------------------
def _fused_forward_kernel(x_ref, w1_ref, b1_ref, w2_ref, b2_ref,
                          wf_ref, bf_ref, o_ref, h1p_ref):
    # x_ref  : [1, H+2, W+2, Cin]  zero-padded NHWC image tile (one image/step)
    # w1_ref : [3, 3, Cin, C1]     conv1 weights (HWIO)
    # b1_ref : [1, C1]
    # w2_ref : [3, 3, C1, C2]      conv2 weights (HWIO)
    # b2_ref : [1, C2]
    # wf_ref : [C2, NCLS]          fc head
    # bf_ref : [1, NCLS]
    # o_ref  : [1, 1, NCLS]        logits for this image
    # h1p_ref: VMEM scratch [H+2, W+2, C1]  (zero-padded conv1 activations)
    Hp, Wp, cin = x_ref.shape[1], x_ref.shape[2], x_ref.shape[3]
    H, W = Hp - 2, Wp - 2
    C1 = w1_ref.shape[3]
    C2 = w2_ref.shape[3]

    # conv1: 9 shifted [H*W, Cin] @ [Cin, C1] matmuls, f32 accumulate.
    acc1 = jnp.zeros((H * W, C1), jnp.float32)
    for i in range(3):
        for j in range(3):
            win = x_ref[0, i:i + H, j:j + W, :].reshape(H * W, cin)
            acc1 = acc1 + jnp.dot(win, w1_ref[i, j],
                                  preferred_element_type=jnp.float32)
    h1 = jnp.maximum(acc1 + b1_ref[...], 0.0)                    # [H*W, C1]

    # Zero-padded conv1 output stays in VMEM (never written to HBM).
    h1p_ref[...] = jnp.zeros_like(h1p_ref)
    h1p_ref[1:H + 1, 1:W + 1, :] = h1.reshape(H, W, C1)

    # conv2: same 9-tap shift-and-accumulate on the padded VMEM scratch.
    acc2 = jnp.zeros((H * W, C2), jnp.float32)
    for i in range(3):
        for j in range(3):
            win = h1p_ref[i:i + H, j:j + W, :].reshape(H * W, C1)
            acc2 = acc2 + jnp.dot(win, w2_ref[i, j],
                                  preferred_element_type=jnp.float32)
    h2 = jnp.maximum(acc2 + b2_ref[...], 0.0)                    # [H*W, C2]

    # Global average pool (XLU reduce) + fc head.
    pooled = jnp.sum(h2, axis=0, keepdims=True) * (1.0 / (H * W))  # [1, C2]
    logits = jnp.dot(pooled, wf_ref[...],
                     preferred_element_type=jnp.float32) + bf_ref[...]
    o_ref[...] = logits.reshape(o_ref.shape)


# ----------------------------------------------------------------------------
# Wrapper: layout prep + pallas_call
# ----------------------------------------------------------------------------
def fire_detection_cnn_forward(x_nchw, params):
    # NCHW -> NHWC (channels lane-minor), SAME padding done once on the input.
    x = jnp.transpose(x_nchw, (0, 2, 3, 1)).astype(jnp.float32)
    N, H, W, cin = x.shape
    xp = jnp.pad(x, ((0, 0), (1, 1), (1, 1), (0, 0)))            # [N,H+2,W+2,Cin]

    w1 = params["w1"].astype(jnp.float32)                         # [3,3,Cin,C1]
    w2 = params["w2"].astype(jnp.float32)                         # [3,3,C1,C2]
    b1 = params["b1"].reshape(1, -1).astype(jnp.float32)
    b2 = params["b2"].reshape(1, -1).astype(jnp.float32)
    wf = params["wf"].astype(jnp.float32)                         # [C2, NCLS]
    bf = params["bf"].reshape(1, -1).astype(jnp.float32)
    C1, C2, ncls = w1.shape[3], w2.shape[3], wf.shape[1]

    flops = int(2 * N * H * W * 9 * cin * C1
                + 2 * N * H * W * 9 * C1 * C2
                + 2 * N * C2 * ncls)
    bytes_accessed = int(4 * (xp.size + w1.size + b1.size + w2.size
                              + b2.size + wf.size + bf.size + N * ncls))

    out = pl.pallas_call(
        _fused_forward_kernel,
        out_shape=jax.ShapeDtypeStruct((N, 1, ncls), jnp.float32),
        grid_spec=pltpu.PrefetchScalarGridSpec(
            num_scalar_prefetch=0,
            grid=(N,),
            in_specs=[
                pl.BlockSpec((1, H + 2, W + 2, cin), lambda n: (n, 0, 0, 0)),
                pl.BlockSpec((3, 3, cin, C1), lambda n: (0, 0, 0, 0)),
                pl.BlockSpec((1, C1), lambda n: (0, 0)),
                pl.BlockSpec((3, 3, C1, C2), lambda n: (0, 0, 0, 0)),
                pl.BlockSpec((1, C2), lambda n: (0, 0)),
                pl.BlockSpec((C2, ncls), lambda n: (0, 0)),
                pl.BlockSpec((1, ncls), lambda n: (0, 0)),
            ],
            out_specs=pl.BlockSpec((1, 1, ncls), lambda n: (n, 0, 0)),
            scratch_shapes=[pltpu.VMEM((H + 2, W + 2, C1), jnp.float32)],
        ),
        compiler_params=pltpu.CompilerParams(
            dimension_semantics=("parallel",)),
        cost_estimate=pl.CostEstimate(flops=flops, transcendentals=0,
                                      bytes_accessed=bytes_accessed),
    )(xp, w1, b1, w2, b2, wf, bf)

    return out.reshape(N, ncls)


# ----------------------------------------------------------------------------
# Parameters + pure-JAX reference
# ----------------------------------------------------------------------------
def init_params(key, cin=4, c1=16, c2=32, num_classes=2):
    k1, k2, k3, k4, k5, k6 = jax.random.split(key, 6)
    scale = 0.1
    return {
        "w1": scale * jax.random.normal(k1, (3, 3, cin, c1), jnp.float32),
        "b1": scale * jax.random.normal(k2, (c1,), jnp.float32),
        "w2": scale * jax.random.normal(k3, (3, 3, c1, c2), jnp.float32),
        "b2": scale * jax.random.normal(k4, (c2,), jnp.float32),
        "wf": scale * jax.random.normal(k5, (c2, num_classes), jnp.float32),
        "bf": scale * jax.random.normal(k6, (num_classes,), jnp.float32),
    }


def reference_forward(x_nchw, params):
    x = jnp.transpose(x_nchw, (0, 2, 3, 1)).astype(jnp.float32)
    dn = ("NHWC", "HWIO", "NHWC")
    h = jax.lax.conv_general_dilated(x, params["w1"], (1, 1), "SAME",
                                     dimension_numbers=dn) + params["b1"]
    h = jnp.maximum(h, 0.0)
    h = jax.lax.conv_general_dilated(h, params["w2"], (1, 1), "SAME",
                                     dimension_numbers=dn) + params["b2"]
    h = jnp.maximum(h, 0.0)
    pooled = jnp.mean(h, axis=(1, 2))
    return pooled @ params["wf"] + params["bf"]


if __name__ == "__main__":
    key = jax.random.PRNGKey(0)
    kx, kp = jax.random.split(key)

    # Small input consistent with the module's conv forward: NCHW
    x = jax.random.normal(kx, (2, 4, 16, 16), jnp.float32)
    params = init_params(kp, cin=4, c1=16, c2=32, num_classes=2)

    out = jax.block_until_ready(fire_detection_cnn_forward(x, params))
    ref = jax.block_until_ready(reference_forward(x, params))

    assert out.shape == (2, 2), out.shape
    assert jnp.allclose(out, ref, rtol=1e-4, atol=1e-4), (out, ref)
    print("KERNEL_OK")
</pallas_src>

<mosaic_0001>
module attributes {stable_mosaic.version = 11 : i64} {
  func.func @_fused_forward_kernel(%arg0: i32, %arg1: memref<1x18x18x4xf32, #tpu.memory_space<vmem>>, %arg2: memref<3x3x4x16xf32, #tpu.memory_space<vmem>>, %arg3: memref<1x16xf32, #tpu.memory_space<vmem>>, %arg4: memref<3x3x16x32xf32, #tpu.memory_space<vmem>>, %arg5: memref<1x32xf32, #tpu.memory_space<vmem>>, %arg6: memref<32x2xf32, #tpu.memory_space<vmem>>, %arg7: memref<1x2xf32, #tpu.memory_space<vmem>>, %arg8: memref<1x1x2xf32, #tpu.memory_space<vmem>>, %arg9: memref<18x18x16xf32, #tpu.memory_space<vmem>>) attributes {dimension_semantics = [#tpu.dimension_semantics<parallel>], iteration_bounds = array<i64: 2>, scalar_prefetch = 0 : i64, scratch_operands = 1 : i64, tpu.core_type = #tpu.core_type<tc>, window_params = [{transform_indices = @transform_0, window_bounds = array<i64: 1, 18, 18, 4>}, {pipeline_mode = #tpu.pipeline_mode<synchronous>, transform_indices = @transform_1, window_bounds = array<i64: 3, 3, 4, 16>}, {pipeline_mode = #tpu.pipeline_mode<synchronous>, transform_indices = @transform_2, window_bounds = array<i64: 1, 16>}, {pipeline_mode = #tpu.pipeline_mode<synchronous>, transform_indices = @transform_3, window_bounds = array<i64: 3, 3, 16, 32>}, {pipeline_mode = #tpu.pipeline_mode<synchronous>, transform_indices = @transform_4, window_bounds = array<i64: 1, 32>}, {pipeline_mode = #tpu.pipeline_mode<synchronous>, transform_indices = @transform_5, window_bounds = array<i64: 32, 2>}, {pipeline_mode = #tpu.pipeline_mode<synchronous>, transform_indices = @transform_6, window_bounds = array<i64: 1, 2>}, {transform_indices = @transform_7, window_bounds = array<i64: 1, 1, 2>}]} {
    %cst = arith.constant 0.000000e+00 : f32
    %0 = vector.broadcast %cst : f32 to vector<256x16xf32>
    %c0 = arith.constant 0 : index
    %c0_0 = arith.constant 0 : index
    %c0_1 = arith.constant 0 : index
    %c0_2 = arith.constant 0 : index
    %1 = vector.load %arg1[%c0, %c0_0, %c0_1, %c0_2] : memref<1x18x18x4xf32, #tpu.memory_space<vmem>>, vector<1x16x16x4xf32>
    %2 = vector.shape_cast %1 : vector<1x16x16x4xf32> to vector<16x16x4xf32>
    %3 = vector.shape_cast %2 : vector<16x16x4xf32> to vector<256x4xf32>
    %c0_3 = arith.constant 0 : index
    %c0_4 = arith.constant 0 : index
    %c0_5 = arith.constant 0 : index
    %c0_6 = arith.constant 0 : index
    %4 = vector.load %arg2[%c0_3, %c0_4, %c0_5, %c0_6] : memref<3x3x4x16xf32, #tpu.memory_space<vmem>>, vector<1x1x4x16xf32>
    %5 = vector.shape_cast %4 : vector<1x1x4x16xf32> to vector<4x16xf32>
    %cst_7 = arith.constant dense<0.000000e+00> : vector<256x16xf32>
    %6 = tpu.matmul %3, %5, %cst_7 {dimension_numbers = #tpu.dot_dimension_numbers<[1], [0], [0], [1], [0, 0, 1, 1], [], []>} : vector<256x4xf32>, vector<4x16xf32>, vector<256x16xf32> -> vector<256x16xf32>
    %7 = arith.addf %0, %6 : vector<256x16xf32>
    %c0_8 = arith.constant 0 : index
    %c0_9 = arith.constant 0 : index
    %c1 = arith.constant 1 : index
    %c0_10 = arith.constant 0 : index
    %8 = vector.load %arg1[%c0_8, %c0_9, %c1, %c0_10] : memref<1x18x18x4xf32, #tpu.memory_space<vmem>>, vector<1x16x16x4xf32>
    %9 = vector.shape_cast %8 : vector<1x16x16x4xf32> to vector<16x16x4xf32>
    %10 = vector.shape_cast %9 : vector<16x16x4xf32> to vector<256x4xf32>
    %c0_11 = arith.constant 0 : index
    %c1_12 = arith.constant 1 : index
    %c0_13 = arith.constant 0 : index
    %c0_14 = arith.constant 0 : index
    %11 = vector.load %arg2[%c0_11, %c1_12, %c0_13, %c0_14] : memref<3x3x4x16xf32, #tpu.memory_space<vmem>>, vector<1x1x4x16xf32>
    %12 = vector.shape_cast %11 : vector<1x1x4x16xf32> to vector<4x16xf32>
    %cst_15 = arith.constant dense<0.000000e+00> : vector<256x16xf32>
    %13 = tpu.matmul %10, %12, %cst_15 {dimension_numbers = #tpu.dot_dimension_numbers<[1], [0], [0], [1], [0, 0, 1, 1], [], []>} : vector<256x4xf32>, vector<4x16xf32>, vector<256x16xf32> -> vector<256x16xf32>
    %14 = arith.addf %7, %13 : vector<256x16xf32>
    %c0_16 = arith.constant 0 : index
    %c0_17 = arith.constant 0 : index
    %c2 = arith.constant 2 : index
    %c0_18 = arith.constant 0 : index
    %15 = vector.load %arg1[%c0_16, %c0_17, %c2, %c0_18] : memref<1x18x18x4xf32, #tpu.memory_space<vmem>>, vector<1x16x16x4xf32>
    %16 = vector.shape_cast %15 : vector<1x16x16x4xf32> to vector<16x16x4xf32>
    %17 = vector.shape_cast %16 : vector<16x16x4xf32> to vector<256x4xf32>
    %c0_19 = arith.constant 0 : index
    %c2_20 = arith.constant 2 : index
    %c0_21 = arith.constant 0 : index
    %c0_22 = arith.constant 0 : index
    %18 = vector.load %arg2[%c0_19, %c2_20, %c0_21, %c0_22] : memref<3x3x4x16xf32, #tpu.memory_space<vmem>>, vector<1x1x4x16xf32>
    %19 = vector.shape_cast %18 : vector<1x1x4x16xf32> to vector<4x16xf32>
    %cst_23 = arith.constant dense<0.000000e+00> : vector<256x16xf32>
    %20 = tpu.matmul %17, %19, %cst_23 {dimension_numbers = #tpu.dot_dimension_numbers<[1], [0], [0], [1], [0, 0, 1, 1], [], []>} : vector<256x4xf32>, vector<4x16xf32>, vector<256x16xf32> -> vector<256x16xf32>
    %21 = arith.addf %14, %20 : vector<256x16xf32>
    %c0_24 = arith.constant 0 : index
    %c1_25 = arith.constant 1 : index
    %c0_26 = arith.constant 0 : index
    %c0_27 = arith.constant 0 : index
    %22 = vector.load %arg1[%c0_24, %c1_25, %c0_26, %c0_27] : memref<1x18x18x4xf32, #tpu.memory_space<vmem>>, vector<1x16x16x4xf32>
    %23 = vector.shape_cast %22 : vector<1x16x16x4xf32> to vector<16x16x4xf32>
    %24 = vector.shape_cast %23 : vector<16x16x4xf32> to vector<256x4xf32>
    %c1_28 = arith.constant 1 : index
    %c0_29 = arith.constant 0 : index
    %c0_30 = arith.constant 0 : index
    %c0_31 = arith.constant 0 : index
    %25 = vector.load %arg2[%c1_28, %c0_29, %c0_30, %c0_31] : memref<3x3x4x16xf32, #tpu.memory_space<vmem>>, vector<1x1x4x16xf32>
    %26 = vector.shape_cast %25 : vector<1x1x4x16xf32> to vector<4x16xf32>
    %cst_32 = arith.constant dense<0.000000e+00> : vector<256x16xf32>
    %27 = tpu.matmul %24, %26, %cst_32 {dimension_numbers = #tpu.dot_dimension_numbers<[1], [0], [0], [1], [0, 0, 1, 1], [], []>} : vector<256x4xf32>, vector<4x16xf32>, vector<256x16xf32> -> vector<256x16xf32>
    %28 = arith.addf %21, %27 : vector<256x16xf32>
    %c0_33 = arith.constant 0 : index
    %c1_34 = arith.constant 1 : index
    %c1_35 = arith.constant 1 : index
    %c0_36 = arith.constant 0 : index
    %29 = vector.load %arg1[%c0_33, %c1_34, %c1_35, %c0_36] : memref<1x18x18x4xf32, #tpu.memory_space<vmem>>, vector<1x16x16x4xf32>
    %30 = vector.shape_cast %29 : vector<1x16x16x4xf32> to vector<16x16x4xf32>
    %31 = vector.shape_cast %30 : vector<16x16x4xf32> to vector<256x4xf32>
    %c1_37 = arith.constant 1 : index
    %c1_38 = arith.constant 1 : index
    %c0_39 = arith.constant 0 : index
    %c0_40 = arith.constant 0 : index
    %32 = vector.load %arg2[%c1_37, %c1_38, %c0_39, %c0_40] : memref<3x3x4x16xf32, #tpu.memory_space<vmem>>, vector<1x1x4x16xf32>
    %33 = vector.shape_cast %32 : vector<1x1x4x16xf32> to vector<4x16xf32>
    %cst_41 = arith.constant dense<0.000000e+00> : vector<256x16xf32>
    %34 = tpu.matmul %31, %33, %cst_41 {dimension_numbers = #tpu.dot_dimension_numbers<[1], [0], [0], [1], [0, 0, 1, 1], [], []>} : vector<256x4xf32>, vector<4x16xf32>, vector<256x16xf32> -> vector<256x16xf32>
    %35 = arith.addf %28, %34 : vector<256x16xf32>
    %c0_42 = arith.constant 0 : index
    %c1_43 = arith.constant 1 : index
    %c2_44 = arith.constant 2 : index
    %c0_45 = arith.constant 0 : index
    %36 = vector.load %arg1[%c0_42, %c1_43, %c2_44, %c0_45] : memref<1x18x18x4xf32, #tpu.memory_space<vmem>>, vector<1x16x16x4xf32>
    %37 = vector.shape_cast %36 : vector<1x16x16x4xf32> to vector<16x16x4xf32>
    %38 = vector.shape_cast %37 : vector<16x16x4xf32> to vector<256x4xf32>
    %c1_46 = arith.constant 1 : index
    %c2_47 = arith.constant 2 : index
    %c0_48 = arith.constant 0 : index
    %c0_49 = arith.constant 0 : index
    %39 = vector.load %arg2[%c1_46, %c2_47, %c0_48, %c0_49] : memref<3x3x4x16xf32, #tpu.memory_space<vmem>>, vector<1x1x4x16xf32>
    %40 = vector.shape_cast %39 : vector<1x1x4x16xf32> to vector<4x16xf32>
    %cst_50 = arith.constant dense<0.000000e+00> : vector<256x16xf32>
    %41 = tpu.matmul %38, %40, %cst_50 {dimension_numbers = #tpu.dot_dimension_numbers<[1], [0], [0], [1], [0, 0, 1, 1], [], []>} : vector<256x4xf32>, vector<4x16xf32>, vector<256x16xf32> -> vector<256x16xf32>
    %42 = arith.addf %35, %41 : vector<256x16xf32>
    %c0_51 = arith.constant 0 : index
    %c2_52 = arith.constant 2 : index
    %c0_53 = arith.constant 0 : index
    %c0_54 = arith.constant 0 : index
    %43 = vector.load %arg1[%c0_51, %c2_52, %c0_53, %c0_54] : memref<1x18x18x4xf32, #tpu.memory_space<vmem>>, vector<1x16x16x4xf32>
    %44 = vector.shape_cast %43 : vector<1x16x16x4xf32> to vector<16x16x4xf32>
    %45 = vector.shape_cast %44 : vector<16x16x4xf32> to vector<256x4xf32>
    %c2_55 = arith.constant 2 : index
    %c0_56 = arith.constant 0 : index
    %c0_57 = arith.constant 0 : index
    %c0_58 = arith.constant 0 : index
    %46 = vector.load %arg2[%c2_55, %c0_56, %c0_57, %c0_58] : memref<3x3x4x16xf32, #tpu.memory_space<vmem>>, vector<1x1x4x16xf32>
    %47 = vector.shape_cast %46 : vector<1x1x4x16xf32> to vector<4x16xf32>
    %cst_59 = arith.constant dense<0.000000e+00> : vector<256x16xf32>
    %48 = tpu.matmul %45, %47, %cst_59 {dimension_numbers = #tpu.dot_dimension_numbers<[1], [0], [0], [1], [0, 0, 1, 1], [], []>} : vector<256x4xf32>, vector<4x16xf32>, vector<256x16xf32> -> vector<256x16xf32>
    %49 = arith.addf %42, %48 : vector<256x16xf32>
    %c0_60 = arith.constant 0 : index
    %c2_61 = arith.constant 2 : index
    %c1_62 = arith.constant 1 : index
    %c0_63 = arith.constant 0 : index
    %50 = vector.load %arg1[%c0_60, %c2_61, %c1_62, %c0_63] : memref<1x18x18x4xf32, #tpu.memory_space<vmem>>, vector<1x16x16x4xf32>
    %51 = vector.shape_cast %50 : vector<1x16x16x4xf32> to vector<16x16x4xf32>
    %52 = vector.shape_cast %51 : vector<16x16x4xf32> to vector<256x4xf32>
    %c2_64 = arith.constant 2 : index
    %c1_65 = arith.constant 1 : index
    %c0_66 = arith.constant 0 : index
    %c0_67 = arith.constant 0 : index
    %53 = vector.load %arg2[%c2_64, %c1_65, %c0_66, %c0_67] : memref<3x3x4x16xf32, #tpu.memory_space<vmem>>, vector<1x1x4x16xf32>
    %54 = vector.shape_cast %53 : vector<1x1x4x16xf32> to vector<4x16xf32>
    %cst_68 = arith.constant dense<0.000000e+00> : vector<256x16xf32>
    %55 = tpu.matmul %52, %54, %cst_68 {dimension_numbers = #tpu.dot_dimension_numbers<[1], [0], [0], [1], [0, 0, 1, 1], [], []>} : vector<256x4xf32>, vector<4x16xf32>, vector<256x16xf32> -> vector<256x16xf32>
    %56 = arith.addf %49, %55 : vector<256x16xf32>
    %c0_69 = arith.constant 0 : index
    %c2_70 = arith.constant 2 : index
    %c2_71 = arith.constant 2 : index
    %c0_72 = arith.constant 0 : index
    %57 = vector.load %arg1[%c0_69, %c2_70, %c2_71, %c0_72] : memref<1x18x18x4xf32, #tpu.memory_space<vmem>>, vector<1x16x16x4xf32>
    %58 = vector.shape_cast %57 : vector<1x16x16x4xf32> to vector<16x16x4xf32>
    %59 = vector.shape_cast %58 : vector<16x16x4xf32> to vector<256x4xf32>
    %c2_73 = arith.constant 2 : index
    %c2_74 = arith.constant 2 : index
    %c0_75 = arith.constant 0 : index
    %c0_76 = arith.constant 0 : index
    %60 = vector.load %arg2[%c2_73, %c2_74, %c0_75, %c0_76] : memref<3x3x4x16xf32, #tpu.memory_space<vmem>>, vector<1x1x4x16xf32>
    %61 = vector.shape_cast %60 : vector<1x1x4x16xf32> to vector<4x16xf32>
    %cst_77 = arith.constant dense<0.000000e+00> : vector<256x16xf32>
    %62 = tpu.matmul %59, %61, %cst_77 {dimension_numbers = #tpu.dot_dimension_numbers<[1], [0], [0], [1], [0, 0, 1, 1], [], []>} : vector<256x4xf32>, vector<4x16xf32>, vector<256x16xf32> -> vector<256x16xf32>
    %63 = arith.addf %56, %62 : vector<256x16xf32>
    %c0_78 = arith.constant 0 : index
    %c0_79 = arith.constant 0 : index
    %64 = vector.load %arg3[%c0_78, %c0_79] : memref<1x16xf32, #tpu.memory_space<vmem>>, vector<1x16xf32>
    %65 = vector.broadcast %64 : vector<1x16xf32> to vector<256x16xf32>
    %66 = arith.addf %63, %65 : vector<256x16xf32>
    %cst_80 = arith.constant 0.000000e+00 : f32
    %67 = vector.broadcast %cst_80 : f32 to vector<256x16xf32>
    %68 = arith.maximumf %66, %67 : vector<256x16xf32>
    %cst_81 = arith.constant 0.000000e+00 : f32
    %69 = vector.broadcast %cst_81 : f32 to vector<18x18x16xf32>
    %c0_82 = arith.constant 0 : index
    %c0_83 = arith.constant 0 : index
    %c0_84 = arith.constant 0 : index
    %70 = vector.load %arg9[%c0_82, %c0_83, %c0_84] : memref<18x18x16xf32, #tpu.memory_space<vmem>>, vector<18x18x16xf32>
    tpu.vector_store %arg9[%c0_82, %c0_83, %c0_84], %69 {strides = array<i32>} : memref<18x18x16xf32, #tpu.memory_space<vmem>>, vector<18x18x16xf32>,
    %71 = vector.shape_cast %68 : vector<256x16xf32> to vector<16x16x16xf32>
    %c1_85 = arith.constant 1 : index
    %c1_86 = arith.constant 1 : index
    %c0_87 = arith.constant 0 : index
    %72 = vector.load %arg9[%c1_85, %c1_86, %c0_87] : memref<18x18x16xf32, #tpu.memory_space<vmem>>, vector<16x16x16xf32>
    tpu.vector_store %arg9[%c1_85, %c1_86, %c0_87], %71 {strides = array<i32>} : memref<18x18x16xf32, #tpu.memory_space<vmem>>, vector<16x16x16xf32>,
    %cst_88 = arith.constant 0.000000e+00 : f32
    %73 = vector.broadcast %cst_88 : f32 to vector<256x32xf32>
    %c0_89 = arith.constant 0 : index
    %c0_90 = arith.constant 0 : index
    %c0_91 = arith.constant 0 : index
    %74 = vector.load %arg9[%c0_89, %c0_90, %c0_91] : memref<18x18x16xf32, #tpu.memory_space<vmem>>, vector<16x16x16xf32>
    %75 = vector.shape_cast %74 : vector<16x16x16xf32> to vector<256x16xf32>
    %c0_92 = arith.constant 0 : index
    %c0_93 = arith.constant 0 : index
    %c0_94 = arith.constant 0 : index
    %c0_95 = arith.constant 0 : index
    %76 = vector.load %arg4[%c0_92, %c0_93, %c0_94, %c0_95] : memref<3x3x16x32xf32, #tpu.memory_space<vmem>>, vector<1x1x16x32xf32>
    %77 = vector.shape_cast %76 : vector<1x1x16x32xf32> to vector<16x32xf32>
    %cst_96 = arith.constant dense<0.000000e+00> : vector<256x32xf32>
    %78 = tpu.matmul %75, %77, %cst_96 {dimension_numbers = #tpu.dot_dimension_numbers<[1], [0], [0], [1], [0, 0, 1, 1], [], []>} : vector<256x16xf32>, vector<16x32xf32>, vector<256x32xf32> -> vector<256x32xf32>
    %79 = arith.addf %73, %78 : vector<256x32xf32>
    %c0_97 = arith.constant 0 : index
    %c1_98 = arith.constant 1 : index
    %c0_99 = arith.constant 0 : index
    %80 = vector.load %arg9[%c0_97, %c1_98, %c0_99] : memref<18x18x16xf32, #tpu.memory_space<vmem>>, vector<16x16x16xf32>
    %81 = vector.shape_cast %80 : vector<16x16x16xf32> to vector<256x16xf32>
    %c0_100 = arith.constant 0 : index
    %c1_101 = arith.constant 1 : index
    %c0_102 = arith.constant 0 : index
    %c0_103 = arith.constant 0 : index
    %82 = vector.load %arg4[%c0_100, %c1_101, %c0_102, %c0_103] : memref<3x3x16x32xf32, #tpu.memory_space<vmem>>, vector<1x1x16x32xf32>
    %83 = vector.shape_cast %82 : vector<1x1x16x32xf32> to vector<16x32xf32>
    %cst_104 = arith.constant dense<0.000000e+00> : vector<256x32xf32>
    %84 = tpu.matmul %81, %83, %cst_104 {dimension_numbers = #tpu.dot_dimension_numbers<[1], [0], [0], [1], [0, 0, 1, 1], [], []>} : vector<256x16xf32>, vector<16x32xf32>, vector<256x32xf32> -> vector<256x32xf32>
    %85 = arith.addf %79, %84 : vector<256x32xf32>
    %c0_105 = arith.constant 0 : index
    %c2_106 = arith.constant 2 : index
    %c0_107 = arith.constant 0 : index
    %86 = vector.load %arg9[%c0_105, %c2_106, %c0_107] : memref<18x18x16xf32, #tpu.memory_space<vmem>>, vector<16x16x16xf32>
    %87 = vector.shape_cast %86 : vector<16x16x16xf32> to vector<256x16xf32>
    %c0_108 = arith.constant 0 : index
    %c2_109 = arith.constant 2 : index
    %c0_110 = arith.constant 0 : index
    %c0_111 = arith.constant 0 : index
    %88 = vector.load %arg4[%c0_108, %c2_109, %c0_110, %c0_111] : memref<3x3x16x32xf32, #tpu.memory_space<vmem>>, vector<1x1x16x32xf32>
    %89 = vector.shape_cast %88 : vector<1x1x16x32xf32> to vector<16x32xf32>
    %cst_112 = arith.constant dense<0.000000e+00> : vector<256x32xf32>
    %90 = tpu.matmul %87, %89, %cst_112 {dimension_numbers = #tpu.dot_dimension_numbers<[1], [0], [0], [1], [0, 0, 1, 1], [], []>} : vector<256x16xf32>, vector<16x32xf32>, vector<256x32xf32> -> vector<256x32xf32>
    %91 = arith.addf %85, %90 : vector<256x32xf32>
    %c1_113 = arith.constant 1 : index
    %c0_114 = arith.constant 0 : index
    %c0_115 = arith.constant 0 : index
    %92 = vector.load %arg9[%c1_113, %c0_114, %c0_115] : memref<18x18x16xf32, #tpu.memory_space<vmem>>, vector<16x16x16xf32>
    %93 = vector.shape_cast %92 : vector<16x16x16xf32> to vector<256x16xf32>
    %c1_116 = arith.constant 1 : index
    %c0_117 = arith.constant 0 : index
    %c0_118 = arith.constant 0 : index
    %c0_119 = arith.constant 0 : index
    %94 = vector.load %arg4[%c1_116, %c0_117, %c0_118, %c0_119] : memref<3x3x16x32xf32, #tpu.memory_space<vmem>>, vector<1x1x16x32xf32>
    %95 = vector.shape_cast %94 : vector<1x1x16x32xf32> to vector<16x32xf32>
    %cst_120 = arith.constant dense<0.000000e+00> : vector<256x32xf32>
    %96 = tpu.matmul %93, %95, %cst_120 {dimension_numbers = #tpu.dot_dimension_numbers<[1], [0], [0], [1], [0, 0, 1, 1], [], []>} : vector<256x16xf32>, vector<16x32xf32>, vector<256x32xf32> -> vector<256x32xf32>
    %97 = arith.addf %91, %96 : vector<256x32xf32>
    %c1_121 = arith.constant 1 : index
    %c1_122 = arith.constant 1 : index
    %c0_123 = arith.constant 0 : index
    %98 = vector.load %arg9[%c1_121, %c1_122, %c0_123] : memref<18x18x16xf32, #tpu.memory_space<vmem>>, vector<16x16x16xf32>
    %99 = vector.shape_cast %98 : vector<16x16x16xf32> to vector<256x16xf32>
    %c1_124 = arith.constant 1 : index
    %c1_125 = arith.constant 1 : index
    %c0_126 = arith.constant 0 : index
    %c0_127 = arith.constant 0 : index
    %100 = vector.load %arg4[%c1_124, %c1_125, %c0_126, %c0_127] : memref<3x3x16x32xf32, #tpu.memory_space<vmem>>, vector<1x1x16x32xf32>
    %101 = vector.shape_cast %100 : vector<1x1x16x32xf32> to vector<16x32xf32>
    %cst_128 = arith.constant dense<0.000000e+00> : vector<256x32xf32>
    %102 = tpu.matmul %99, %101, %cst_128 {dimension_numbers = #tpu.dot_dimension_numbers<[1], [0], [0], [1], [0, 0, 1, 1], [], []>} : vector<256x16xf32>, vector<16x32xf32>, vector<256x32xf32> -> vector<256x32xf32>
    %103 = arith.addf %97, %102 : vector<256x32xf32>
    %c1_129 = arith.constant 1 : index
    %c2_130 = arith.constant 2 : index
    %c0_131 = arith.constant 0 : index
    %104 = vector.load %arg9[%c1_129, %c2_130, %c0_131] : memref<18x18x16xf32, #tpu.memory_space<vmem>>, vector<16x16x16xf32>
    %105 = vector.shape_cast %104 : vector<16x16x16xf32> to vector<256x16xf32>
    %c1_132 = arith.constant 1 : index
    %c2_133 = arith.constant 2 : index
    %c0_134 = arith.constant 0 : index
    %c0_135 = arith.constant 0 : index
    %106 = vector.load %arg4[%c1_132, %c2_133, %c0_134, %c0_135] : memref<3x3x16x32xf32, #tpu.memory_space<vmem>>, vector<1x1x16x32xf32>
    %107 = vector.shape_cast %106 : vector<1x1x16x32xf32> to vector<16x32xf32>
    %cst_136 = arith.constant dense<0.000000e+00> : vector<256x32xf32>
    %108 = tpu.matmul %105, %107, %cst_136 {dimension_numbers = #tpu.dot_dimension_numbers<[1], [0], [0], [1], [0, 0, 1, 1], [], []>} : vector<256x16xf32>, vector<16x32xf32>, vector<256x32xf32> -> vector<256x32xf32>
    %109 = arith.addf %103, %108 : vector<256x32xf32>
    %c2_137 = arith.constant 2 : index
    %c0_138 = arith.constant 0 : index
    %c0_139 = arith.constant 0 : index
    %110 = vector.load %arg9[%c2_137, %c0_138, %c0_139] : memref<18x18x16xf32, #tpu.memory_space<vmem>>, vector<16x16x16xf32>
    %111 = vector.shape_cast %110 : vector<16x16x16xf32> to vector<256x16xf32>
    %c2_140 = arith.constant 2 : index
    %c0_141 = arith.constant 0 : index
    %c0_142 = arith.constant 0 : index
    %c0_143 = arith.constant 0 : index
    %112 = vector.load %arg4[%c2_140, %c0_141, %c0_142, %c0_143] : memref<3x3x16x32xf32, #tpu.memory_space<vmem>>, vector<1x1x16x32xf32>
    %113 = vector.shape_cast %112 : vector<1x1x16x32xf32> to vector<16x32xf32>
    %cst_144 = arith.constant dense<0.000000e+00> : vector<256x32xf32>
    %114 = tpu.matmul %111, %113, %cst_144 {dimension_numbers = #tpu.dot_dimension_numbers<[1], [0], [0], [1], [0, 0, 1, 1], [], []>} : vector<256x16xf32>, vector<16x32xf32>, vector<256x32xf32> -> vector<256x32xf32>
    %115 = arith.addf %109, %114 : vector<256x32xf32>
    %c2_145 = arith.constant 2 : index
    %c1_146 = arith.constant 1 : index
    %c0_147 = arith.constant 0 : index
    %116 = vector.load %arg9[%c2_145, %c1_146, %c0_147] : memref<18x18x16xf32, #tpu.memory_space<vmem>>, vector<16x16x16xf32>
    %117 = vector.shape_cast %116 : vector<16x16x16xf32> to vector<256x16xf32>
    %c2_148 = arith.constant 2 : index
    %c1_149 = arith.constant 1 : index
    %c0_150 = arith.constant 0 : index
    %c0_151 = arith.constant 0 : index
    %118 = vector.load %arg4[%c2_148, %c1_149, %c0_150, %c0_151] : memref<3x3x16x32xf32, #tpu.memory_space<vmem>>, vector<1x1x16x32xf32>
    %119 = vector.shape_cast %118 : vector<1x1x16x32xf32> to vector<16x32xf32>
    %cst_152 = arith.constant dense<0.000000e+00> : vector<256x32xf32>
    %120 = tpu.matmul %117, %119, %cst_152 {dimension_numbers = #tpu.dot_dimension_numbers<[1], [0], [0], [1], [0, 0, 1, 1], [], []>} : vector<256x16xf32>, vector<16x32xf32>, vector<256x32xf32> -> vector<256x32xf32>
    %121 = arith.addf %115, %120 : vector<256x32xf32>
    %c2_153 = arith.constant 2 : index
    %c2_154 = arith.constant 2 : index
    %c0_155 = arith.constant 0 : index
    %122 = vector.load %arg9[%c2_153, %c2_154, %c0_155] : memref<18x18x16xf32, #tpu.memory_space<vmem>>, vector<16x16x16xf32>
    %123 = vector.shape_cast %122 : vector<16x16x16xf32> to vector<256x16xf32>
    %c2_156 = arith.constant 2 : index
    %c2_157 = arith.constant 2 : index
    %c0_158 = arith.constant 0 : index
    %c0_159 = arith.constant 0 : index
    %124 = vector.load %arg4[%c2_156, %c2_157, %c0_158, %c0_159] : memref<3x3x16x32xf32, #tpu.memory_space<vmem>>, vector<1x1x16x32xf32>
    %125 = vector.shape_cast %124 : vector<1x1x16x32xf32> to vector<16x32xf32>
    %cst_160 = arith.constant dense<0.000000e+00> : vector<256x32xf32>
    %126 = tpu.matmul %123, %125, %cst_160 {dimension_numbers = #tpu.dot_dimension_numbers<[1], [0], [0], [1], [0, 0, 1, 1], [], []>} : vector<256x16xf32>, vector<16x32xf32>, vector<256x32xf32> -> vector<256x32xf32>
    %127 = arith.addf %121, %126 : vector<256x32xf32>
    %c0_161 = arith.constant 0 : index
    %c0_162 = arith.constant 0 : index
    %128 = vector.load %arg5[%c0_161, %c0_162] : memref<1x32xf32, #tpu.memory_space<vmem>>, vector<1x32xf32>
    %129 = vector.broadcast %128 : vector<1x32xf32> to vector<256x32xf32>
    %130 = arith.addf %127, %129 : vector<256x32xf32>
    %cst_163 = arith.constant 0.000000e+00 : f32
    %131 = vector.broadcast %cst_163 : f32 to vector<256x32xf32>
    %132 = arith.maximumf %130, %131 : vector<256x32xf32>
    %cst_164 = arith.constant dense<0.000000e+00> : vector<32xf32>
    %133 = vector.multi_reduction <add>, %132, %cst_164 [0] : vector<256x32xf32> to vector<32xf32>
    %134 = vector.shape_cast %133 : vector<32xf32> to vector<1x32xf32>
    %cst_165 = arith.constant 3.906250e-03 : f32
    %135 = vector.broadcast %cst_165 : f32 to vector<1x32xf32>
    %136 = arith.mulf %134, %135 : vector<1x32xf32>
    %c0_166 = arith.constant 0 : index
    %c0_167 = arith.constant 0 : index
    %137 = vector.load %arg6[%c0_166, %c0_167] : memref<32x2xf32, #tpu.memory_space<vmem>>, vector<32x2xf32>
    %cst_168 = arith.constant dense<0.000000e+00> : vector<1x2xf32>
    %138 = tpu.matmul %136, %137, %cst_168 {dimension_numbers = #tpu.dot_dimension_numbers<[1], [0], [0], [1], [0, 0, 1, 1], [], []>} : vector<1x32xf32>, vector<32x2xf32>, vector<1x2xf32> -> vector<1x2xf32>
    %c0_169 = arith.constant 0 : index
    %c0_170 = arith.constant 0 : index
    %139 = vector.load %arg7[%c0_169, %c0_170] : memref<1x2xf32, #tpu.memory_space<vmem>>, vector<1x2xf32>
    %140 = arith.addf %138, %139 : vector<1x2xf32>
    %141 = vector.shape_cast %140 : vector<1x2xf32> to vector<1x1x2xf32>
    %c0_171 = arith.constant 0 : index
    %c0_172 = arith.constant 0 : index
    %c0_173 = arith.constant 0 : index
    %142 = vector.load %arg8[%c0_171, %c0_172, %c0_173] : memref<1x1x2xf32, #tpu.memory_space<vmem>>, vector<1x1x2xf32>
    tpu.vector_store %arg8[%c0_171, %c0_172, %c0_173], %141 {strides = array<i32>} : memref<1x1x2xf32, #tpu.memory_space<vmem>>, vector<1x1x2xf32>,
    return
  }
  func.func @transform_0(%arg0: i32) -> (i32, i32, i32, i32) {
    %c0_i32 = arith.constant 0 : i32
    %c0_i32_0 = arith.constant 0 : i32
    %c0_i32_1 = arith.constant 0 : i32
    %c0_i32_2 = arith.constant 0 : i32
    return %arg0, %c0_i32, %c0_i32_0, %c0_i32_1 : i32, i32, i32, i32
  }
  func.func @transform_1(%arg0: i32) -> (i32, i32, i32, i32) {
    %c0_i32 = arith.constant 0 : i32
    %c0_i32_0 = arith.constant 0 : i32
    %c0_i32_1 = arith.constant 0 : i32
    %c0_i32_2 = arith.constant 0 : i32
    %c0_i32_3 = arith.constant 0 : i32
    return %c0_i32, %c0_i32_0, %c0_i32_1, %c0_i32_2 : i32, i32, i32, i32
  }
  func.func @transform_2(%arg0: i32) -> (i32, i32) {
    %c0_i32 = arith.constant 0 : i32
    %c0_i32_0 = arith.constant 0 : i32
    %c0_i32_1 = arith.constant 0 : i32
    return %c0_i32, %c0_i32_0 : i32, i32
  }
  func.func @transform_3(%arg0: i32) -> (i32, i32, i32, i32) {
    %c0_i32 = arith.constant 0 : i32
    %c0_i32_0 = arith.constant 0 : i32
    %c0_i32_1 = arith.constant 0 : i32
    %c0_i32_2 = arith.constant 0 : i32
    %c0_i32_3 = arith.constant 0 : i32
    return %c0_i32, %c0_i32_0, %c0_i32_1, %c0_i32_2 : i32, i32, i32, i32
  }
  func.func @transform_4(%arg0: i32) -> (i32, i32) {
    %c0_i32 = arith.constant 0 : i32
    %c0_i32_0 = arith.constant 0 : i32
    %c0_i32_1 = arith.constant 0 : i32
    return %c0_i32, %c0_i32_0 : i32, i32
  }
  func.func @transform_5(%arg0: i32) -> (i32, i32) {
    %c0_i32 = arith.constant 0 : i32
    %c0_i32_0 = arith.constant 0 : i32
    %c0_i32_1 = arith.constant 0 : i32
    return %c0_i32, %c0_i32_0 : i32, i32
  }
  func.func @transform_6(%arg0: i32) -> (i32, i32) {
    %c0_i32 = arith.constant 0 : i32
    %c0_i32_0 = arith.constant 0 : i32
    %c0_i32_1 = arith.constant 0 : i32
    return %c0_i32, %c0_i32_0 : i32, i32
  }
  func.func @transform_7(%arg0: i32) -> (i32, i32, i32) {
    %c0_i32 = arith.constant 0 : i32
    %c0_i32_0 = arith.constant 0 : i32
    %c0_i32_1 = arith.constant 0 : i32
    return %arg0, %c0_i32, %c0_i32_0 : i32, i32, i32
  }
}

</mosaic_0001>

<llo_original>
// kernel: tpu_custom_call.1
$region0: #{tpu_custom_call.1}
  #allocation0 [shape = 'u32[]', space=smem, size = 0x4, offset = 0x4, fixed_abs, tag = 'smem constant byte address 0x4 - core index']
  #allocation1 [shape = 'u32[72,128]{1,0:T(1,128)}', space=vmem, size = 0x9000, scoped, tag = 'internal scratch']
  #allocation2 [shape = 'f32[18,18,16]{2,1,0:T(8,128)}', space=vmem, size = 0x36000, scoped, tag = 'scratch operand']
  %s0 = inlined_call_operand.vmem [shape: f32[2,18,18,4], index: 0, kind: input, shape index: {}]
  %s1 = inlined_call_operand.vmem [shape: f32[3,3,4,16], index: 1, kind: input, shape index: {}]
  %s2 = inlined_call_operand.vmem [shape: f32[1,16], index: 2, kind: input, shape index: {}]
  %s3 = inlined_call_operand.vmem [shape: f32[3,3,16,32], index: 3, kind: input, shape index: {}]
  %s4 = inlined_call_operand.vmem [shape: f32[1,32], index: 4, kind: input, shape index: {}]
  %s5 = inlined_call_operand.vmem [shape: f32[32,2], index: 5, kind: input, shape index: {}]
  %s6 = inlined_call_operand.vmem [shape: f32[1,2], index: 6, kind: input, shape index: {}]
  %s7 = inlined_call_operand.hbm [shape: f32[2,1,2], index: 7, kind: output, shape index: {}]
  %s8 = sld [smem:[#allocation0]]
  $region61: #{tpu_custom_call.1} parent=0
    _
  %s10 = ssub.s32 1, %s8
  %s11 = scalar_select 0, %s10, %s8
  $region1: #{tpu_custom_call.1} parent=0
    #allocation3 [shape = 'u8[1024]{0}', space=vmem, size = 0x400, scoped, tag = 'output window, operand 0']
    #allocation4 [shape = 's32[2]{0}', space=sflag, size = 0x8, scoped, tag = 'scoped memory for tpu_custom_call.1']
    %12 = vsyncpa [#allocation4], 0
    %s13 = scalar_lea.sflag [#allocation4], 1
    %14 = vsyncpa %s13, 0
    loop: start=0, step=1, limit=4
    $region2: #{tpu_custom_call.1} parent=1 // loop_pre_header
      _
    $region3: #{tpu_custom_call.1} parent=1 // loop_header
      %s16 = sphi 0, %s20
      %p17 = scmp.ge.s32.totalorder %s16, 4
      %s26 = sphi 0, %s28
      %s29 = sphi 0, %s26
      %s30 = sphi 0, %s29
      %s46 = sphi 0, %s30
      %s50 = sphi 0, %s50
      %s52 = sphi 0, %s50
      %s53 = sphi 0, %s52
      %s67 = sphi 0, %s53
      %s71 = sphi 0, %s71
      %s73 = sphi 0, %s71
      %s74 = sphi 0, %s73
      %s88 = sphi 0, %s74
      %s92 = sphi 0, %s92
      %s94 = sphi 0, %s92
      %s95 = sphi 0, %s94
      %s109 = sphi 0, %s95
      %s113 = sphi 0, %s113
      %s115 = sphi 0, %s113
      %s116 = sphi 0, %s115
      %s130 = sphi 0, %s116
      %s134 = sphi 0, %s134
      %s136 = sphi 0, %s134
      %s137 = sphi 0, %s136
      %s151 = sphi 0, %s137
      %s155 = sphi 0, %s155
      %s157 = sphi 0, %s155
      %s158 = sphi 0, %s157
      %s172 = sphi 0, %s158
      %s178 = sphi 0, %s180
      %s181 = sphi 0, %s178
      %s182 = sphi 0, %s181
      %s198 = sphi 0, %s182
    $region4: #{tpu_custom_call.1} parent=1 // loop_header_branch
      %19 = sbr.rel (%p17) target = $region8
    $region5: #{tpu_custom_call.1} parent=1 // loop_body
      %s21 = ssub.s32 %s16, 1
      %s22 = ssub.s32 %s16, 2
      %s23 = sadd.s32 %s16, 1
      %s24 = ssub.s32 %s16, %s23
      %p25 = scmp.eq.s32.totalorder %s24, 0
      %s27 = sadd.s32 %s26, 1
      %s28 = scalar_select %p25, %s26, %s27
      %p31 = pneg %p25
      %p32 = scmp.eq.s32.totalorder %s16, 1
      %p33 = por %p31, %p32
      %p34 = scmp.ne.s32.totalorder %s26, %s29
      %p35 = scmp.eq.s32.totalorder %s16, 0
      %p36 = por %p34, %p35
      %p37 = scmp.ne.s32.totalorder %s26, %s29
      %p38 = scmp.eq.s32.totalorder %s21, 1
      %p39 = por %p37, %p38
      %p40 = scmp.ne.s32.totalorder %s29, %s30
      %p41 = scmp.eq.s32.totalorder %s21, 0
      %p42 = por %p40, %p41
      %p43 = scmp.ne.s32.totalorder %s29, %s30
      %p44 = scmp.eq.s32.totalorder %s22, 1
      %p45 = por %p43, %p44
      %p47 = scmp.ne.s32.totalorder %s30, %s46
      %p48 = scmp.eq.s32.totalorder %s22, 0
      %p49 = por %p47, %p48
      %s51 = sadd.s32 %s50, 1
      %p54 = scmp.eq.s32.totalorder %s16, 1
      %p55 = scmp.ne.s32.totalorder %s50, %s52
      %p56 = scmp.eq.s32.totalorder %s16, 0
      %p57 = por %p55, %p56
      %p58 = scmp.ne.s32.totalorder %s50, %s52
      %p59 = scmp.eq.s32.totalorder %s21, 1
      %p60 = por %p58, %p59
      %p61 = scmp.ne.s32.totalorder %s52, %s53
      %p62 = scmp.eq.s32.totalorder %s21, 0
      %p63 = por %p61, %p62
      %p64 = scmp.ne.s32.totalorder %s52, %s53
      %p65 = scmp.eq.s32.totalorder %s22, 1
      %p66 = por %p64, %p65
      %p68 = scmp.ne.s32.totalorder %s53, %s67
      %p69 = scmp.eq.s32.totalorder %s22, 0
      %p70 = por %p68, %p69
      %s72 = sadd.s32 %s71, 1
      %p75 = scmp.eq.s32.totalorder %s16, 1
      %p76 = scmp.ne.s32.totalorder %s71, %s73
      %p77 = scmp.eq.s32.totalorder %s16, 0
      %p78 = por %p76, %p77
      %p79 = scmp.ne.s32.totalorder %s71, %s73
      %p80 = scmp.eq.s32.totalorder %s21, 1
      %p81 = por %p79, %p80
      %p82 = scmp.ne.s32.totalorder %s73, %s74
      %p83 = scmp.eq.s32.totalorder %s21, 0
      %p84 = por %p82, %p83
      %p85 = scmp.ne.s32.totalorder %s73, %s74
      %p86 = scmp.eq.s32.totalorder %s22, 1
      %p87 = por %p85, %p86
      %p89 = scmp.ne.s32.totalorder %s74, %s88
      %p90 = scmp.eq.s32.totalorder %s22, 0
      %p91 = por %p89, %p90
      %s93 = sadd.s32 %s92, 1
      %p96 = scmp.eq.s32.totalorder %s16, 1
      %p97 = scmp.ne.s32.totalorder %s92, %s94
      %p98 = scmp.eq.s32.totalorder %s16, 0
      %p99 = por %p97, %p98
      %p100 = scmp.ne.s32.totalorder %s92, %s94
      %p101 = scmp.eq.s32.totalorder %s21, 1
      %p102 = por %p100, %p101
      %p103 = scmp.ne.s32.totalorder %s94, %s95
      %p104 = scmp.eq.s32.totalorder %s21, 0
      %p105 = por %p103, %p104
      %p106 = scmp.ne.s32.totalorder %s94, %s95
      %p107 = scmp.eq.s32.totalorder %s22, 1
      %p108 = por %p106, %p107
      %p110 = scmp.ne.s32.totalorder %s95, %s109
      %p111 = scmp.eq.s32.totalorder %s22, 0
      %p112 = por %p110, %p111
      %s114 = sadd.s32 %s113, 1
      %p117 = scmp.eq.s32.totalorder %s16, 1
      %p118 = scmp.ne.s32.totalorder %s113, %s115
      %p119 = scmp.eq.s32.totalorder %s16, 0
      %p120 = por %p118, %p119
      %p121 = scmp.ne.s32.totalorder %s113, %s115
      %p122 = scmp.eq.s32.totalorder %s21, 1
      %p123 = por %p121, %p122
      %p124 = scmp.ne.s32.totalorder %s115, %s116
      %p125 = scmp.eq.s32.totalorder %s21, 0
      %p126 = por %p124, %p125
      %p127 = scmp.ne.s32.totalorder %s115, %s116
      %p128 = scmp.eq.s32.totalorder %s22, 1
      %p129 = por %p127, %p128
      %p131 = scmp.ne.s32.totalorder %s116, %s130
      %p132 = scmp.eq.s32.totalorder %s22, 0
      %p133 = por %p131, %p132
      %s135 = sadd.s32 %s134, 1
      %p138 = scmp.eq.s32.totalorder %s16, 1
      %p139 = scmp.ne.s32.totalorder %s134, %s136
      %p140 = scmp.eq.s32.totalorder %s16, 0
      %p141 = por %p139, %p140
      %p142 = scmp.ne.s32.totalorder %s134, %s136
      %p143 = scmp.eq.s32.totalorder %s21, 1
      %p144 = por %p142, %p143
      %p145 = scmp.ne.s32.totalorder %s136, %s137
      %p146 = scmp.eq.s32.totalorder %s21, 0
      %p147 = por %p145, %p146
      %p148 = scmp.ne.s32.totalorder %s136, %s137
      %p149 = scmp.eq.s32.totalorder %s22, 1
      %p150 = por %p148, %p149
      %p152 = scmp.ne.s32.totalorder %s137, %s151
      %p153 = scmp.eq.s32.totalorder %s22, 0
      %p154 = por %p152, %p153
      %s156 = sadd.s32 %s155, 1
      %p159 = scmp.eq.s32.totalorder %s16, 1
      %p160 = scmp.ne.s32.totalorder %s155, %s157
      %p161 = scmp.eq.s32.totalorder %s16, 0
      %p162 = por %p160, %p161
      %p163 = scmp.ne.s32.totalorder %s155, %s157
      %p164 = scmp.eq.s32.totalorder %s21, 1
      %p165 = por %p163, %p164
      %p166 = scmp.ne.s32.totalorder %s157, %s158
      %p167 = scmp.eq.s32.totalorder %s21, 0
      %p168 = por %p166, %p167
      %p169 = scmp.ne.s32.totalorder %s157, %s158
      %p170 = scmp.eq.s32.totalorder %s22, 1
      %p171 = por %p169, %p170
      %p173 = scmp.ne.s32.totalorder %s158, %s172
      %p174 = scmp.eq.s32.totalorder %s22, 0
      %p175 = por %p173, %p174
      %s176 = ssub.s32 %s16, %s23
      %p177 = scmp.eq.s32.totalorder %s176, 0
      %s179 = sadd.s32 %s178, 1
      %s180 = scalar_select %p177, %s178, %s179
      %p183 = pneg %p177
      %p184 = scmp.eq.s32.totalorder %s16, 1
      %p185 = por %p183, %p184
      %p186 = scmp.ne.s32.totalorder %s178, %s181
      %p187 = scmp.eq.s32.totalorder %s16, 0
      %p188 = por %p186, %p187
      %p189 = scmp.ne.s32.totalorder %s178, %s181
      %p190 = scmp.eq.s32.totalorder %s21, 1
      %p191 = por %p189, %p190
      %p192 = scmp.ne.s32.totalorder %s181, %s182
      %p193 = scmp.eq.s32.totalorder %s21, 0
      %p194 = por %p192, %p193
      %p195 = scmp.ne.s32.totalorder %s181, %s182
      %p196 = scmp.eq.s32.totalorder %s22, 1
      %p197 = por %p195, %p196
      %p199 = scmp.ne.s32.totalorder %s182, %s198
      %p200 = scmp.eq.s32.totalorder %s22, 0
      %p201 = por %p199, %p200
      %p202 = scmp.le.s32.totalorder 1, %s16
      %p203 = scmp.lt.s32.totalorder %s16, 3
      %p204 = pnand %p202, %p203
      %p205 = pneg %p204
      // Predicated region
      $region9: #{tpu_custom_call.1} parent=5 // pred_check
        _
      $region10: #{tpu_custom_call.1} parent=5 // pred_check_branch
        %207 = sbr.rel (%p204) target = $region12
      $region11: #{tpu_custom_call.1} parent=5 // pred_region
        %s208 = ssub.s32 %s16, 1
        // Predicated region
        $region13: #{tpu_custom_call.1} parent=11 // pred_check
          %p209 = pneg %p63
        $region14: #{tpu_custom_call.1} parent=11 // pred_check_branch
          %211 = sbr.rel (%p209) target = $region16
        $region15: #{tpu_custom_call.1} parent=11 // pred_region
          _
        $region16: #{tpu_custom_call.1} parent=11 // pred_fallthru
          _
        // Predicated region
        $region17: #{tpu_custom_call.1} parent=11 // pred_check
          %p212 = pneg %p84
        $region18: #{tpu_custom_call.1} parent=11 // pred_check_branch
          %214 = sbr.rel (%p212) target = $region20
        $region19: #{tpu_custom_call.1} parent=11 // pred_region
          _
        $region20: #{tpu_custom_call.1} parent=11 // pred_fallthru
          _
        // Predicated region
        $region21: #{tpu_custom_call.1} parent=11 // pred_check
          %p215 = pneg %p105
        $region22: #{tpu_custom_call.1} parent=11 // pred_check_branch
          %217 = sbr.rel (%p215) target = $region24
        $region23: #{tpu_custom_call.1} parent=11 // pred_region
          _
        $region24: #{tpu_custom_call.1} parent=11 // pred_fallthru
          _
        // Predicated region
        $region25: #{tpu_custom_call.1} parent=11 // pred_check
          %p218 = pneg %p126
        $region26: #{tpu_custom_call.1} parent=11 // pred_check_branch
          %220 = sbr.rel (%p218) target = $region28
        $region27: #{tpu_custom_call.1} parent=11 // pred_region
          _
        $region28: #{tpu_custom_call.1} parent=11 // pred_fallthru
          _
        // Predicated region
        $region29: #{tpu_custom_call.1} parent=11 // pred_check
          %p221 = pneg %p147
        $region30: #{tpu_custom_call.1} parent=11 // pred_check_branch
          %223 = sbr.rel (%p221) target = $region32
        $region31: #{tpu_custom_call.1} parent=11 // pred_region
          _
        $region32: #{tpu_custom_call.1} parent=11 // pred_fallthru
          _
        // Predicated region
        $region33: #{tpu_custom_call.1} parent=11 // pred_check
          %p224 = pneg %p168
        $region34: #{tpu_custom_call.1} parent=11 // pred_check_branch
          %226 = sbr.rel (%p224) target = $region36
        $region35: #{tpu_custom_call.1} parent=11 // pred_region
          _
        $region36: #{tpu_custom_call.1} parent=11 // pred_fallthru
          _
      $region12: #{tpu_custom_call.1} parent=5 // pred_fallthru
        _
      %p227 = scmp.lt.s32.totalorder %s16, 2
      // Predicated region
      $region37: #{tpu_custom_call.1} parent=5 // pred_check
        %p228 = pneg %p227
      $region38: #{tpu_custom_call.1} parent=5 // pred_check_branch
        %230 = sbr.rel (%p228) target = $region40
      $region39: #{tpu_custom_call.1} parent=5 // pred_region
        // Predicated region
        $region41: #{tpu_custom_call.1} parent=39 // pred_check
          %p231 = pneg %p36
        $region42: #{tpu_custom_call.1} parent=39 // pred_check_branch
          %233 = sbr.rel (%p231) target = $region44
        $region43: #{tpu_custom_call.1} parent=39 // pred_region
          %p234 = scmp.lt.s32.totalorder %s16, 1
          %s235 = scalar_select %p234, %s16, 1
          %s236 = smul.addr %s235, 54
          %s237 = smul.addr %s236, 8
          %s238 = scalar_lea.vmem %s0, %s237
        $region44: #{tpu_custom_call.1} parent=39 // pred_fallthru
          _
      $region40: #{tpu_custom_call.1} parent=5 // pred_fallthru
        _
      %p239 = scmp.le.s32.totalorder 1, %s16
      %p240 = scmp.lt.s32.totalorder %s16, 3
      %p241 = pnand %p239, %p240
      %p242 = pneg %p241
      // Predicated region
      $region45: #{tpu_custom_call.1} parent=5 // pred_check
        _
      $region46: #{tpu_custom_call.1} parent=5 // pred_check_branch
        %244 = sbr.rel (%p241) target = $region48
      $region47: #{tpu_custom_call.1} parent=5 // pred_region
        %s245 = ssub.s32 %s16, 1
        %p246 = scmp.lt.s32.totalorder %s21, 1
        %s247 = scalar_select %p246, %s21, 1
        %s248 = smul.addr %s247, 54
        %s249 = smul.addr %s248, 8
        %s250 = scalar_lea.vmem %s0, %s249
        %p251 = pneg %p42
        %p252 = pneg %p39
        %p253 = pneg %p63
        %p254 = pneg %p60
        %p255 = pneg %p84
        %p256 = pneg %p81
        %p257 = pneg %p105
        %p258 = pneg %p102
        %p259 = pneg %p126
        %p260 = pneg %p123
        %p261 = pneg %p147
        %p262 = pneg %p144
        %p263 = pneg %p168
        %p264 = pneg %p165
        %p265 = pneg %p194
        %p266 = pneg %p191
        %s267 = sand.u32 %s181, 1
        %s268 = scalar_lea.sflag [#allocation4], %s267
        %s269 = sand.u32 %s181, 1
        %s270 = scalar_lea.vmem [#allocation3], %s269
        %p271 = scmp.lt.s32.totalorder %s21, 1
        %s272 = scalar_select %p271, %s21, 1
        %s273 = smul.addr %s272, 54
        %s274 = smul.addr %s273, 8
        %s275 = scalar_lea.vmem %s0, %s274
        %v276 = vld [vmem:[%s275] sm:$0xff]
        %v277 = vld [vmem:[%s275 + $0x8] sm:$0xff]
        %v278 = vld [vmem:[%s275 + $0x18] sm:$0xff]
        %v279 = vld [vmem:[%s275 + $0x20] sm:$0xff]
        %v280 = vld [vmem:[%s275 + $0x30] sm:$0xff]
        %v281 = vld [vmem:[%s275 + $0x38] sm:$0xff]
        %v282 = vld [vmem:[%s275 + $0x48] sm:$0xff]
        %v283 = vld [vmem:[%s275 + $0x50] sm:$0xff]
        %v284 = vld [vmem:[%s275 + $0x60] sm:$0xff]
        %v285 = vld [vmem:[%s275 + $0x68] sm:$0xff]
        %v286 = vld [vmem:[%s275 + $0x78] sm:$0xff]
        %v287 = vld [vmem:[%s275 + $0x80] sm:$0xff]
        %v288 = vld [vmem:[%s275 + $0x90] sm:$0xff]
        %v289 = vld [vmem:[%s275 + $0x98] sm:$0xff]
        %v290 = vld [vmem:[%s275 + $0xa8] sm:$0xff]
        %v291 = vld [vmem:[%s275 + $0xb0] sm:$0xff]
        %v292 = vld [vmem:[%s275 + $0xc0] sm:$0xff]
        %v293 = vld [vmem:[%s275 + $0xc8] sm:$0xff]
        %v294 = vld [vmem:[%s275 + $0xd8] sm:$0xff]
        %v295 = vld [vmem:[%s275 + $0xe0] sm:$0xff]
        %v296 = vld [vmem:[%s275 + $0xf0] sm:$0xff]
        %v297 = vld [vmem:[%s275 + $0xf8] sm:$0xff]
        %v298 = vld [vmem:[%s275 + $0x108] sm:$0xff]
        %v299 = vld [vmem:[%s275 + $0x110] sm:$0xff]
        %v300 = vld [vmem:[%s275 + $0x120] sm:$0xff]
        %v301 = vld [vmem:[%s275 + $0x128] sm:$0xff]
        %v302 = vld [vmem:[%s275 + $0x138] sm:$0xff]
        %v303 = vld [vmem:[%s275 + $0x140] sm:$0xff]
        %v304 = vld [vmem:[%s275 + $0x150] sm:$0xff]
        %v305 = vld [vmem:[%s275 + $0x158] sm:$0xff]
        %v306 = vld [vmem:[%s275 + $0x168] sm:$0xff]
        %v307 = vld [vmem:[%s275 + $0x170] sm:$0xff]
        %v308 = vld [vmem:[%s1] sm:$0xf]
        %v309 = vld [vmem:[%s275 + $0x1] sm:$0xff]
        %v310 = vld [vmem:[%s275 + $0x9] sm:$0xff]
        %v311 = vld [vmem:[%s275 + $0x19] sm:$0xff]
        %v312 = vld [vmem:[%s275 + $0x21] sm:$0xff]
        %v313 = vld [vmem:[%s275 + $0x31] sm:$0xff]
        %v314 = vld [vmem:[%s275 + $0x39] sm:$0xff]
        %v315 = vld [vmem:[%s275 + $0x49] sm:$0xff]
        %v316 = vld [vmem:[%s275 + $0x51] sm:$0xff]
        %v317 = vld [vmem:[%s275 + $0x61] sm:$0xff]
        %v318 = vld [vmem:[%s275 + $0x69] sm:$0xff]
        %v319 = vld [vmem:[%s275 + $0x79] sm:$0xff]
        %v320 = vld [vmem:[%s275 + $0x81] sm:$0xff]
        %v321 = vld [vmem:[%s275 + $0x91] sm:$0xff]
        %v322 = vld [vmem:[%s275 + $0x99] sm:$0xff]
        %v323 = vld [vmem:[%s275 + $0xa9] sm:$0xff]
        %v324 = vld [vmem:[%s275 + $0xb1] sm:$0xff]
        %v325 = vld [vmem:[%s275 + $0xc1] sm:$0xff]
        %v326 = vld [vmem:[%s275 + $0xc9] sm:$0xff]
        %v327 = vld [vmem:[%s275 + $0xd9] sm:$0xff]
        %v328 = vld [vmem:[%s275 + $0xe1] sm:$0xff]
        %v329 = vld [vmem:[%s275 + $0xf1] sm:$0xff]
        %v330 = vld [vmem:[%s275 + $0xf9] sm:$0xff]
        %v331 = vld [vmem:[%s275 + $0x109] sm:$0xff]
        %v332 = vld [vmem:[%s275 + $0x111] sm:$0xff]
        %v333 = vld [vmem:[%s275 + $0x121] sm:$0xff]
        %v334 = vld [vmem:[%s275 + $0x129] sm:$0xff]
        %v335 = vld [vmem:[%s275 + $0x139] sm:$0xff]
        %v336 = vld [vmem:[%s275 + $0x141] sm:$0xff]
        %v337 = vld [vmem:[%s275 + $0x151] sm:$0xff]
        %v338 = vld [vmem:[%s275 + $0x159] sm:$0xff]
        %v339 = vld [vmem:[%s275 + $0x169] sm:$0xff]
        %v340 = vld [vmem:[%s275 + $0x171] sm:$0xff]
        %s341 = scalar_lea.vmem %s1, 4
        %v342 = vld [vmem:[%s341] sm:$0xf]
        %vm343 = vcmask 31744
        %v345 = vsel %vm343, %v309, 0
        %v348 = vsel %vm343, %v310, 0
        %v351 = vsel %vm343, %v311, 0
        %v354 = vsel %vm343, %v312, 0
        %v357 = vsel %vm343, %v313, 0
        %v360 = vsel %vm343, %v314, 0
        %v363 = vsel %vm343, %v315, 0
        %v366 = vsel %vm343, %v316, 0
        %v369 = vsel %vm343, %v317, 0
        %v372 = vsel %vm343, %v318, 0
        %v375 = vsel %vm343, %v319, 0
        %v378 = vsel %vm343, %v320, 0
        %v381 = vsel %vm343, %v321, 0
        %v384 = vsel %vm343, %v322, 0
        %v387 = vsel %vm343, %v323, 0
        %v390 = vsel %vm343, %v324, 0
        %v393 = vsel %vm343, %v325, 0
        %v396 = vsel %vm343, %v326, 0
        %v399 = vsel %vm343, %v327, 0
        %v402 = vsel %vm343, %v328, 0
        %v405 = vsel %vm343, %v329, 0
        %v408 = vsel %vm343, %v330, 0
        %v411 = vsel %vm343, %v331, 0
        %v414 = vsel %vm343, %v332, 0
        %v417 = vsel %vm343, %v333, 0
        %v420 = vsel %vm343, %v334, 0
        %v423 = vsel %vm343, %v335, 0
        %v426 = vsel %vm343, %v336, 0
        %v429 = vsel %vm343, %v337, 0
        %v432 = vsel %vm343, %v338, 0
        %v435 = vsel %vm343, %v339, 0
        %v438 = vsel %vm343, %v340, 0
        %vm440 = vcmask 1043456
        %v442 = vsel %vm440, %v342, 0
        %444 = vmatpush.msra.mxu0 0.0
        %445 = vmatpush.msra.mxu0 0.0
        %446 = vmatpush.msra.mxu0 0.0
        %447 = vmatpush.msra.mxu0 0.0
        %448 = vmatpush.msra.mxu0 0.0
        %449 = vmatpush.msra.mxu0 0.0
        %450 = vmatpush.msra.mxu0 0.0
        %451 = vmatpush.msra.mxu0 0.0
        %452 = vmatpush.msra.mxu0 0.0
        %453 = vmatpush.msra.mxu0 0.0
        %454 = vmatpush.msra.mxu0 0.0
        %455 = vmatpush.msra.mxu0 0.0
        %456 = vmatpush.msra.mxu0 0.0
        %457 = vmatpush.msra.mxu0 0.0
        %458 = vmatpush.msra.mxu0 0.0
        %459 = vmatpush.msra.mxu0 %v442
        %460 = vmatmul.f32.gmra.mxu0 %v345
        %v461 = vpop.f32.mrf.mxu0
        %v462 = vadd.f32 0.0, %v461
        %463 = vmatmul.f32.gmra.mxu0 %v348
        %v464 = vpop.f32.mrf.mxu0
        %v465 = vadd.f32 0.0, %v464
        %466 = vmatmul.f32.gmra.mxu0 %v351
        %v467 = vpop.f32.mrf.mxu0
        %v468 = vadd.f32 0.0, %v467
        %469 = vmatmul.f32.gmra.mxu0 %v354
        %v470 = vpop.f32.mrf.mxu0
        %v471 = vadd.f32 0.0, %v470
        %472 = vmatmul.f32.gmra.mxu0 %v357
        %v473 = vpop.f32.mrf.mxu0
        %v474 = vadd.f32 0.0, %v473
        %475 = vmatmul.f32.gmra.mxu0 %v360
        %v476 = vpop.f32.mrf.mxu0
        %v477 = vadd.f32 0.0, %v476
        %478 = vmatmul.f32.gmra.mxu0 %v363
        %v479 = vpop.f32.mrf.mxu0
        %v480 = vadd.f32 0.0, %v479
        %481 = vmatmul.f32.gmra.mxu0 %v366
        %v482 = vpop.f32.mrf.mxu0
        %v483 = vadd.f32 0.0, %v482
        %484 = vmatmul.f32.gmra.mxu0 %v369
        %v485 = vpop.f32.mrf.mxu0
        %v486 = vadd.f32 0.0, %v485
        %487 = vmatmul.f32.gmra.mxu0 %v372
        %v488 = vpop.f32.mrf.mxu0
        %v489 = vadd.f32 0.0, %v488
        %490 = vmatmul.f32.gmra.mxu0 %v375
        %v491 = vpop.f32.mrf.mxu0
        %v492 = vadd.f32 0.0, %v491
        %493 = vmatmul.f32.gmra.mxu0 %v378
        %v494 = vpop.f32.mrf.mxu0
        %v495 = vadd.f32 0.0, %v494
        %496 = vmatmul.f32.gmra.mxu0 %v381
        %v497 = vpop.f32.mrf.mxu0
        %v498 = vadd.f32 0.0, %v497
        %499 = vmatmul.f32.gmra.mxu0 %v384
        %v500 = vpop.f32.mrf.mxu0
        %v501 = vadd.f32 0.0, %v500
        %502 = vmatmul.f32.gmra.mxu0 %v387
        %v503 = vpop.f32.mrf.mxu0
        %v504 = vadd.f32 0.0, %v503
        %505 = vmatmul.f32.gmra.mxu0 %v390
        %v506 = vpop.f32.mrf.mxu0
        %v507 = vadd.f32 0.0, %v506
        %508 = vmatmul.f32.gmra.mxu0 %v393
        %v509 = vpop.f32.mrf.mxu0
        %v510 = vadd.f32 0.0, %v509
        %511 = vmatmul.f32.gmra.mxu0 %v396
        %v512 = vpop.f32.mrf.mxu0
        %v513 = vadd.f32 0.0, %v512
        %514 = vmatmul.f32.gmra.mxu0 %v399
        %v515 = vpop.f32.mrf.mxu0
        %v516 = vadd.f32 0.0, %v515
        %517 = vmatmul.f32.gmra.mxu0 %v402
        %v518 = vpop.f32.mrf.mxu0
        %v519 = vadd.f32 0.0, %v518
        %520 = vmatmul.f32.gmra.mxu0 %v405
        %v521 = vpop.f32.mrf.mxu0
        %v522 = vadd.f32 0.0, %v521
        %523 = vmatmul.f32.gmra.mxu0 %v408
        %v524 = vpop.f32.mrf.mxu0
        %v525 = vadd.f32 0.0, %v524
        %526 = vmatmul.f32.gmra.mxu0 %v411
        %v527 = vpop.f32.mrf.mxu0
        %v528 = vadd.f32 0.0, %v527
        %529 = vmatmul.f32.gmra.mxu0 %v414
        %v530 = vpop.f32.mrf.mxu0
        %v531 = vadd.f32 0.0, %v530
        %532 = vmatmul.f32.gmra.mxu0 %v417
        %v533 = vpop.f32.mrf.mxu0
        %v534 = vadd.f32 0.0, %v533
        %535 = vmatmul.f32.gmra.mxu0 %v420
        %v536 = vpop.f32.mrf.mxu0
        %v537 = vadd.f32 0.0, %v536
        %538 = vmatmul.f32.gmra.mxu0 %v423
        %v539 = vpop.f32.mrf.mxu0
        %v540 = vadd.f32 0.0, %v539
        %541 = vmatmul.f32.gmra.mxu0 %v426
        %v542 = vpop.f32.mrf.mxu0
        %v543 = vadd.f32 0.0, %v542
        %544 = vmatmul.f32.gmra.mxu0 %v429
        %v545 = vpop.f32.mrf.mxu0
        %v546 = vadd.f32 0.0, %v545
        %547 = vmatmul.f32.gmra.mxu0 %v432
        %v548 = vpop.f32.mrf.mxu0
        %v549 = vadd.f32 0.0, %v548
        %550 = vmatmul.f32.gmra.mxu0 %v435
        %v551 = vpop.f32.mrf.mxu0
        %v552 = vadd.f32 0.0, %v551
        %553 = vmatmul.f32.gmra.mxu0 %v438
        %v554 = vpop.f32.mrf.mxu0
        %v555 = vadd.f32 0.0, %v554
        %556 = vdwg.mxu0
        %v558 = vsel %vm343, %v276, 0
        %v561 = vsel %vm343, %v277, 0
        %v564 = vsel %vm343, %v278, 0
        %v567 = vsel %vm343, %v279, 0
        %v570 = vsel %vm343, %v280, 0
        %v573 = vsel %vm343, %v281, 0
        %v576 = vsel %vm343, %v282, 0
        %v579 = vsel %vm343, %v283, 0
        %v582 = vsel %vm343, %v284, 0
        %v585 = vsel %vm343, %v285, 0
        %v588 = vsel %vm343, %v286, 0
        %v591 = vsel %vm343, %v287, 0
        %v594 = vsel %vm343, %v288, 0
        %v597 = vsel %vm343, %v289, 0
        %v600 = vsel %vm343, %v290, 0
        %v603 = vsel %vm343, %v291, 0
        %v606 = vsel %vm343, %v292, 0
        %v609 = vsel %vm343, %v293, 0
        %v612 = vsel %vm343, %v294, 0
        %v615 = vsel %vm343, %v295, 0
        %v618 = vsel %vm343, %v296, 0
        %v621 = vsel %vm343, %v297, 0
        %v624 = vsel %vm343, %v298, 0
        %v627 = vsel %vm343, %v299, 0
        %v630 = vsel %vm343, %v300, 0
        %v633 = vsel %vm343, %v301, 0
        %v636 = vsel %vm343, %v302, 0
        %v639 = vsel %vm343, %v303, 0
        %v642 = vsel %vm343, %v304, 0
        %v645 = vsel %vm343, %v305, 0
        %v648 = vsel %vm343, %v306, 0
        %v651 = vsel %vm343, %v307, 0
        %v654 = vsel %vm440, %v308, 0
        %656 = vmatpush.msra.mxu0 0.0
        %657 = vmatpush.msra.mxu0 0.0
        %658 = vmatpush.msra.mxu0 0.0
        %659 = vmatpush.msra.mxu0 0.0
        %660 = vmatpush.msra.mxu0 0.0
        %661 = vmatpush.msra.mxu0 0.0
        %662 = vmatpush.msra.mxu0 0.0
        %663 = vmatpush.msra.mxu0 0.0
        %664 = vmatpush.msra.mxu0 0.0
        %665 = vmatpush.msra.mxu0 0.0
        %666 = vmatpush.msra.mxu0 0.0
        %667 = vmatpush.msra.mxu0 0.0
        %668 = vmatpush.msra.mxu0 0.0
        %669 = vmatpush.msra.mxu0 0.0
        %670 = vmatpush.msra.mxu0 0.0
        %671 = vmatpush.msra.mxu0 %v654
        %672 = vmatmul.f32.gmra.mxu0 %v558
        %v673 = vpop.f32.mrf.mxu0
        %v674 = vadd.f32 %v462, %v673
        %675 = vmatmul.f32.gmra.mxu0 %v561
        %v676 = vpop.f32.mrf.mxu0
        %v677 = vadd.f32 %v465, %v676
        %678 = vmatmul.f32.gmra.mxu0 %v564
        %v679 = vpop.f32.mrf.mxu0
        %v680 = vadd.f32 %v468, %v679
        %681 = vmatmul.f32.gmra.mxu0 %v567
        %v682 = vpop.f32.mrf.mxu0
        %v683 = vadd.f32 %v471, %v682
        %684 = vmatmul.f32.gmra.mxu0 %v570
        %v685 = vpop.f32.mrf.mxu0
        %v686 = vadd.f32 %v474, %v685
        %687 = vmatmul.f32.gmra.mxu0 %v573
        %v688 = vpop.f32.mrf.mxu0
        %v689 = vadd.f32 %v477, %v688
        %690 = vmatmul.f32.gmra.mxu0 %v576
        %v691 = vpop.f32.mrf.mxu0
        %v692 = vadd.f32 %v480, %v691
        %693 = vmatmul.f32.gmra.mxu0 %v579
        %v694 = vpop.f32.mrf.mxu0
        %v695 = vadd.f32 %v483, %v694
        %696 = vmatmul.f32.gmra.mxu0 %v582
        %v697 = vpop.f32.mrf.mxu0
        %v698 = vadd.f32 %v486, %v697
        %699 = vmatmul.f32.gmra.mxu0 %v585
        %v700 = vpop.f32.mrf.mxu0
        %v701 = vadd.f32 %v489, %v700
        %702 = vmatmul.f32.gmra.mxu0 %v588
        %v703 = vpop.f32.mrf.mxu0
        %v704 = vadd.f32 %v492, %v703
        %705 = vmatmul.f32.gmra.mxu0 %v591
        %v706 = vpop.f32.mrf.mxu0
        %v707 = vadd.f32 %v495, %v706
        %708 = vmatmul.f32.gmra.mxu0 %v594
        %v709 = vpop.f32.mrf.mxu0
        %v710 = vadd.f32 %v498, %v709
        %711 = vmatmul.f32.gmra.mxu0 %v597
        %v712 = vpop.f32.mrf.mxu0
        %v713 = vadd.f32 %v501, %v712
        %714 = vmatmul.f32.gmra.mxu0 %v600
        %v715 = vpop.f32.mrf.mxu0
        %v716 = vadd.f32 %v504, %v715
        %717 = vmatmul.f32.gmra.mxu0 %v603
        %v718 = vpop.f32.mrf.mxu0
        %v719 = vadd.f32 %v507, %v718
        %720 = vmatmul.f32.gmra.mxu0 %v606
        %v721 = vpop.f32.mrf.mxu0
        %v722 = vadd.f32 %v510, %v721
        %723 = vmatmul.f32.gmra.mxu0 %v609
        %v724 = vpop.f32.mrf.mxu0
        %v725 = vadd.f32 %v513, %v724
        %726 = vmatmul.f32.gmra.mxu0 %v612
        %v727 = vpop.f32.mrf.mxu0
        %v728 = vadd.f32 %v516, %v727
        %729 = vmatmul.f32.gmra.mxu0 %v615
        %v730 = vpop.f32.mrf.mxu0
        %v731 = vadd.f32 %v519, %v730
        %732 = vmatmul.f32.gmra.mxu0 %v618
        %v733 = vpop.f32.mrf.mxu0
        %v734 = vadd.f32 %v522, %v733
        %735 = vmatmul.f32.gmra.mxu0 %v621
        %v736 = vpop.f32.mrf.mxu0
        %v737 = vadd.f32 %v525, %v736
        %738 = vmatmul.f32.gmra.mxu0 %v624
        %v739 = vpop.f32.mrf.mxu0
        %v740 = vadd.f32 %v528, %v739
        %741 = vmatmul.f32.gmra.mxu0 %v627
        %v742 = vpop.f32.mrf.mxu0
        %v743 = vadd.f32 %v531, %v742
        %744 = vmatmul.f32.gmra.mxu0 %v630
        %v745 = vpop.f32.mrf.mxu0
        %v746 = vadd.f32 %v534, %v745
        %747 = vmatmul.f32.gmra.mxu0 %v633
        %v748 = vpop.f32.mrf.mxu0
        %v749 = vadd.f32 %v537, %v748
        %750 = vmatmul.f32.gmra.mxu0 %v636
        %v751 = vpop.f32.mrf.mxu0
        %v752 = vadd.f32 %v540, %v751
        %753 = vmatmul.f32.gmra.mxu0 %v639
        %v754 = vpop.f32.mrf.mxu0
        %v755 = vadd.f32 %v543, %v754
        %756 = vmatmul.f32.gmra.mxu0 %v642
        %v757 = vpop.f32.mrf.mxu0
        %v758 = vadd.f32 %v546, %v757
        %759 = vmatmul.f32.gmra.mxu0 %v645
        %v760 = vpop.f32.mrf.mxu0
        %v761 = vadd.f32 %v549, %v760
        %762 = vmatmul.f32.gmra.mxu0 %v648
        %v763 = vpop.f32.mrf.mxu0
        %v764 = vadd.f32 %v552, %v763
        %765 = vmatmul.f32.gmra.mxu0 %v651
        %v766 = vpop.f32.mrf.mxu0
        %v767 = vadd.f32 %v555, %v766
        %768 = vdwg.mxu0
        %v769 = vld [vmem:[%s275 + $0x2] sm:$0xff]
        %v770 = vld [vmem:[%s275 + $0xa] sm:$0xff]
        %v771 = vld [vmem:[%s275 + $0x1a] sm:$0xff]
        %v772 = vld [vmem:[%s275 + $0x22] sm:$0xff]
        %v773 = vld [vmem:[%s275 + $0x32] sm:$0xff]
        %v774 = vld [vmem:[%s275 + $0x3a] sm:$0xff]
        %v775 = vld [vmem:[%s275 + $0x4a] sm:$0xff]
        %v776 = vld [vmem:[%s275 + $0x52] sm:$0xff]
        %v777 = vld [vmem:[%s275 + $0x62] sm:$0xff]
        %v778 = vld [vmem:[%s275 + $0x6a] sm:$0xff]
        %v779 = vld [vmem:[%s275 + $0x7a] sm:$0xff]
        %v780 = vld [vmem:[%s275 + $0x82] sm:$0xff]
        %v781 = vld [vmem:[%s275 + $0x92] sm:$0xff]
        %v782 = vld [vmem:[%s275 + $0x9a] sm:$0xff]
        %v783 = vld [vmem:[%s275 + $0xaa] sm:$0xff]
        %v784 = vld [vmem:[%s275 + $0xb2] sm:$0xff]
        %v785 = vld [vmem:[%s275 + $0xc2] sm:$0xff]
        %v786 = vld [vmem:[%s275 + $0xca] sm:$0xff]
        %v787 = vld [vmem:[%s275 + $0xda] sm:$0xff]
        %v788 = vld [vmem:[%s275 + $0xe2] sm:$0xff]
        %v789 = vld [vmem:[%s275 + $0xf2] sm:$0xff]
        %v790 = vld [vmem:[%s275 + $0xfa] sm:$0xff]
        %v791 = vld [vmem:[%s275 + $0x10a] sm:$0xff]
        %v792 = vld [vmem:[%s275 + $0x112] sm:$0xff]
        %v793 = vld [vmem:[%s275 + $0x122] sm:$0xff]
        %v794 = vld [vmem:[%s275 + $0x12a] sm:$0xff]
        %v795 = vld [vmem:[%s275 + $0x13a] sm:$0xff]
        %v796 = vld [vmem:[%s275 + $0x142] sm:$0xff]
        %v797 = vld [vmem:[%s275 + $0x152] sm:$0xff]
        %v798 = vld [vmem:[%s275 + $0x15a] sm:$0xff]
        %v799 = vld [vmem:[%s275 + $0x16a] sm:$0xff]
        %v800 = vld [vmem:[%s275 + $0x172] sm:$0xff]
        %s801 = scalar_lea.vmem %s1, 8
        %v802 = vld [vmem:[%s801] sm:$0xf]
        %v804 = vsel %vm343, %v769, 0
        %v807 = vsel %vm343, %v770, 0
        %v810 = vsel %vm343, %v771, 0
        %v813 = vsel %vm343, %v772, 0
        %v816 = vsel %vm343, %v773, 0
        %v819 = vsel %vm343, %v774, 0
        %v822 = vsel %vm343, %v775, 0
        %v825 = vsel %vm343, %v776, 0
        %v828 = vsel %vm343, %v777, 0
        %v831 = vsel %vm343, %v778, 0
        %v834 = vsel %vm343, %v779, 0
        %v837 = vsel %vm343, %v780, 0
        %v840 = vsel %vm343, %v781, 0
        %v843 = vsel %vm343, %v782, 0
        %v846 = vsel %vm343, %v783, 0
        %v849 = vsel %vm343, %v784, 0
        %v852 = vsel %vm343, %v785, 0
        %v855 = vsel %vm343, %v786, 0
        %v858 = vsel %vm343, %v787, 0
        %v861 = vsel %vm343, %v788, 0
        %v864 = vsel %vm343, %v789, 0
        %v867 = vsel %vm343, %v790, 0
        %v870 = vsel %vm343, %v791, 0
        %v873 = vsel %vm343, %v792, 0
        %v876 = vsel %vm343, %v793, 0
        %v879 = vsel %vm343, %v794, 0
        %v882 = vsel %vm343, %v795, 0
        %v885 = vsel %vm343, %v796, 0
        %v888 = vsel %vm343, %v797, 0
        %v891 = vsel %vm343, %v798, 0
        %v894 = vsel %vm343, %v799, 0
        %v897 = vsel %vm343, %v800, 0
        %v900 = vsel %vm440, %v802, 0
        %902 = vmatpush.msra.mxu0 0.0
        %903 = vmatpush.msra.mxu0 0.0
        %904 = vmatpush.msra.mxu0 0.0
        %905 = vmatpush.msra.mxu0 0.0
        %906 = vmatpush.msra.mxu0 0.0
        %907 = vmatpush.msra.mxu0 0.0
        %908 = vmatpush.msra.mxu0 0.0
        %909 = vmatpush.msra.mxu0 0.0
        %910 = vmatpush.msra.mxu0 0.0
        %911 = vmatpush.msra.mxu0 0.0
        %912 = vmatpush.msra.mxu0 0.0
        %913 = vmatpush.msra.mxu0 0.0
        %914 = vmatpush.msra.mxu0 0.0
        %915 = vmatpush.msra.mxu0 0.0
        %916 = vmatpush.msra.mxu0 0.0
        %917 = vmatpush.msra.mxu0 %v900
        %918 = vmatmul.f32.gmra.mxu0 %v804
        %v919 = vpop.f32.mrf.mxu0
        %v920 = vadd.f32 0.0, %v919
        %921 = vmatmul.f32.gmra.mxu0 %v807
        %v922 = vpop.f32.mrf.mxu0
        %v923 = vadd.f32 0.0, %v922
        %924 = vmatmul.f32.gmra.mxu0 %v810
        %v925 = vpop.f32.mrf.mxu0
        %v926 = vadd.f32 0.0, %v925
        %927 = vmatmul.f32.gmra.mxu0 %v813
        %v928 = vpop.f32.mrf.mxu0
        %v929 = vadd.f32 0.0, %v928
        %930 = vmatmul.f32.gmra.mxu0 %v816
        %v931 = vpop.f32.mrf.mxu0
        %v932 = vadd.f32 0.0, %v931
        %933 = vmatmul.f32.gmra.mxu0 %v819
        %v934 = vpop.f32.mrf.mxu0
        %v935 = vadd.f32 0.0, %v934
        %936 = vmatmul.f32.gmra.mxu0 %v822
        %v937 = vpop.f32.mrf.mxu0
        %v938 = vadd.f32 0.0, %v937
        %939 = vmatmul.f32.gmra.mxu0 %v825
        %v940 = vpop.f32.mrf.mxu0
        %v941 = vadd.f32 0.0, %v940
        %942 = vmatmul.f32.gmra.mxu0 %v828
        %v943 = vpop.f32.mrf.mxu0
        %v944 = vadd.f32 0.0, %v943
        %945 = vmatmul.f32.gmra.mxu0 %v831
        %v946 = vpop.f32.mrf.mxu0
        %v947 = vadd.f32 0.0, %v946
        %948 = vmatmul.f32.gmra.mxu0 %v834
        %v949 = vpop.f32.mrf.mxu0
        %v950 = vadd.f32 0.0, %v949
        %951 = vmatmul.f32.gmra.mxu0 %v837
        %v952 = vpop.f32.mrf.mxu0
        %v953 = vadd.f32 0.0, %v952
        %954 = vmatmul.f32.gmra.mxu0 %v840
        %v955 = vpop.f32.mrf.mxu0
        %v956 = vadd.f32 0.0, %v955
        %957 = vmatmul.f32.gmra.mxu0 %v843
        %v958 = vpop.f32.mrf.mxu0
        %v959 = vadd.f32 0.0, %v958
        %960 = vmatmul.f32.gmra.mxu0 %v846
        %v961 = vpop.f32.mrf.mxu0
        %v962 = vadd.f32 0.0, %v961
        %963 = vmatmul.f32.gmra.mxu0 %v849
        %v964 = vpop.f32.mrf.mxu0
        %v965 = vadd.f32 0.0, %v964
        %966 = vmatmul.f32.gmra.mxu0 %v852
        %v967 = vpop.f32.mrf.mxu0
        %v968 = vadd.f32 0.0, %v967
        %969 = vmatmul.f32.gmra.mxu0 %v855
        %v970 = vpop.f32.mrf.mxu0
        %v971 = vadd.f32 0.0, %v970
        %972 = vmatmul.f32.gmra.mxu0 %v858
        %v973 = vpop.f32.mrf.mxu0
        %v974 = vadd.f32 0.0, %v973
        %975 = vmatmul.f32.gmra.mxu0 %v861
        %v976 = vpop.f32.mrf.mxu0
        %v977 = vadd.f32 0.0, %v976
        %978 = vmatmul.f32.gmra.mxu0 %v864
        %v979 = vpop.f32.mrf.mxu0
        %v980 = vadd.f32 0.0, %v979
        %981 = vmatmul.f32.gmra.mxu0 %v867
        %v982 = vpop.f32.mrf.mxu0
        %v983 = vadd.f32 0.0, %v982
        %984 = vmatmul.f32.gmra.mxu0 %v870
        %v985 = vpop.f32.mrf.mxu0
        %v986 = vadd.f32 0.0, %v985
        %987 = vmatmul.f32.gmra.mxu0 %v873
        %v988 = vpop.f32.mrf.mxu0
        %v989 = vadd.f32 0.0, %v988
        %990 = vmatmul.f32.gmra.mxu0 %v876
        %v991 = vpop.f32.mrf.mxu0
        %v992 = vadd.f32 0.0, %v991
        %993 = vmatmul.f32.gmra.mxu0 %v879
        %v994 = vpop.f32.mrf.mxu0
        %v995 = vadd.f32 0.0, %v994
        %996 = vmatmul.f32.gmra.mxu0 %v882
        %v997 = vpop.f32.mrf.mxu0
        %v998 = vadd.f32 0.0, %v997
        %999 = vmatmul.f32.gmra.mxu0 %v885
        %v1000 = vpop.f32.mrf.mxu0
        %v1001 = vadd.f32 0.0, %v1000
        %1002 = vmatmul.f32.gmra.mxu0 %v888
        %v1003 = vpop.f32.mrf.mxu0
        %v1004 = vadd.f32 0.0, %v1003
        %1005 = vmatmul.f32.gmra.mxu0 %v891
        %v1006 = vpop.f32.mrf.mxu0
        %v1007 = vadd.f32 0.0, %v1006
        %1008 = vmatmul.f32.gmra.mxu0 %v894
        %v1009 = vpop.f32.mrf.mxu0
        %v1010 = vadd.f32 0.0, %v1009
        %1011 = vmatmul.f32.gmra.mxu0 %v897
        %v1012 = vpop.f32.mrf.mxu0
        %v1013 = vadd.f32 0.0, %v1012
        %1014 = vdwg.mxu0
        %v1015 = vadd.f32 %v674, %v920
        %v1016 = vadd.f32 %v677, %v923
        %v1017 = vadd.f32 %v680, %v926
        %v1018 = vadd.f32 %v683, %v929
        %v1019 = vadd.f32 %v686, %v932
        %v1020 = vadd.f32 %v689, %v935
        %v1021 = vadd.f32 %v692, %v938
        %v1022 = vadd.f32 %v695, %v941
        %v1023 = vadd.f32 %v698, %v944
        %v1024 = vadd.f32 %v701, %v947
        %v1025 = vadd.f32 %v704, %v950
        %v1026 = vadd.f32 %v707, %v953
        %v1027 = vadd.f32 %v710, %v956
        %v1028 = vadd.f32 %v713, %v959
        %v1029 = vadd.f32 %v716, %v962
        %v1030 = vadd.f32 %v719, %v965
        %v1031 = vadd.f32 %v722, %v968
        %v1032 = vadd.f32 %v725, %v971
        %v1033 = vadd.f32 %v728, %v974
        %v1034 = vadd.f32 %v731, %v977
        %v1035 = vadd.f32 %v734, %v980
        %v1036 = vadd.f32 %v737, %v983
        %v1037 = vadd.f32 %v740, %v986
        %v1038 = vadd.f32 %v743, %v989
        %v1039 = vadd.f32 %v746, %v992
        %v1040 = vadd.f32 %v749, %v995
        %v1041 = vadd.f32 %v752, %v998
        %v1042 = vadd.f32 %v755, %v1001
        %v1043 = vadd.f32 %v758, %v1004
        %v1044 = vadd.f32 %v761, %v1007
        %v1045 = vadd.f32 %v764, %v1010
        %v1046 = vadd.f32 %v767, %v1013
        %s1047 = scalar_lea.vmem %s275, 24
        %v1048 = vld [vmem:[%s1047] sm:$0xff]
        %v1049 = vld [vmem:[%s1047 + $0x8] sm:$0xff]
        %v1050 = vld [vmem:[%s1047 + $0x18] sm:$0xff]
        %v1051 = vld [vmem:[%s1047 + $0x20] sm:$0xff]
        %v1052 = vld [vmem:[%s1047 + $0x30] sm:$0xff]
        %v1053 = vld [vmem:[%s1047 + $0x38] sm:$0xff]
        %v1054 = vld [vmem:[%s1047 + $0x48] sm:$0xff]
        %v1055 = vld [vmem:[%s1047 + $0x50] sm:$0xff]
        %v1056 = vld [vmem:[%s1047 + $0x60] sm:$0xff]
        %v1057 = vld [vmem:[%s1047 + $0x68] sm:$0xff]
        %v1058 = vld [vmem:[%s1047 + $0x78] sm:$0xff]
        %v1059 = vld [vmem:[%s1047 + $0x80] sm:$0xff]
        %v1060 = vld [vmem:[%s1047 + $0x90] sm:$0xff]
        %v1061 = vld [vmem:[%s1047 + $0x98] sm:$0xff]
        %v1062 = vld [vmem:[%s1047 + $0xa8] sm:$0xff]
        %v1063 = vld [vmem:[%s1047 + $0xb0] sm:$0xff]
        %v1064 = vld [vmem:[%s1047 + $0xc0] sm:$0xff]
        %v1065 = vld [vmem:[%s1047 + $0xc8] sm:$0xff]
        %v1066 = vld [vmem:[%s1047 + $0xd8] sm:$0xff]
        %v1067 = vld [vmem:[%s1047 + $0xe0] sm:$0xff]
        %v1068 = vld [vmem:[%s1047 + $0xf0] sm:$0xff]
        %v1069 = vld [vmem:[%s1047 + $0xf8] sm:$0xff]
        %v1070 = vld [vmem:[%s1047 + $0x108] sm:$0xff]
        %v1071 = vld [vmem:[%s1047 + $0x110] sm:$0xff]
        %v1072 = vld [vmem:[%s1047 + $0x120] sm:$0xff]
        %v1073 = vld [vmem:[%s1047 + $0x128] sm:$0xff]
        %v1074 = vld [vmem:[%s1047 + $0x138] sm:$0xff]
        %v1075 = vld [vmem:[%s1047 + $0x140] sm:$0xff]
        %v1076 = vld [vmem:[%s1047 + $0x150] sm:$0xff]
        %v1077 = vld [vmem:[%s1047 + $0x158] sm:$0xff]
        %v1078 = vld [vmem:[%s1047 + $0x168] sm:$0xff]
        %v1079 = vld [vmem:[%s1047 + $0x170] sm:$0xff]
        %s1080 = scalar_lea.vmem %s1, 12
        %v1081 = vld [vmem:[%s1080] sm:$0xf]
        %v1083 = vsel %vm343, %v1048, 0
        %v1086 = vsel %vm343, %v1049, 0
        %v1089 = vsel %vm343, %v1050, 0
        %v1092 = vsel %vm343, %v1051, 0
        %v1095 = vsel %vm343, %v1052, 0
        %v1098 = vsel %vm343, %v1053, 0
        %v1101 = vsel %vm343, %v1054, 0
        %v1104 = vsel %vm343, %v1055, 0
        %v1107 = vsel %vm343, %v1056, 0
        %v1110 = vsel %vm343, %v1057, 0
        %v1113 = vsel %vm343, %v1058, 0
        %v1116 = vsel %vm343, %v1059, 0
        %v1119 = vsel %vm343, %v1060, 0
        %v1122 = vsel %vm343, %v1061, 0
        %v1125 = vsel %vm343, %v1062, 0
        %v1128 = vsel %vm343, %v1063, 0
        %v1131 = vsel %vm343, %v1064, 0
        %v1134 = vsel %vm343, %v1065, 0
        %v1137 = vsel %vm343, %v1066, 0
        %v1140 = vsel %vm343, %v1067, 0
        %v1143 = vsel %vm343, %v1068, 0
        %v1146 = vsel %vm343, %v1069, 0
        %v1149 = vsel %vm343, %v1070, 0
        %v1152 = vsel %vm343, %v1071, 0
        %v1155 = vsel %vm343, %v1072, 0
        %v1158 = vsel %vm343, %v1073, 0
        %v1161 = vsel %vm343, %v1074, 0
        %v1164 = vsel %vm343, %v1075, 0
        %v1167 = vsel %vm343, %v1076, 0
        %v1170 = vsel %vm343, %v1077, 0
        %v1173 = vsel %vm343, %v1078, 0
        %v1176 = vsel %vm343, %v1079, 0
        %v1179 = vsel %vm440, %v1081, 0
        %1181 = vmatpush.msra.mxu0 0.0
        %1182 = vmatpush.msra.mxu0 0.0
        %1183 = vmatpush.msra.mxu0 0.0
        %1184 = vmatpush.msra.mxu0 0.0
        %1185 = vmatpush.msra.mxu0 0.0
        %1186 = vmatpush.msra.mxu0 0.0
        %1187 = vmatpush.msra.mxu0 0.0
        %1188 = vmatpush.msra.mxu0 0.0
        %1189 = vmatpush.msra.mxu0 0.0
        %1190 = vmatpush.msra.mxu0 0.0
        %1191 = vmatpush.msra.mxu0 0.0
        %1192 = vmatpush.msra.mxu0 0.0
        %1193 = vmatpush.msra.mxu0 0.0
        %1194 = vmatpush.msra.mxu0 0.0
        %1195 = vmatpush.msra.mxu0 0.0
        %1196 = vmatpush.msra.mxu0 %v1179
        %1197 = vmatmul.f32.gmra.mxu0 %v1083
        %v1198 = vpop.f32.mrf.mxu0
        %v1199 = vadd.f32 0.0, %v1198
        %1200 = vmatmul.f32.gmra.mxu0 %v1086
        %v1201 = vpop.f32.mrf.mxu0
        %v1202 = vadd.f32 0.0, %v1201
        %1203 = vmatmul.f32.gmra.mxu0 %v1089
        %v1204 = vpop.f32.mrf.mxu0
        %v1205 = vadd.f32 0.0, %v1204
        %1206 = vmatmul.f32.gmra.mxu0 %v1092
        %v1207 = vpop.f32.mrf.mxu0
        %v1208 = vadd.f32 0.0, %v1207
        %1209 = vmatmul.f32.gmra.mxu0 %v1095
        %v1210 = vpop.f32.mrf.mxu0
        %v1211 = vadd.f32 0.0, %v1210
        %1212 = vmatmul.f32.gmra.mxu0 %v1098
        %v1213 = vpop.f32.mrf.mxu0
        %v1214 = vadd.f32 0.0, %v1213
        %1215 = vmatmul.f32.gmra.mxu0 %v1101
        %v1216 = vpop.f32.mrf.mxu0
        %v1217 = vadd.f32 0.0, %v1216
        %1218 = vmatmul.f32.gmra.mxu0 %v1104
        %v1219 = vpop.f32.mrf.mxu0
        %v1220 = vadd.f32 0.0, %v1219
        %1221 = vmatmul.f32.gmra.mxu0 %v1107
        %v1222 = vpop.f32.mrf.mxu0
        %v1223 = vadd.f32 0.0, %v1222
        %1224 = vmatmul.f32.gmra.mxu0 %v1110
        %v1225 = vpop.f32.mrf.mxu0
        %v1226 = vadd.f32 0.0, %v1225
        %1227 = vmatmul.f32.gmra.mxu0 %v1113
        %v1228 = vpop.f32.mrf.mxu0
        %v1229 = vadd.f32 0.0, %v1228
        %1230 = vmatmul.f32.gmra.mxu0 %v1116
        %v1231 = vpop.f32.mrf.mxu0
        %v1232 = vadd.f32 0.0, %v1231
        %1233 = vmatmul.f32.gmra.mxu0 %v1119
        %v1234 = vpop.f32.mrf.mxu0
        %v1235 = vadd.f32 0.0, %v1234
        %1236 = vmatmul.f32.gmra.mxu0 %v1122
        %v1237 = vpop.f32.mrf.mxu0
        %v1238 = vadd.f32 0.0, %v1237
        %1239 = vmatmul.f32.gmra.mxu0 %v1125
        %v1240 = vpop.f32.mrf.mxu0
        %v1241 = vadd.f32 0.0, %v1240
        %1242 = vmatmul.f32.gmra.mxu0 %v1128
        %v1243 = vpop.f32.mrf.mxu0
        %v1244 = vadd.f32 0.0, %v1243
        %1245 = vmatmul.f32.gmra.mxu0 %v1131
        %v1246 = vpop.f32.mrf.mxu0
        %v1247 = vadd.f32 0.0, %v1246
        %1248 = vmatmul.f32.gmra.mxu0 %v1134
        %v1249 = vpop.f32.mrf.mxu0
        %v1250 = vadd.f32 0.0, %v1249
        %1251 = vmatmul.f32.gmra.mxu0 %v1137
        %v1252 = vpop.f32.mrf.mxu0
        %v1253 = vadd.f32 0.0, %v1252
        %1254 = vmatmul.f32.gmra.mxu0 %v1140
        %v1255 = vpop.f32.mrf.mxu0
        %v1256 = vadd.f32 0.0, %v1255
        %1257 = vmatmul.f32.gmra.mxu0 %v1143
        %v1258 = vpop.f32.mrf.mxu0
        %v1259 = vadd.f32 0.0, %v1258
        %1260 = vmatmul.f32.gmra.mxu0 %v1146
        %v1261 = vpop.f32.mrf.mxu0
        %v1262 = vadd.f32 0.0, %v1261
        %1263 = vmatmul.f32.gmra.mxu0 %v1149
        %v1264 = vpop.f32.mrf.mxu0
        %v1265 = vadd.f32 0.0, %v1264
        %1266 = vmatmul.f32.gmra.mxu0 %v1152
        %v1267 = vpop.f32.mrf.mxu0
        %v1268 = vadd.f32 0.0, %v1267
        %1269 = vmatmul.f32.gmra.mxu0 %v1155
        %v1270 = vpop.f32.mrf.mxu0
        %v1271 = vadd.f32 0.0, %v1270
        %1272 = vmatmul.f32.gmra.mxu0 %v1158
        %v1273 = vpop.f32.mrf.mxu0
        %v1274 = vadd.f32 0.0, %v1273
        %1275 = vmatmul.f32.gmra.mxu0 %v1161
        %v1276 = vpop.f32.mrf.mxu0
        %v1277 = vadd.f32 0.0, %v1276
        %1278 = vmatmul.f32.gmra.mxu0 %v1164
        %v1279 = vpop.f32.mrf.mxu0
        %v1280 = vadd.f32 0.0, %v1279
        %1281 = vmatmul.f32.gmra.mxu0 %v1167
        %v1282 = vpop.f32.mrf.mxu0
        %v1283 = vadd.f32 0.0, %v1282
        %1284 = vmatmul.f32.gmra.mxu0 %v1170
        %v1285 = vpop.f32.mrf.mxu0
        %v1286 = vadd.f32 0.0, %v1285
        %1287 = vmatmul.f32.gmra.mxu0 %v1173
        %v1288 = vpop.f32.mrf.mxu0
        %v1289 = vadd.f32 0.0, %v1288
        %1290 = vmatmul.f32.gmra.mxu0 %v1176
        %v1291 = vpop.f32.mrf.mxu0
        %v1292 = vadd.f32 0.0, %v1291
        %1293 = vdwg.mxu0
        %v1294 = vadd.f32 %v1015, %v1199
        %v1295 = vadd.f32 %v1016, %v1202
        %v1296 = vadd.f32 %v1017, %v1205
        %v1297 = vadd.f32 %v1018, %v1208
        %v1298 = vadd.f32 %v1019, %v1211
        %v1299 = vadd.f32 %v1020, %v1214
        %v1300 = vadd.f32 %v1021, %v1217
        %v1301 = vadd.f32 %v1022, %v1220
        %v1302 = vadd.f32 %v1023, %v1223
        %v1303 = vadd.f32 %v1024, %v1226
        %v1304 = vadd.f32 %v1025, %v1229
        %v1305 = vadd.f32 %v1026, %v1232
        %v1306 = vadd.f32 %v1027, %v1235
        %v1307 = vadd.f32 %v1028, %v1238
        %v1308 = vadd.f32 %v1029, %v1241
        %v1309 = vadd.f32 %v1030, %v1244
        %v1310 = vadd.f32 %v1031, %v1247
        %v1311 = vadd.f32 %v1032, %v1250
        %v1312 = vadd.f32 %v1033, %v1253
        %v1313 = vadd.f32 %v1034, %v1256
        %v1314 = vadd.f32 %v1035, %v1259
        %v1315 = vadd.f32 %v1036, %v1262
        %v1316 = vadd.f32 %v1037, %v1265
        %v1317 = vadd.f32 %v1038, %v1268
        %v1318 = vadd.f32 %v1039, %v1271
        %v1319 = vadd.f32 %v1040, %v1274
        %v1320 = vadd.f32 %v1041, %v1277
        %v1321 = vadd.f32 %v1042, %v1280
        %v1322 = vadd.f32 %v1043, %v1283
        %v1323 = vadd.f32 %v1044, %v1286
        %v1324 = vadd.f32 %v1045, %v1289
        %v1325 = vadd.f32 %v1046, %v1292
        %v1326 = vld [vmem:[%s1047 + $0x1] sm:$0xff]
        %v1327 = vld [vmem:[%s1047 + $0x9] sm:$0xff]
        %v1328 = vld [vmem:[%s1047 + $0x19] sm:$0xff]
        %v1329 = vld [vmem:[%s1047 + $0x21] sm:$0xff]
        %v1330 = vld [vmem:[%s1047 + $0x31] sm:$0xff]
        %v1331 = vld [vmem:[%s1047 + $0x39] sm:$0xff]
        %v1332 = vld [vmem:[%s1047 + $0x49] sm:$0xff]
        %v1333 = vld [vmem:[%s1047 + $0x51] sm:$0xff]
        %v1334 = vld [vmem:[%s1047 + $0x61] sm:$0xff]
        %v1335 = vld [vmem:[%s1047 + $0x69] sm:$0xff]
        %v1336 = vld [vmem:[%s1047 + $0x79] sm:$0xff]
        %v1337 = vld [vmem:[%s1047 + $0x81] sm:$0xff]
        %v1338 = vld [vmem:[%s1047 + $0x91] sm:$0xff]
        %v1339 = vld [vmem:[%s1047 + $0x99] sm:$0xff]
        %v1340 = vld [vmem:[%s1047 + $0xa9] sm:$0xff]
        %v1341 = vld [vmem:[%s1047 + $0xb1] sm:$0xff]
        %v1342 = vld [vmem:[%s1047 + $0xc1] sm:$0xff]
        %v1343 = vld [vmem:[%s1047 + $0xc9] sm:$0xff]
        %v1344 = vld [vmem:[%s1047 + $0xd9] sm:$0xff]
        %v1345 = vld [vmem:[%s1047 + $0xe1] sm:$0xff]
        %v1346 = vld [vmem:[%s1047 + $0xf1] sm:$0xff]
        %v1347 = vld [vmem:[%s1047 + $0xf9] sm:$0xff]
        %v1348 = vld [vmem:[%s1047 + $0x109] sm:$0xff]
        %v1349 = vld [vmem:[%s1047 + $0x111] sm:$0xff]
        %v1350 = vld [vmem:[%s1047 + $0x121] sm:$0xff]
        %v1351 = vld [vmem:[%s1047 + $0x129] sm:$0xff]
        %v1352 = vld [vmem:[%s1047 + $0x139] sm:$0xff]
        %v1353 = vld [vmem:[%s1047 + $0x141] sm:$0xff]
        %v1354 = vld [vmem:[%s1047 + $0x151] sm:$0xff]
        %v1355 = vld [vmem:[%s1047 + $0x159] sm:$0xff]
        %v1356 = vld [vmem:[%s1047 + $0x169] sm:$0xff]
        %v1357 = vld [vmem:[%s1047 + $0x171] sm:$0xff]
        %s1358 = scalar_lea.vmem %s1, 16
        %v1359 = vld [vmem:[%s1358] sm:$0xf]
        %v1361 = vsel %vm343, %v1326, 0
        %v1364 = vsel %vm343, %v1327, 0
        %v1367 = vsel %vm343, %v1328, 0
        %v1370 = vsel %vm343, %v1329, 0
        %v1373 = vsel %vm343, %v1330, 0
        %v1376 = vsel %vm343, %v1331, 0
        %v1379 = vsel %vm343, %v1332, 0
        %v1382 = vsel %vm343, %v1333, 0
        %v1385 = vsel %vm343, %v1334, 0
        %v1388 = vsel %vm343, %v1335, 0
        %v1391 = vsel %vm343, %v1336, 0
        %v1394 = vsel %vm343, %v1337, 0
        %v1397 = vsel %vm343, %v1338, 0
        %v1400 = vsel %vm343, %v1339, 0
        %v1403 = vsel %vm343, %v1340, 0
        %v1406 = vsel %vm343, %v1341, 0
        %v1409 = vsel %vm343, %v1342, 0
        %v1412 = vsel %vm343, %v1343, 0
        %v1415 = vsel %vm343, %v1344, 0
        %v1418 = vsel %vm343, %v1345, 0
        %v1421 = vsel %vm343, %v1346, 0
        %v1424 = vsel %vm343, %v1347, 0
        %v1427 = vsel %vm343, %v1348, 0
        %v1430 = vsel %vm343, %v1349, 0
        %v1433 = vsel %vm343, %v1350, 0
        %v1436 = vsel %vm343, %v1351, 0
        %v1439 = vsel %vm343, %v1352, 0
        %v1442 = vsel %vm343, %v1353, 0
        %v1445 = vsel %vm343, %v1354, 0
        %v1448 = vsel %vm343, %v1355, 0
        %v1451 = vsel %vm343, %v1356, 0
        %v1454 = vsel %vm343, %v1357, 0
        %v1457 = vsel %vm440, %v1359, 0
        %1459 = vmatpush.msra.mxu0 0.0
        %1460 = vmatpush.msra.mxu0 0.0
        %1461 = vmatpush.msra.mxu0 0.0
        %1462 = vmatpush.msra.mxu0 0.0
        %1463 = vmatpush.msra.mxu0 0.0
        %1464 = vmatpush.msra.mxu0 0.0
        %1465 = vmatpush.msra.mxu0 0.0
        %1466 = vmatpush.msra.mxu0 0.0
        %1467 = vmatpush.msra.mxu0 0.0
        %1468 = vmatpush.msra.mxu0 0.0
        %1469 = vmatpush.msra.mxu0 0.0
        %1470 = vmatpush.msra.mxu0 0.0
        %1471 = vmatpush.msra.mxu0 0.0
        %1472 = vmatpush.msra.mxu0 0.0
        %1473 = vmatpush.msra.mxu0 0.0
        %1474 = vmatpush.msra.mxu0 %v1457
        %1475 = vmatmul.f32.gmra.mxu0 %v1361
        %v1476 = vpop.f32.mrf.mxu0
        %v1477 = vadd.f32 0.0, %v1476
        %1478 = vmatmul.f32.gmra.mxu0 %v1364
        %v1479 = vpop.f32.mrf.mxu0
        %v1480 = vadd.f32 0.0, %v1479
        %1481 = vmatmul.f32.gmra.mxu0 %v1367
        %v1482 = vpop.f32.mrf.mxu0
        %v1483 = vadd.f32 0.0, %v1482
        %1484 = vmatmul.f32.gmra.mxu0 %v1370
        %v1485 = vpop.f32.mrf.mxu0
        %v1486 = vadd.f32 0.0, %v1485
        %1487 = vmatmul.f32.gmra.mxu0 %v1373
        %v1488 = vpop.f32.mrf.mxu0
        %v1489 = vadd.f32 0.0, %v1488
        %1490 = vmatmul.f32.gmra.mxu0 %v1376
        %v1491 = vpop.f32.mrf.mxu0
        %v1492 = vadd.f32 0.0, %v1491
        %1493 = vmatmul.f32.gmra.mxu0 %v1379
        %v1494 = vpop.f32.mrf.mxu0
        %v1495 = vadd.f32 0.0, %v1494
        %1496 = vmatmul.f32.gmra.mxu0 %v1382
        %v1497 = vpop.f32.mrf.mxu0
        %v1498 = vadd.f32 0.0, %v1497
        %1499 = vmatmul.f32.gmra.mxu0 %v1385
        %v1500 = vpop.f32.mrf.mxu0
        %v1501 = vadd.f32 0.0, %v1500
        %1502 = vmatmul.f32.gmra.mxu0 %v1388
        %v1503 = vpop.f32.mrf.mxu0
        %v1504 = vadd.f32 0.0, %v1503
        %1505 = vmatmul.f32.gmra.mxu0 %v1391
        %v1506 = vpop.f32.mrf.mxu0
        %v1507 = vadd.f32 0.0, %v1506
        %1508 = vmatmul.f32.gmra.mxu0 %v1394
        %v1509 = vpop.f32.mrf.mxu0
        %v1510 = vadd.f32 0.0, %v1509
        %1511 = vmatmul.f32.gmra.mxu0 %v1397
        %v1512 = vpop.f32.mrf.mxu0
        %v1513 = vadd.f32 0.0, %v1512
        %1514 = vmatmul.f32.gmra.mxu0 %v1400
        %v1515 = vpop.f32.mrf.mxu0
        %v1516 = vadd.f32 0.0, %v1515
        %1517 = vmatmul.f32.gmra.mxu0 %v1403
        %v1518 = vpop.f32.mrf.mxu0
        %v1519 = vadd.f32 0.0, %v1518
        %1520 = vmatmul.f32.gmra.mxu0 %v1406
        %v1521 = vpop.f32.mrf.mxu0
        %v1522 = vadd.f32 0.0, %v1521
        %1523 = vmatmul.f32.gmra.mxu0 %v1409
        %v1524 = vpop.f32.mrf.mxu0
        %v1525 = vadd.f32 0.0, %v1524
        %1526 = vmatmul.f32.gmra.mxu0 %v1412
        %v1527 = vpop.f32.mrf.mxu0
        %v1528 = vadd.f32 0.0, %v1527
        %1529 = vmatmul.f32.gmra.mxu0 %v1415
        %v1530 = vpop.f32.mrf.mxu0
        %v1531 = vadd.f32 0.0, %v1530
        %1532 = vmatmul.f32.gmra.mxu0 %v1418
        %v1533 = vpop.f32.mrf.mxu0
        %v1534 = vadd.f32 0.0, %v1533
        %1535 = vmatmul.f32.gmra.mxu0 %v1421
        %v1536 = vpop.f32.mrf.mxu0
        %v1537 = vadd.f32 0.0, %v1536
        %1538 = vmatmul.f32.gmra.mxu0 %v1424
        %v1539 = vpop.f32.mrf.mxu0
        %v1540 = vadd.f32 0.0, %v1539
        %1541 = vmatmul.f32.gmra.mxu0 %v1427
        %v1542 = vpop.f32.mrf.mxu0
        %v1543 = vadd.f32 0.0, %v1542
        %1544 = vmatmul.f32.gmra.mxu0 %v1430
        %v1545 = vpop.f32.mrf.mxu0
        %v1546 = vadd.f32 0.0, %v1545
        %1547 = vmatmul.f32.gmra.mxu0 %v1433
        %v1548 = vpop.f32.mrf.mxu0
        %v1549 = vadd.f32 0.0, %v1548
        %1550 = vmatmul.f32.gmra.mxu0 %v1436
        %v1551 = vpop.f32.mrf.mxu0
        %v1552 = vadd.f32 0.0, %v1551
        %1553 = vmatmul.f32.gmra.mxu0 %v1439
        %v1554 = vpop.f32.mrf.mxu0
        %v1555 = vadd.f32 0.0, %v1554
        %1556 = vmatmul.f32.gmra.mxu0 %v1442
        %v1557 = vpop.f32.mrf.mxu0
        %v1558 = vadd.f32 0.0, %v1557
        %1559 = vmatmul.f32.gmra.mxu0 %v1445
        %v1560 = vpop.f32.mrf.mxu0
        %v1561 = vadd.f32 0.0, %v1560
        %1562 = vmatmul.f32.gmra.mxu0 %v1448
        %v1563 = vpop.f32.mrf.mxu0
        %v1564 = vadd.f32 0.0, %v1563
        %1565 = vmatmul.f32.gmra.mxu0 %v1451
        %v1566 = vpop.f32.mrf.mxu0
        %v1567 = vadd.f32 0.0, %v1566
        %1568 = vmatmul.f32.gmra.mxu0 %v1454
        %v1569 = vpop.f32.mrf.mxu0
        %v1570 = vadd.f32 0.0, %v1569
        %1571 = vdwg.mxu0
        %v1572 = vadd.f32 %v1294, %v1477
        %v1573 = vadd.f32 %v1295, %v1480
        %v1574 = vadd.f32 %v1296, %v1483
        %v1575 = vadd.f32 %v1297, %v1486
        %v1576 = vadd.f32 %v1298, %v1489
        %v1577 = vadd.f32 %v1299, %v1492
        %v1578 = vadd.f32 %v1300, %v1495
        %v1579 = vadd.f32 %v1301, %v1498
        %v1580 = vadd.f32 %v1302, %v1501
        %v1581 = vadd.f32 %v1303, %v1504
        %v1582 = vadd.f32 %v1304, %v1507
        %v1583 = vadd.f32 %v1305, %v1510
        %v1584 = vadd.f32 %v1306, %v1513
        %v1585 = vadd.f32 %v1307, %v1516
        %v1586 = vadd.f32 %v1308, %v1519
        %v1587 = vadd.f32 %v1309, %v1522
        %v1588 = vadd.f32 %v1310, %v1525
        %v1589 = vadd.f32 %v1311, %v1528
        %v1590 = vadd.f32 %v1312, %v1531
        %v1591 = vadd.f32 %v1313, %v1534
        %v1592 = vadd.f32 %v1314, %v1537
        %v1593 = vadd.f32 %v1315, %v1540
        %v1594 = vadd.f32 %v1316, %v1543
        %v1595 = vadd.f32 %v1317, %v1546
        %v1596 = vadd.f32 %v1318, %v1549
        %v1597 = vadd.f32 %v1319, %v1552
        %v1598 = vadd.f32 %v1320, %v1555
        %v1599 = vadd.f32 %v1321, %v1558
        %v1600 = vadd.f32 %v1322, %v1561
        %v1601 = vadd.f32 %v1323, %v1564
        %v1602 = vadd.f32 %v1324, %v1567
        %v1603 = vadd.f32 %v1325, %v1570
        %v1604 = vld [vmem:[%s1047 + $0x2] sm:$0xff]
        %v1605 = vld [vmem:[%s1047 + $0xa] sm:$0xff]
        %v1606 = vld [vmem:[%s1047 + $0x1a] sm:$0xff]
        %v1607 = vld [vmem:[%s1047 + $0x22] sm:$0xff]
        %v1608 = vld [vmem:[%s1047 + $0x32] sm:$0xff]
        %v1609 = vld [vmem:[%s1047 + $0x3a] sm:$0xff]
        %v1610 = vld [vmem:[%s1047 + $0x4a] sm:$0xff]
        %v1611 = vld [vmem:[%s1047 + $0x52] sm:$0xff]
        %v1612 = vld [vmem:[%s1047 + $0x62] sm:$0xff]
        %v1613 = vld [vmem:[%s1047 + $0x6a] sm:$0xff]
        %v1614 = vld [vmem:[%s1047 + $0x7a] sm:$0xff]
        %v1615 = vld [vmem:[%s1047 + $0x82] sm:$0xff]
        %v1616 = vld [vmem:[%s1047 + $0x92] sm:$0xff]
        %v1617 = vld [vmem:[%s1047 + $0x9a] sm:$0xff]
        %v1618 = vld [vmem:[%s1047 + $0xaa] sm:$0xff]
        %v1619 = vld [vmem:[%s1047 + $0xb2] sm:$0xff]
        %v1620 = vld [vmem:[%s1047 + $0xc2] sm:$0xff]
        %v1621 = vld [vmem:[%s1047 + $0xca] sm:$0xff]
        %v1622 = vld [vmem:[%s1047 + $0xda] sm:$0xff]
        %v1623 = vld [vmem:[%s1047 + $0xe2] sm:$0xff]
        %v1624 = vld [vmem:[%s1047 + $0xf2] sm:$0xff]
        %v1625 = vld [vmem:[%s1047 + $0xfa] sm:$0xff]
        %v1626 = vld [vmem:[%s1047 + $0x10a] sm:$0xff]
        %v1627 = vld [vmem:[%s1047 + $0x112] sm:$0xff]
        %v1628 = vld [vmem:[%s1047 + $0x122] sm:$0xff]
        %v1629 = vld [vmem:[%s1047 + $0x12a] sm:$0xff]
        %v1630 = vld [vmem:[%s1047 + $0x13a] sm:$0xff]
        %v1631 = vld [vmem:[%s1047 + $0x142] sm:$0xff]
        %v1632 = vld [vmem:[%s1047 + $0x152] sm:$0xff]
        %v1633 = vld [vmem:[%s1047 + $0x15a] sm:$0xff]
        %v1634 = vld [vmem:[%s1047 + $0x16a] sm:$0xff]
        %v1635 = vld [vmem:[%s1047 + $0x172] sm:$0xff]
        %s1636 = scalar_lea.vmem %s1, 20
        %v1637 = vld [vmem:[%s1636] sm:$0xf]
        %v1639 = vsel %vm343, %v1604, 0
        %v1642 = vsel %vm343, %v1605, 0
        %v1645 = vsel %vm343, %v1606, 0
        %v1648 = vsel %vm343, %v1607, 0
        %v1651 = vsel %vm343, %v1608, 0
        %v1654 = vsel %vm343, %v1609, 0
        %v1657 = vsel %vm343, %v1610, 0
        %v1660 = vsel %vm343, %v1611, 0
        %v1663 = vsel %vm343, %v1612, 0
        %v1666 = vsel %vm343, %v1613, 0
        %v1669 = vsel %vm343, %v1614, 0
        %v1672 = vsel %vm343, %v1615, 0
        %v1675 = vsel %vm343, %v1616, 0
        %v1678 = vsel %vm343, %v1617, 0
        %v1681 = vsel %vm343, %v1618, 0
        %v1684 = vsel %vm343, %v1619, 0
        %v1687 = vsel %vm343, %v1620, 0
        %v1690 = vsel %vm343, %v1621, 0
        %v1693 = vsel %vm343, %v1622, 0
        %v1696 = vsel %vm343, %v1623, 0
        %v1699 = vsel %vm343, %v1624, 0
        %v1702 = vsel %vm343, %v1625, 0
        %v1705 = vsel %vm343, %v1626, 0
        %v1708 = vsel %vm343, %v1627, 0
        %v1711 = vsel %vm343, %v1628, 0
        %v1714 = vsel %vm343, %v1629, 0
        %v1717 = vsel %vm343, %v1630, 0
        %v1720 = vsel %vm343, %v1631, 0
        %v1723 = vsel %vm343, %v1632, 0
        %v1726 = vsel %vm343, %v1633, 0
        %v1729 = vsel %vm343, %v1634, 0
        %v1732 = vsel %vm343, %v1635, 0
        %v1735 = vsel %vm440, %v1637, 0
        %1737 = vmatpush.msra.mxu0 0.0
        %1738 = vmatpush.msra.mxu0 0.0
        %1739 = vmatpush.msra.mxu0 0.0
        %1740 = vmatpush.msra.mxu0 0.0
        %1741 = vmatpush.msra.mxu0 0.0
        %1742 = vmatpush.msra.mxu0 0.0
        %1743 = vmatpush.msra.mxu0 0.0
        %1744 = vmatpush.msra.mxu0 0.0
        %1745 = vmatpush.msra.mxu0 0.0
        %1746 = vmatpush.msra.mxu0 0.0
        %1747 = vmatpush.msra.mxu0 0.0
        %1748 = vmatpush.msra.mxu0 0.0
        %1749 = vmatpush.msra.mxu0 0.0
        %1750 = vmatpush.msra.mxu0 0.0
        %1751 = vmatpush.msra.mxu0 0.0
        %1752 = vmatpush.msra.mxu0 %v1735
        %1753 = vmatmul.f32.gmra.mxu0 %v1639
        %v1754 = vpop.f32.mrf.mxu0
        %v1755 = vadd.f32 0.0, %v1754
        %1756 = vmatmul.f32.gmra.mxu0 %v1642
        %v1757 = vpop.f32.mrf.mxu0
        %v1758 = vadd.f32 0.0, %v1757
        %1759 = vmatmul.f32.gmra.mxu0 %v1645
        %v1760 = vpop.f32.mrf.mxu0
        %v1761 = vadd.f32 0.0, %v1760
        %1762 = vmatmul.f32.gmra.mxu0 %v1648
        %v1763 = vpop.f32.mrf.mxu0
        %v1764 = vadd.f32 0.0, %v1763
        %1765 = vmatmul.f32.gmra.mxu0 %v1651
        %v1766 = vpop.f32.mrf.mxu0
        %v1767 = vadd.f32 0.0, %v1766
        %1768 = vmatmul.f32.gmra.mxu0 %v1654
        %v1769 = vpop.f32.mrf.mxu0
        %v1770 = vadd.f32 0.0, %v1769
        %1771 = vmatmul.f32.gmra.mxu0 %v1657
        %v1772 = vpop.f32.mrf.mxu0
        %v1773 = vadd.f32 0.0, %v1772
        %1774 = vmatmul.f32.gmra.mxu0 %v1660
        %v1775 = vpop.f32.mrf.mxu0
        %v1776 = vadd.f32 0.0, %v1775
        %1777 = vmatmul.f32.gmra.mxu0 %v1663
        %v1778 = vpop.f32.mrf.mxu0
        %v1779 = vadd.f32 0.0, %v1778
        %1780 = vmatmul.f32.gmra.mxu0 %v1666
        %v1781 = vpop.f32.mrf.mxu0
        %v1782 = vadd.f32 0.0, %v1781
        %1783 = vmatmul.f32.gmra.mxu0 %v1669
        %v1784 = vpop.f32.mrf.mxu0
        %v1785 = vadd.f32 0.0, %v1784
        %1786 = vmatmul.f32.gmra.mxu0 %v1672
        %v1787 = vpop.f32.mrf.mxu0
        %v1788 = vadd.f32 0.0, %v1787
        %1789 = vmatmul.f32.gmra.mxu0 %v1675
        %v1790 = vpop.f32.mrf.mxu0
        %v1791 = vadd.f32 0.0, %v1790
        %1792 = vmatmul.f32.gmra.mxu0 %v1678
        %v1793 = vpop.f32.mrf.mxu0
        %v1794 = vadd.f32 0.0, %v1793
        %1795 = vmatmul.f32.gmra.mxu0 %v1681
        %v1796 = vpop.f32.mrf.mxu0
        %v1797 = vadd.f32 0.0, %v1796
        %1798 = vmatmul.f32.gmra.mxu0 %v1684
        %v1799 = vpop.f32.mrf.mxu0
        %v1800 = vadd.f32 0.0, %v1799
        %1801 = vmatmul.f32.gmra.mxu0 %v1687
        %v1802 = vpop.f32.mrf.mxu0
        %v1803 = vadd.f32 0.0, %v1802
        %1804 = vmatmul.f32.gmra.mxu0 %v1690
        %v1805 = vpop.f32.mrf.mxu0
        %v1806 = vadd.f32 0.0, %v1805
        %1807 = vmatmul.f32.gmra.mxu0 %v1693
        %v1808 = vpop.f32.mrf.mxu0
        %v1809 = vadd.f32 0.0, %v1808
        %1810 = vmatmul.f32.gmra.mxu0 %v1696
        %v1811 = vpop.f32.mrf.mxu0
        %v1812 = vadd.f32 0.0, %v1811
        %1813 = vmatmul.f32.gmra.mxu0 %v1699
        %v1814 = vpop.f32.mrf.mxu0
        %v1815 = vadd.f32 0.0, %v1814
        %1816 = vmatmul.f32.gmra.mxu0 %v1702
        %v1817 = vpop.f32.mrf.mxu0
        %v1818 = vadd.f32 0.0, %v1817
        %1819 = vmatmul.f32.gmra.mxu0 %v1705
        %v1820 = vpop.f32.mrf.mxu0
        %v1821 = vadd.f32 0.0, %v1820
        %1822 = vmatmul.f32.gmra.mxu0 %v1708
        %v1823 = vpop.f32.mrf.mxu0
        %v1824 = vadd.f32 0.0, %v1823
        %1825 = vmatmul.f32.gmra.mxu0 %v1711
        %v1826 = vpop.f32.mrf.mxu0
        %v1827 = vadd.f32 0.0, %v1826
        %1828 = vmatmul.f32.gmra.mxu0 %v1714
        %v1829 = vpop.f32.mrf.mxu0
        %v1830 = vadd.f32 0.0, %v1829
        %1831 = vmatmul.f32.gmra.mxu0 %v1717
        %v1832 = vpop.f32.mrf.mxu0
        %v1833 = vadd.f32 0.0, %v1832
        %1834 = vmatmul.f32.gmra.mxu0 %v1720
        %v1835 = vpop.f32.mrf.mxu0
        %v1836 = vadd.f32 0.0, %v1835
        %1837 = vmatmul.f32.gmra.mxu0 %v1723
        %v1838 = vpop.f32.mrf.mxu0
        %v1839 = vadd.f32 0.0, %v1838
        %1840 = vmatmul.f32.gmra.mxu0 %v1726
        %v1841 = vpop.f32.mrf.mxu0
        %v1842 = vadd.f32 0.0, %v1841
        %1843 = vmatmul.f32.gmra.mxu0 %v1729
        %v1844 = vpop.f32.mrf.mxu0
        %v1845 = vadd.f32 0.0, %v1844
        %1846 = vmatmul.f32.gmra.mxu0 %v1732
        %v1847 = vpop.f32.mrf.mxu0
        %v1848 = vadd.f32 0.0, %v1847
        %1849 = vdwg.mxu0
        %v1850 = vadd.f32 %v1572, %v1755
        %v1851 = vadd.f32 %v1573, %v1758
        %v1852 = vadd.f32 %v1574, %v1761
        %v1853 = vadd.f32 %v1575, %v1764
        %v1854 = vadd.f32 %v1576, %v1767
        %v1855 = vadd.f32 %v1577, %v1770
        %v1856 = vadd.f32 %v1578, %v1773
        %v1857 = vadd.f32 %v1579, %v1776
        %v1858 = vadd.f32 %v1580, %v1779
        %v1859 = vadd.f32 %v1581, %v1782
        %v1860 = vadd.f32 %v1582, %v1785
        %v1861 = vadd.f32 %v1583, %v1788
        %v1862 = vadd.f32 %v1584, %v1791
        %v1863 = vadd.f32 %v1585, %v1794
        %v1864 = vadd.f32 %v1586, %v1797
        %v1865 = vadd.f32 %v1587, %v1800
        %v1866 = vadd.f32 %v1588, %v1803
        %v1867 = vadd.f32 %v1589, %v1806
        %v1868 = vadd.f32 %v1590, %v1809
        %v1869 = vadd.f32 %v1591, %v1812
        %v1870 = vadd.f32 %v1592, %v1815
        %v1871 = vadd.f32 %v1593, %v1818
        %v1872 = vadd.f32 %v1594, %v1821
        %v1873 = vadd.f32 %v1595, %v1824
        %v1874 = vadd.f32 %v1596, %v1827
        %v1875 = vadd.f32 %v1597, %v1830
        %v1876 = vadd.f32 %v1598, %v1833
        %v1877 = vadd.f32 %v1599, %v1836
        %v1878 = vadd.f32 %v1600, %v1839
        %v1879 = vadd.f32 %v1601, %v1842
        %v1880 = vadd.f32 %v1602, %v1845
        %v1881 = vadd.f32 %v1603, %v1848
        %s1882 = scalar_lea.vmem %s275, 48
        %v1883 = vld [vmem:[%s1882] sm:$0xff]
        %v1884 = vld [vmem:[%s1882 + $0x8] sm:$0xff]
        %v1885 = vld [vmem:[%s1882 + $0x18] sm:$0xff]
        %v1886 = vld [vmem:[%s1882 + $0x20] sm:$0xff]
        %v1887 = vld [vmem:[%s1882 + $0x30] sm:$0xff]
        %v1888 = vld [vmem:[%s1882 + $0x38] sm:$0xff]
        %v1889 = vld [vmem:[%s1882 + $0x48] sm:$0xff]
        %v1890 = vld [vmem:[%s1882 + $0x50] sm:$0xff]
        %v1891 = vld [vmem:[%s1882 + $0x60] sm:$0xff]
        %v1892 = vld [vmem:[%s1882 + $0x68] sm:$0xff]
        %v1893 = vld [vmem:[%s1882 + $0x78] sm:$0xff]
        %v1894 = vld [vmem:[%s1882 + $0x80] sm:$0xff]
        %v1895 = vld [vmem:[%s1882 + $0x90] sm:$0xff]
        %v1896 = vld [vmem:[%s1882 + $0x98] sm:$0xff]
        %v1897 = vld [vmem:[%s1882 + $0xa8] sm:$0xff]
        %v1898 = vld [vmem:[%s1882 + $0xb0] sm:$0xff]
        %v1899 = vld [vmem:[%s1882 + $0xc0] sm:$0xff]
        %v1900 = vld [vmem:[%s1882 + $0xc8] sm:$0xff]
        %v1901 = vld [vmem:[%s1882 + $0xd8] sm:$0xff]
        %v1902 = vld [vmem:[%s1882 + $0xe0] sm:$0xff]
        %v1903 = vld [vmem:[%s1882 + $0xf0] sm:$0xff]
        %v1904 = vld [vmem:[%s1882 + $0xf8] sm:$0xff]
        %v1905 = vld [vmem:[%s1882 + $0x108] sm:$0xff]
        %v1906 = vld [vmem:[%s1882 + $0x110] sm:$0xff]
        %v1907 = vld [vmem:[%s1882 + $0x120] sm:$0xff]
        %v1908 = vld [vmem:[%s1882 + $0x128] sm:$0xff]
        %v1909 = vld [vmem:[%s1882 + $0x138] sm:$0xff]
        %v1910 = vld [vmem:[%s1882 + $0x140] sm:$0xff]
        %v1911 = vld [vmem:[%s1882 + $0x150] sm:$0xff]
        %v1912 = vld [vmem:[%s1882 + $0x158] sm:$0xff]
        %v1913 = vld [vmem:[%s1882 + $0x168] sm:$0xff]
        %v1914 = vld [vmem:[%s1882 + $0x170] sm:$0xff]
        %s1915 = scalar_lea.vmem %s1, 24
        %v1916 = vld [vmem:[%s1915] sm:$0xf]
        %v1918 = vsel %vm343, %v1883, 0
        %v1921 = vsel %vm343, %v1884, 0
        %v1924 = vsel %vm343, %v1885, 0
        %v1927 = vsel %vm343, %v1886, 0
        %v1930 = vsel %vm343, %v1887, 0
        %v1933 = vsel %vm343, %v1888, 0
        %v1936 = vsel %vm343, %v1889, 0
        %v1939 = vsel %vm343, %v1890, 0
        %v1942 = vsel %vm343, %v1891, 0
        %v1945 = vsel %vm343, %v1892, 0
        %v1948 = vsel %vm343, %v1893, 0
        %v1951 = vsel %vm343, %v1894, 0
        %v1954 = vsel %vm343, %v1895, 0
        %v1957 = vsel %vm343, %v1896, 0
        %v1960 = vsel %vm343, %v1897, 0
        %v1963 = vsel %vm343, %v1898, 0
        %v1966 = vsel %vm343, %v1899, 0
        %v1969 = vsel %vm343, %v1900, 0
        %v1972 = vsel %vm343, %v1901, 0
        %v1975 = vsel %vm343, %v1902, 0
        %v1978 = vsel %vm343, %v1903, 0
        %v1981 = vsel %vm343, %v1904, 0
        %v1984 = vsel %vm343, %v1905, 0
        %v1987 = vsel %vm343, %v1906, 0
        %v1990 = vsel %vm343, %v1907, 0
        %v1993 = vsel %vm343, %v1908, 0
        %v1996 = vsel %vm343, %v1909, 0
        %v1999 = vsel %vm343, %v1910, 0
        %v2002 = vsel %vm343, %v1911, 0
        %v2005 = vsel %vm343, %v1912, 0
        %v2008 = vsel %vm343, %v1913, 0
        %v2011 = vsel %vm343, %v1914, 0
        %v2014 = vsel %vm440, %v1916, 0
        %2016 = vmatpush.msra.mxu0 0.0
        %2017 = vmatpush.msra.mxu0 0.0
        %2018 = vmatpush.msra.mxu0 0.0
        %2019 = vmatpush.msra.mxu0 0.0
        %2020 = vmatpush.msra.mxu0 0.0
        %2021 = vmatpush.msra.mxu0 0.0
        %2022 = vmatpush.msra.mxu0 0.0
        %2023 = vmatpush.msra.mxu0 0.0
        %2024 = vmatpush.msra.mxu0 0.0
        %2025 = vmatpush.msra.mxu0 0.0
        %2026 = vmatpush.msra.mxu0 0.0
        %2027 = vmatpush.msra.mxu0 0.0
        %2028 = vmatpush.msra.mxu0 0.0
        %2029 = vmatpush.msra.mxu0 0.0
        %2030 = vmatpush.msra.mxu0 0.0
        %2031 = vmatpush.msra.mxu0 %v2014
        %2032 = vmatmul.f32.gmra.mxu0 %v1918
        %v2033 = vpop.f32.mrf.mxu0
        %v2034 = vadd.f32 0.0, %v2033
        %2035 = vmatmul.f32.gmra.mxu0 %v1921
        %v2036 = vpop.f32.mrf.mxu0
        %v2037 = vadd.f32 0.0, %v2036
        %2038 = vmatmul.f32.gmra.mxu0 %v1924
        %v2039 = vpop.f32.mrf.mxu0
        %v2040 = vadd.f32 0.0, %v2039
        %2041 = vmatmul.f32.gmra.mxu0 %v1927
        %v2042 = vpop.f32.mrf.mxu0
        %v2043 = vadd.f32 0.0, %v2042
        %2044 = vmatmul.f32.gmra.mxu0 %v1930
        %v2045 = vpop.f32.mrf.mxu0
        %v2046 = vadd.f32 0.0, %v2045
        %2047 = vmatmul.f32.gmra.mxu0 %v1933
        %v2048 = vpop.f32.mrf.mxu0
        %v2049 = vadd.f32 0.0, %v2048
        %2050 = vmatmul.f32.gmra.mxu0 %v1936
        %v2051 = vpop.f32.mrf.mxu0
        %v2052 = vadd.f32 0.0, %v2051
        %2053 = vmatmul.f32.gmra.mxu0 %v1939
        %v2054 = vpop.f32.mrf.mxu0
        %v2055 = vadd.f32 0.0, %v2054
        %2056 = vmatmul.f32.gmra.mxu0 %v1942
        %v2057 = vpop.f32.mrf.mxu0
        %v2058 = vadd.f32 0.0, %v2057
        %2059 = vmatmul.f32.gmra.mxu0 %v1945
        %v2060 = vpop.f32.mrf.mxu0
        %v2061 = vadd.f32 0.0, %v2060
        %2062 = vmatmul.f32.gmra.mxu0 %v1948
        %v2063 = vpop.f32.mrf.mxu0
        %v2064 = vadd.f32 0.0, %v2063
        %2065 = vmatmul.f32.gmra.mxu0 %v1951
        %v2066 = vpop.f32.mrf.mxu0
        %v2067 = vadd.f32 0.0, %v2066
        %2068 = vmatmul.f32.gmra.mxu0 %v1954
        %v2069 = vpop.f32.mrf.mxu0
        %v2070 = vadd.f32 0.0, %v2069
        %2071 = vmatmul.f32.gmra.mxu0 %v1957
        %v2072 = vpop.f32.mrf.mxu0
        %v2073 = vadd.f32 0.0, %v2072
        %2074 = vmatmul.f32.gmra.mxu0 %v1960
        %v2075 = vpop.f32.mrf.mxu0
        %v2076 = vadd.f32 0.0, %v2075
        %2077 = vmatmul.f32.gmra.mxu0 %v1963
        %v2078 = vpop.f32.mrf.mxu0
        %v2079 = vadd.f32 0.0, %v2078
        %2080 = vmatmul.f32.gmra.mxu0 %v1966
        %v2081 = vpop.f32.mrf.mxu0
        %v2082 = vadd.f32 0.0, %v2081
        %2083 = vmatmul.f32.gmra.mxu0 %v1969
        %v2084 = vpop.f32.mrf.mxu0
        %v2085 = vadd.f32 0.0, %v2084
        %2086 = vmatmul.f32.gmra.mxu0 %v1972
        %v2087 = vpop.f32.mrf.mxu0
        %v2088 = vadd.f32 0.0, %v2087
        %2089 = vmatmul.f32.gmra.mxu0 %v1975
        %v2090 = vpop.f32.mrf.mxu0
        %v2091 = vadd.f32 0.0, %v2090
        %2092 = vmatmul.f32.gmra.mxu0 %v1978
        %v2093 = vpop.f32.mrf.mxu0
        %v2094 = vadd.f32 0.0, %v2093
        %2095 = vmatmul.f32.gmra.mxu0 %v1981
        %v2096 = vpop.f32.mrf.mxu0
        %v2097 = vadd.f32 0.0, %v2096
        %2098 = vmatmul.f32.gmra.mxu0 %v1984
        %v2099 = vpop.f32.mrf.mxu0
        %v2100 = vadd.f32 0.0, %v2099
        %2101 = vmatmul.f32.gmra.mxu0 %v1987
        %v2102 = vpop.f32.mrf.mxu0
        %v2103 = vadd.f32 0.0, %v2102
        %2104 = vmatmul.f32.gmra.mxu0 %v1990
        %v2105 = vpop.f32.mrf.mxu0
        %v2106 = vadd.f32 0.0, %v2105
        %2107 = vmatmul.f32.gmra.mxu0 %v1993
        %v2108 = vpop.f32.mrf.mxu0
        %v2109 = vadd.f32 0.0, %v2108
        %2110 = vmatmul.f32.gmra.mxu0 %v1996
        %v2111 = vpop.f32.mrf.mxu0
        %v2112 = vadd.f32 0.0, %v2111
        %2113 = vmatmul.f32.gmra.mxu0 %v1999
        %v2114 = vpop.f32.mrf.mxu0
        %v2115 = vadd.f32 0.0, %v2114
        %2116 = vmatmul.f32.gmra.mxu0 %v2002
        %v2117 = vpop.f32.mrf.mxu0
        %v2118 = vadd.f32 0.0, %v2117
        %2119 = vmatmul.f32.gmra.mxu0 %v2005
        %v2120 = vpop.f32.mrf.mxu0
        %v2121 = vadd.f32 0.0, %v2120
        %2122 = vmatmul.f32.gmra.mxu0 %v2008
        %v2123 = vpop.f32.mrf.mxu0
        %v2124 = vadd.f32 0.0, %v2123
        %2125 = vmatmul.f32.gmra.mxu0 %v2011
        %v2126 = vpop.f32.mrf.mxu0
        %v2127 = vadd.f32 0.0, %v2126
        %2128 = vdwg.mxu0
        %v2129 = vadd.f32 %v1850, %v2034
        %v2130 = vadd.f32 %v1851, %v2037
        %v2131 = vadd.f32 %v1852, %v2040
        %v2132 = vadd.f32 %v1853, %v2043
        %v2133 = vadd.f32 %v1854, %v2046
        %v2134 = vadd.f32 %v1855, %v2049
        %v2135 = vadd.f32 %v1856, %v2052
        %v2136 = vadd.f32 %v1857, %v2055
        %v2137 = vadd.f32 %v1858, %v2058
        %v2138 = vadd.f32 %v1859, %v2061
        %v2139 = vadd.f32 %v1860, %v2064
        %v2140 = vadd.f32 %v1861, %v2067
        %v2141 = vadd.f32 %v1862, %v2070
        %v2142 = vadd.f32 %v1863, %v2073
        %v2143 = vadd.f32 %v1864, %v2076
        %v2144 = vadd.f32 %v1865, %v2079
        %v2145 = vadd.f32 %v1866, %v2082
        %v2146 = vadd.f32 %v1867, %v2085
        %v2147 = vadd.f32 %v1868, %v2088
        %v2148 = vadd.f32 %v1869, %v2091
        %v2149 = vadd.f32 %v1870, %v2094
        %v2150 = vadd.f32 %v1871, %v2097
        %v2151 = vadd.f32 %v1872, %v2100
        %v2152 = vadd.f32 %v1873, %v2103
        %v2153 = vadd.f32 %v1874, %v2106
        %v2154 = vadd.f32 %v1875, %v2109
        %v2155 = vadd.f32 %v1876, %v2112
        %v2156 = vadd.f32 %v1877, %v2115
        %v2157 = vadd.f32 %v1878, %v2118
        %v2158 = vadd.f32 %v1879, %v2121
        %v2159 = vadd.f32 %v1880, %v2124
        %v2160 = vadd.f32 %v1881, %v2127
        %v2161 = vld [vmem:[%s1882 + $0x1] sm:$0xff]
        %v2162 = vld [vmem:[%s1882 + $0x9] sm:$0xff]
        %v2163 = vld [vmem:[%s1882 + $0x19] sm:$0xff]
        %v2164 = vld [vmem:[%s1882 + $0x21] sm:$0xff]
        %v2165 = vld [vmem:[%s1882 + $0x31] sm:$0xff]
        %v2166 = vld [vmem:[%s1882 + $0x39] sm:$0xff]
        %v2167 = vld [vmem:[%s1882 + $0x49] sm:$0xff]
        %v2168 = vld [vmem:[%s1882 + $0x51] sm:$0xff]
        %v2169 = vld [vmem:[%s1882 + $0x61] sm:$0xff]
        %v2170 = vld [vmem:[%s1882 + $0x69] sm:$0xff]
        %v2171 = vld [vmem:[%s1882 + $0x79] sm:$0xff]
        %v2172 = vld [vmem:[%s1882 + $0x81] sm:$0xff]
        %v2173 = vld [vmem:[%s1882 + $0x91] sm:$0xff]
        %v2174 = vld [vmem:[%s1882 + $0x99] sm:$0xff]
        %v2175 = vld [vmem:[%s1882 + $0xa9] sm:$0xff]
        %v2176 = vld [vmem:[%s1882 + $0xb1] sm:$0xff]
        %v2177 = vld [vmem:[%s1882 + $0xc1] sm:$0xff]
        %v2178 = vld [vmem:[%s1882 + $0xc9] sm:$0xff]
        %v2179 = vld [vmem:[%s1882 + $0xd9] sm:$0xff]
        %v2180 = vld [vmem:[%s1882 + $0xe1] sm:$0xff]
        %v2181 = vld [vmem:[%s1882 + $0xf1] sm:$0xff]
        %v2182 = vld [vmem:[%s1882 + $0xf9] sm:$0xff]
        %v2183 = vld [vmem:[%s1882 + $0x109] sm:$0xff]
        %v2184 = vld [vmem:[%s1882 + $0x111] sm:$0xff]
        %v2185 = vld [vmem:[%s1882 + $0x121] sm:$0xff]
        %v2186 = vld [vmem:[%s1882 + $0x129] sm:$0xff]
        %v2187 = vld [vmem:[%s1882 + $0x139] sm:$0xff]
        %v2188 = vld [vmem:[%s1882 + $0x141] sm:$0xff]
        %v2189 = vld [vmem:[%s1882 + $0x151] sm:$0xff]
        %v2190 = vld [vmem:[%s1882 + $0x159] sm:$0xff]
        %v2191 = vld [vmem:[%s1882 + $0x169] sm:$0xff]
        %v2192 = vld [vmem:[%s1882 + $0x171] sm:$0xff]
        %s2193 = scalar_lea.vmem %s1, 28
        %v2194 = vld [vmem:[%s2193] sm:$0xf]
        %v2196 = vsel %vm343, %v2161, 0
        %v2199 = vsel %vm343, %v2162, 0
        %v2202 = vsel %vm343, %v2163, 0
        %v2205 = vsel %vm343, %v2164, 0
        %v2208 = vsel %vm343, %v2165, 0
        %v2211 = vsel %vm343, %v2166, 0
        %v2214 = vsel %vm343, %v2167, 0
        %v2217 = vsel %vm343, %v2168, 0
        %v2220 = vsel %vm343, %v2169, 0
        %v2223 = vsel %vm343, %v2170, 0
        %v2226 = vsel %vm343, %v2171, 0
        %v2229 = vsel %vm343, %v2172, 0
        %v2232 = vsel %vm343, %v2173, 0
        %v2235 = vsel %vm343, %v2174, 0
        %v2238 = vsel %vm343, %v2175, 0
        %v2241 = vsel %vm343, %v2176, 0
        %v2244 = vsel %vm343, %v2177, 0
        %v2247 = vsel %vm343, %v2178, 0
        %v2250 = vsel %vm343, %v2179, 0
        %v2253 = vsel %vm343, %v2180, 0
        %v2256 = vsel %vm343, %v2181, 0
        %v2259 = vsel %vm343, %v2182, 0
        %v2262 = vsel %vm343, %v2183, 0
        %v2265 = vsel %vm343, %v2184, 0
        %v2268 = vsel %vm343, %v2185, 0
        %v2271 = vsel %vm343, %v2186, 0
        %v2274 = vsel %vm343, %v2187, 0
        %v2277 = vsel %vm343, %v2188, 0
        %v2280 = vsel %vm343, %v2189, 0
        %v2283 = vsel %vm343, %v2190, 0
        %v2286 = vsel %vm343, %v2191, 0
        %v2289 = vsel %vm343, %v2192, 0
        %v2292 = vsel %vm440, %v2194, 0
        %2294 = vmatpush.msra.mxu0 0.0
        %2295 = vmatpush.msra.mxu0 0.0
        %2296 = vmatpush.msra.mxu0 0.0
        %2297 = vmatpush.msra.mxu0 0.0
        %2298 = vmatpush.msra.mxu0 0.0
        %2299 = vmatpush.msra.mxu0 0.0
        %2300 = vmatpush.msra.mxu0 0.0
        %2301 = vmatpush.msra.mxu0 0.0
        %2302 = vmatpush.msra.mxu0 0.0
        %2303 = vmatpush.msra.mxu0 0.0
        %2304 = vmatpush.msra.mxu0 0.0
        %2305 = vmatpush.msra.mxu0 0.0
        %2306 = vmatpush.msra.mxu0 0.0
        %2307 = vmatpush.msra.mxu0 0.0
        %2308 = vmatpush.msra.mxu0 0.0
        %2309 = vmatpush.msra.mxu0 %v2292
        %2310 = vmatmul.f32.gmra.mxu0 %v2196
        %v2311 = vpop.f32.mrf.mxu0
        %v2312 = vadd.f32 0.0, %v2311
        %2313 = vmatmul.f32.gmra.mxu0 %v2199
        %v2314 = vpop.f32.mrf.mxu0
        %v2315 = vadd.f32 0.0, %v2314
        %2316 = vmatmul.f32.gmra.mxu0 %v2202
        %v2317 = vpop.f32.mrf.mxu0
        %v2318 = vadd.f32 0.0, %v2317
        %2319 = vmatmul.f32.gmra.mxu0 %v2205
        %v2320 = vpop.f32.mrf.mxu0
        %v2321 = vadd.f32 0.0, %v2320
        %2322 = vmatmul.f32.gmra.mxu0 %v2208
        %v2323 = vpop.f32.mrf.mxu0
        %v2324 = vadd.f32 0.0, %v2323
        %2325 = vmatmul.f32.gmra.mxu0 %v2211
        %v2326 = vpop.f32.mrf.mxu0
        %v2327 = vadd.f32 0.0, %v2326
        %2328 = vmatmul.f32.gmra.mxu0 %v2214
        %v2329 = vpop.f32.mrf.mxu0
        %v2330 = vadd.f32 0.0, %v2329
        %2331 = vmatmul.f32.gmra.mxu0 %v2217
        %v2332 = vpop.f32.mrf.mxu0
        %v2333 = vadd.f32 0.0, %v2332
        %2334 = vmatmul.f32.gmra.mxu0 %v2220
        %v2335 = vpop.f32.mrf.mxu0
        %v2336 = vadd.f32 0.0, %v2335
        %2337 = vmatmul.f32.gmra.mxu0 %v2223
        %v2338 = vpop.f32.mrf.mxu0
        %v2339 = vadd.f32 0.0, %v2338
        %2340 = vmatmul.f32.gmra.mxu0 %v2226
        %v2341 = vpop.f32.mrf.mxu0
        %v2342 = vadd.f32 0.0, %v2341
        %2343 = vmatmul.f32.gmra.mxu0 %v2229
        %v2344 = vpop.f32.mrf.mxu0
        %v2345 = vadd.f32 0.0, %v2344
        %2346 = vmatmul.f32.gmra.mxu0 %v2232
        %v2347 = vpop.f32.mrf.mxu0
        %v2348 = vadd.f32 0.0, %v2347
        %2349 = vmatmul.f32.gmra.mxu0 %v2235
        %v2350 = vpop.f32.mrf.mxu0
        %v2351 = vadd.f32 0.0, %v2350
        %2352 = vmatmul.f32.gmra.mxu0 %v2238
        %v2353 = vpop.f32.mrf.mxu0
        %v2354 = vadd.f32 0.0, %v2353
        %2355 = vmatmul.f32.gmra.mxu0 %v2241
        %v2356 = vpop.f32.mrf.mxu0
        %v2357 = vadd.f32 0.0, %v2356
        %2358 = vmatmul.f32.gmra.mxu0 %v2244
        %v2359 = vpop.f32.mrf.mxu0
        %v2360 = vadd.f32 0.0, %v2359
        %2361 = vmatmul.f32.gmra.mxu0 %v2247
        %v2362 = vpop.f32.mrf.mxu0
        %v2363 = vadd.f32 0.0, %v2362
        %2364 = vmatmul.f32.gmra.mxu0 %v2250
        %v2365 = vpop.f32.mrf.mxu0
        %v2366 = vadd.f32 0.0, %v2365
        %2367 = vmatmul.f32.gmra.mxu0 %v2253
        %v2368 = vpop.f32.mrf.mxu0
        %v2369 = vadd.f32 0.0, %v2368
        %2370 = vmatmul.f32.gmra.mxu0 %v2256
        %v2371 = vpop.f32.mrf.mxu0
        %v2372 = vadd.f32 0.0, %v2371
        %2373 = vmatmul.f32.gmra.mxu0 %v2259
        %v2374 = vpop.f32.mrf.mxu0
        %v2375 = vadd.f32 0.0, %v2374
        %2376 = vmatmul.f32.gmra.mxu0 %v2262
        %v2377 = vpop.f32.mrf.mxu0
        %v2378 = vadd.f32 0.0, %v2377
        %2379 = vmatmul.f32.gmra.mxu0 %v2265
        %v2380 = vpop.f32.mrf.mxu0
        %v2381 = vadd.f32 0.0, %v2380
        %2382 = vmatmul.f32.gmra.mxu0 %v2268
        %v2383 = vpop.f32.mrf.mxu0
        %v2384 = vadd.f32 0.0, %v2383
        %2385 = vmatmul.f32.gmra.mxu0 %v2271
        %v2386 = vpop.f32.mrf.mxu0
        %v2387 = vadd.f32 0.0, %v2386
        %2388 = vmatmul.f32.gmra.mxu0 %v2274
        %v2389 = vpop.f32.mrf.mxu0
        %v2390 = vadd.f32 0.0, %v2389
        %2391 = vmatmul.f32.gmra.mxu0 %v2277
        %v2392 = vpop.f32.mrf.mxu0
        %v2393 = vadd.f32 0.0, %v2392
        %2394 = vmatmul.f32.gmra.mxu0 %v2280
        %v2395 = vpop.f32.mrf.mxu0
        %v2396 = vadd.f32 0.0, %v2395
        %2397 = vmatmul.f32.gmra.mxu0 %v2283
        %v2398 = vpop.f32.mrf.mxu0
        %v2399 = vadd.f32 0.0, %v2398
        %2400 = vmatmul.f32.gmra.mxu0 %v2286
        %v2401 = vpop.f32.mrf.mxu0
        %v2402 = vadd.f32 0.0, %v2401
        %2403 = vmatmul.f32.gmra.mxu0 %v2289
        %v2404 = vpop.f32.mrf.mxu0
        %v2405 = vadd.f32 0.0, %v2404
        %2406 = vdwg.mxu0
        %v2407 = vadd.f32 %v2129, %v2312
        %v2408 = vadd.f32 %v2130, %v2315
        %v2409 = vadd.f32 %v2131, %v2318
        %v2410 = vadd.f32 %v2132, %v2321
        %v2411 = vadd.f32 %v2133, %v2324
        %v2412 = vadd.f32 %v2134, %v2327
        %v2413 = vadd.f32 %v2135, %v2330
        %v2414 = vadd.f32 %v2136, %v2333
        %v2415 = vadd.f32 %v2137, %v2336
        %v2416 = vadd.f32 %v2138, %v2339
        %v2417 = vadd.f32 %v2139, %v2342
        %v2418 = vadd.f32 %v2140, %v2345
        %v2419 = vadd.f32 %v2141, %v2348
        %v2420 = vadd.f32 %v2142, %v2351
        %v2421 = vadd.f32 %v2143, %v2354
        %v2422 = vadd.f32 %v2144, %v2357
        %v2423 = vadd.f32 %v2145, %v2360
        %v2424 = vadd.f32 %v2146, %v2363
        %v2425 = vadd.f32 %v2147, %v2366
        %v2426 = vadd.f32 %v2148, %v2369
        %v2427 = vadd.f32 %v2149, %v2372
        %v2428 = vadd.f32 %v2150, %v2375
        %v2429 = vadd.f32 %v2151, %v2378
        %v2430 = vadd.f32 %v2152, %v2381
        %v2431 = vadd.f32 %v2153, %v2384
        %v2432 = vadd.f32 %v2154, %v2387
        %v2433 = vadd.f32 %v2155, %v2390
        %v2434 = vadd.f32 %v2156, %v2393
        %v2435 = vadd.f32 %v2157, %v2396
        %v2436 = vadd.f32 %v2158, %v2399
        %v2437 = vadd.f32 %v2159, %v2402
        %v2438 = vadd.f32 %v2160, %v2405
        %v2439 = vld [vmem:[%s1882 + $0x2] sm:$0xff]
        %v2440 = vld [vmem:[%s1882 + $0xa] sm:$0xff]
        %v2441 = vld [vmem:[%s1882 + $0x1a] sm:$0xff]
        %v2442 = vld [vmem:[%s1882 + $0x22] sm:$0xff]
        %v2443 = vld [vmem:[%s1882 + $0x32] sm:$0xff]
        %v2444 = vld [vmem:[%s1882 + $0x3a] sm:$0xff]
        %v2445 = vld [vmem:[%s1882 + $0x4a] sm:$0xff]
        %v2446 = vld [vmem:[%s1882 + $0x52] sm:$0xff]
        %v2447 = vld [vmem:[%s1882 + $0x62] sm:$0xff]
        %v2448 = vld [vmem:[%s1882 + $0x6a] sm:$0xff]
        %v2449 = vld [vmem:[%s1882 + $0x7a] sm:$0xff]
        %v2450 = vld [vmem:[%s1882 + $0x82] sm:$0xff]
        %v2451 = vld [vmem:[%s1882 + $0x92] sm:$0xff]
        %v2452 = vld [vmem:[%s1882 + $0x9a] sm:$0xff]
        %v2453 = vld [vmem:[%s1882 + $0xaa] sm:$0xff]
        %v2454 = vld [vmem:[%s1882 + $0xb2] sm:$0xff]
        %v2455 = vld [vmem:[%s1882 + $0xc2] sm:$0xff]
        %v2456 = vld [vmem:[%s1882 + $0xca] sm:$0xff]
        %v2457 = vld [vmem:[%s1882 + $0xda] sm:$0xff]
        %v2458 = vld [vmem:[%s1882 + $0xe2] sm:$0xff]
        %v2459 = vld [vmem:[%s1882 + $0xf2] sm:$0xff]
        %v2460 = vld [vmem:[%s1882 + $0xfa] sm:$0xff]
        %v2461 = vld [vmem:[%s1882 + $0x10a] sm:$0xff]
        %v2462 = vld [vmem:[%s1882 + $0x112] sm:$0xff]
        %v2463 = vld [vmem:[%s1882 + $0x122] sm:$0xff]
        %v2464 = vld [vmem:[%s1882 + $0x12a] sm:$0xff]
        %v2465 = vld [vmem:[%s1882 + $0x13a] sm:$0xff]
        %v2466 = vld [vmem:[%s1882 + $0x142] sm:$0xff]
        %v2467 = vld [vmem:[%s1882 + $0x152] sm:$0xff]
        %v2468 = vld [vmem:[%s1882 + $0x15a] sm:$0xff]
        %v2469 = vld [vmem:[%s1882 + $0x16a] sm:$0xff]
        %v2470 = vld [vmem:[%s1882 + $0x172] sm:$0xff]
        %s2471 = scalar_lea.vmem %s1, 32
        %v2472 = vld [vmem:[%s2471] sm:$0xf]
        %v2474 = vsel %vm343, %v2439, 0
        %v2477 = vsel %vm343, %v2440, 0
        %v2480 = vsel %vm343, %v2441, 0
        %v2483 = vsel %vm343, %v2442, 0
        %v2486 = vsel %vm343, %v2443, 0
        %v2489 = vsel %vm343, %v2444, 0
        %v2492 = vsel %vm343, %v2445, 0
        %v2495 = vsel %vm343, %v2446, 0
        %v2498 = vsel %vm343, %v2447, 0
        %v2501 = vsel %vm343, %v2448, 0
        %v2504 = vsel %vm343, %v2449, 0
        %v2507 = vsel %vm343, %v2450, 0
        %v2510 = vsel %vm343, %v2451, 0
        %v2513 = vsel %vm343, %v2452, 0
        %v2516 = vsel %vm343, %v2453, 0
        %v2519 = vsel %vm343, %v2454, 0
        %v2522 = vsel %vm343, %v2455, 0
        %v2525 = vsel %vm343, %v2456, 0
        %v2528 = vsel %vm343, %v2457, 0
        %v2531 = vsel %vm343, %v2458, 0
        %v2534 = vsel %vm343, %v2459, 0
        %v2537 = vsel %vm343, %v2460, 0
        %v2540 = vsel %vm343, %v2461, 0
        %v2543 = vsel %vm343, %v2462, 0
        %v2546 = vsel %vm343, %v2463, 0
        %v2549 = vsel %vm343, %v2464, 0
        %v2552 = vsel %vm343, %v2465, 0
        %v2555 = vsel %vm343, %v2466, 0
        %v2558 = vsel %vm343, %v2467, 0
        %v2561 = vsel %vm343, %v2468, 0
        %v2564 = vsel %vm343, %v2469, 0
        %v2567 = vsel %vm343, %v2470, 0
        %v2570 = vsel %vm440, %v2472, 0
        %2572 = vmatpush.msra.mxu0 0.0
        %2573 = vmatpush.msra.mxu0 0.0
        %2574 = vmatpush.msra.mxu0 0.0
        %2575 = vmatpush.msra.mxu0 0.0
        %2576 = vmatpush.msra.mxu0 0.0
        %2577 = vmatpush.msra.mxu0 0.0
        %2578 = vmatpush.msra.mxu0 0.0
        %2579 = vmatpush.msra.mxu0 0.0
        %2580 = vmatpush.msra.mxu0 0.0
        %2581 = vmatpush.msra.mxu0 0.0
        %2582 = vmatpush.msra.mxu0 0.0
        %2583 = vmatpush.msra.mxu0 0.0
        %2584 = vmatpush.msra.mxu0 0.0
        %2585 = vmatpush.msra.mxu0 0.0
        %2586 = vmatpush.msra.mxu0 0.0
        %2587 = vmatpush.msra.mxu0 %v2570
        %2588 = vmatmul.f32.gmra.mxu0 %v2474
        %v2589 = vpop.f32.mrf.mxu0
        %v2590 = vadd.f32 0.0, %v2589
        %2591 = vmatmul.f32.gmra.mxu0 %v2477
        %v2592 = vpop.f32.mrf.mxu0
        %v2593 = vadd.f32 0.0, %v2592
        %2594 = vmatmul.f32.gmra.mxu0 %v2480
        %v2595 = vpop.f32.mrf.mxu0
        %v2596 = vadd.f32 0.0, %v2595
        %2597 = vmatmul.f32.gmra.mxu0 %v2483
        %v2598 = vpop.f32.mrf.mxu0
        %v2599 = vadd.f32 0.0, %v2598
        %2600 = vmatmul.f32.gmra.mxu0 %v2486
        %v2601 = vpop.f32.mrf.mxu0
        %v2602 = vadd.f32 0.0, %v2601
        %2603 = vmatmul.f32.gmra.mxu0 %v2489
        %v2604 = vpop.f32.mrf.mxu0
        %v2605 = vadd.f32 0.0, %v2604
        %2606 = vmatmul.f32.gmra.mxu0 %v2492
        %v2607 = vpop.f32.mrf.mxu0
        %v2608 = vadd.f32 0.0, %v2607
        %2609 = vmatmul.f32.gmra.mxu0 %v2495
        %v2610 = vpop.f32.mrf.mxu0
        %v2611 = vadd.f32 0.0, %v2610
        %2612 = vmatmul.f32.gmra.mxu0 %v2498
        %v2613 = vpop.f32.mrf.mxu0
        %v2614 = vadd.f32 0.0, %v2613
        %2615 = vmatmul.f32.gmra.mxu0 %v2501
        %v2616 = vpop.f32.mrf.mxu0
        %v2617 = vadd.f32 0.0, %v2616
        %2618 = vmatmul.f32.gmra.mxu0 %v2504
        %v2619 = vpop.f32.mrf.mxu0
        %v2620 = vadd.f32 0.0, %v2619
        %2621 = vmatmul.f32.gmra.mxu0 %v2507
        %v2622 = vpop.f32.mrf.mxu0
        %v2623 = vadd.f32 0.0, %v2622
        %2624 = vmatmul.f32.gmra.mxu0 %v2510
        %v2625 = vpop.f32.mrf.mxu0
        %v2626 = vadd.f32 0.0, %v2625
        %2627 = vmatmul.f32.gmra.mxu0 %v2513
        %v2628 = vpop.f32.mrf.mxu0
        %v2629 = vadd.f32 0.0, %v2628
        %2630 = vmatmul.f32.gmra.mxu0 %v2516
        %v2631 = vpop.f32.mrf.mxu0
        %v2632 = vadd.f32 0.0, %v2631
        %2633 = vmatmul.f32.gmra.mxu0 %v2519
        %v2634 = vpop.f32.mrf.mxu0
        %v2635 = vadd.f32 0.0, %v2634
        %2636 = vmatmul.f32.gmra.mxu0 %v2522
        %v2637 = vpop.f32.mrf.mxu0
        %v2638 = vadd.f32 0.0, %v2637
        %2639 = vmatmul.f32.gmra.mxu0 %v2525
        %v2640 = vpop.f32.mrf.mxu0
        %v2641 = vadd.f32 0.0, %v2640
        %2642 = vmatmul.f32.gmra.mxu0 %v2528
        %v2643 = vpop.f32.mrf.mxu0
        %v2644 = vadd.f32 0.0, %v2643
        %2645 = vmatmul.f32.gmra.mxu0 %v2531
        %v2646 = vpop.f32.mrf.mxu0
        %v2647 = vadd.f32 0.0, %v2646
        %2648 = vmatmul.f32.gmra.mxu0 %v2534
        %v2649 = vpop.f32.mrf.mxu0
        %v2650 = vadd.f32 0.0, %v2649
        %2651 = vmatmul.f32.gmra.mxu0 %v2537
        %v2652 = vpop.f32.mrf.mxu0
        %v2653 = vadd.f32 0.0, %v2652
        %2654 = vmatmul.f32.gmra.mxu0 %v2540
        %v2655 = vpop.f32.mrf.mxu0
        %v2656 = vadd.f32 0.0, %v2655
        %2657 = vmatmul.f32.gmra.mxu0 %v2543
        %v2658 = vpop.f32.mrf.mxu0
        %v2659 = vadd.f32 0.0, %v2658
        %2660 = vmatmul.f32.gmra.mxu0 %v2546
        %v2661 = vpop.f32.mrf.mxu0
        %v2662 = vadd.f32 0.0, %v2661
        %2663 = vmatmul.f32.gmra.mxu0 %v2549
        %v2664 = vpop.f32.mrf.mxu0
        %v2665 = vadd.f32 0.0, %v2664
        %2666 = vmatmul.f32.gmra.mxu0 %v2552
        %v2667 = vpop.f32.mrf.mxu0
        %v2668 = vadd.f32 0.0, %v2667
        %2669 = vmatmul.f32.gmra.mxu0 %v2555
        %v2670 = vpop.f32.mrf.mxu0
        %v2671 = vadd.f32 0.0, %v2670
        %2672 = vmatmul.f32.gmra.mxu0 %v2558
        %v2673 = vpop.f32.mrf.mxu0
        %v2674 = vadd.f32 0.0, %v2673
        %2675 = vmatmul.f32.gmra.mxu0 %v2561
        %v2676 = vpop.f32.mrf.mxu0
        %v2677 = vadd.f32 0.0, %v2676
        %2678 = vmatmul.f32.gmra.mxu0 %v2564
        %v2679 = vpop.f32.mrf.mxu0
        %v2680 = vadd.f32 0.0, %v2679
        %2681 = vmatmul.f32.gmra.mxu0 %v2567
        %v2682 = vpop.f32.mrf.mxu0
        %v2683 = vadd.f32 0.0, %v2682
        %2684 = vdwg.mxu0
        %v2685 = vadd.f32 %v2407, %v2590
        %v2686 = vadd.f32 %v2408, %v2593
        %v2687 = vadd.f32 %v2409, %v2596
        %v2688 = vadd.f32 %v2410, %v2599
        %v2689 = vadd.f32 %v2411, %v2602
        %v2690 = vadd.f32 %v2412, %v2605
        %v2691 = vadd.f32 %v2413, %v2608
        %v2692 = vadd.f32 %v2414, %v2611
        %v2693 = vadd.f32 %v2415, %v2614
        %v2694 = vadd.f32 %v2416, %v2617
        %v2695 = vadd.f32 %v2417, %v2620
        %v2696 = vadd.f32 %v2418, %v2623
        %v2697 = vadd.f32 %v2419, %v2626
        %v2698 = vadd.f32 %v2420, %v2629
        %v2699 = vadd.f32 %v2421, %v2632
        %v2700 = vadd.f32 %v2422, %v2635
        %v2701 = vadd.f32 %v2423, %v2638
        %v2702 = vadd.f32 %v2424, %v2641
        %v2703 = vadd.f32 %v2425, %v2644
        %v2704 = vadd.f32 %v2426, %v2647
        %v2705 = vadd.f32 %v2427, %v2650
        %v2706 = vadd.f32 %v2428, %v2653
        %v2707 = vadd.f32 %v2429, %v2656
        %v2708 = vadd.f32 %v2430, %v2659
        %v2709 = vadd.f32 %v2431, %v2662
        %v2710 = vadd.f32 %v2432, %v2665
        %v2711 = vadd.f32 %v2433, %v2668
        %v2712 = vadd.f32 %v2434, %v2671
        %v2713 = vadd.f32 %v2435, %v2674
        %v2714 = vadd.f32 %v2436, %v2677
        %v2715 = vadd.f32 %v2437, %v2680
        %v2716 = vadd.f32 %v2438, %v2683
        %v2717 = vld [vmem:[%s2] sm:$0x1]
        %v2719 = vperm.slane %v2717, 0
        %v2721 = vadd.f32 %v2685, %v2719
        %v2722 = vadd.f32 %v2686, %v2719
        %v2723 = vadd.f32 %v2687, %v2719
        %v2724 = vadd.f32 %v2688, %v2719
        %v2725 = vadd.f32 %v2689, %v2719
        %v2726 = vadd.f32 %v2690, %v2719
        %v2727 = vadd.f32 %v2691, %v2719
        %v2728 = vadd.f32 %v2692, %v2719
        %v2729 = vadd.f32 %v2693, %v2719
        %v2730 = vadd.f32 %v2694, %v2719
        %v2731 = vadd.f32 %v2695, %v2719
        %v2732 = vadd.f32 %v2696, %v2719
        %v2733 = vadd.f32 %v2697, %v2719
        %v2734 = vadd.f32 %v2698, %v2719
        %v2735 = vadd.f32 %v2699, %v2719
        %v2736 = vadd.f32 %v2700, %v2719
        %v2737 = vadd.f32 %v2701, %v2719
        %v2738 = vadd.f32 %v2702, %v2719
        %v2739 = vadd.f32 %v2703, %v2719
        %v2740 = vadd.f32 %v2704, %v2719
        %v2741 = vadd.f32 %v2705, %v2719
        %v2742 = vadd.f32 %v2706, %v2719
        %v2743 = vadd.f32 %v2707, %v2719
        %v2744 = vadd.f32 %v2708, %v2719
        %v2745 = vadd.f32 %v2709, %v2719
        %v2746 = vadd.f32 %v2710, %v2719
        %v2747 = vadd.f32 %v2711, %v2719
        %v2748 = vadd.f32 %v2712, %v2719
        %v2749 = vadd.f32 %v2713, %v2719
        %v2750 = vadd.f32 %v2714, %v2719
        %v2751 = vadd.f32 %v2715, %v2719
        %v2752 = vadd.f32 %v2716, %v2719
        %v2753 = vmax.f32 %v2721, 0.0
        %v2754 = vmax.f32 %v2722, 0.0
        %v2755 = vmax.f32 %v2723, 0.0
        %v2756 = vmax.f32 %v2724, 0.0
        %v2757 = vmax.f32 %v2725, 0.0
        %v2758 = vmax.f32 %v2726, 0.0
        %v2759 = vmax.f32 %v2727, 0.0
        %v2760 = vmax.f32 %v2728, 0.0
        %v2761 = vmax.f32 %v2729, 0.0
        %v2762 = vmax.f32 %v2730, 0.0
        %v2763 = vmax.f32 %v2731, 0.0
        %v2764 = vmax.f32 %v2732, 0.0
        %v2765 = vmax.f32 %v2733, 0.0
        %v2766 = vmax.f32 %v2734, 0.0
        %v2767 = vmax.f32 %v2735, 0.0
        %v2768 = vmax.f32 %v2736, 0.0
        %v2769 = vmax.f32 %v2737, 0.0
        %v2770 = vmax.f32 %v2738, 0.0
        %v2771 = vmax.f32 %v2739, 0.0
        %v2772 = vmax.f32 %v2740, 0.0
        %v2773 = vmax.f32 %v2741, 0.0
        %v2774 = vmax.f32 %v2742, 0.0
        %v2775 = vmax.f32 %v2743, 0.0
        %v2776 = vmax.f32 %v2744, 0.0
        %v2777 = vmax.f32 %v2745, 0.0
        %v2778 = vmax.f32 %v2746, 0.0
        %v2779 = vmax.f32 %v2747, 0.0
        %v2780 = vmax.f32 %v2748, 0.0
        %v2781 = vmax.f32 %v2749, 0.0
        %v2782 = vmax.f32 %v2750, 0.0
        %v2783 = vmax.f32 %v2751, 0.0
        %v2784 = vmax.f32 %v2752, 0.0
        %vm2785 = vcmask 130048
        %2786 = vst.msk [vmem:[#allocation2] sm:$0xff] %vm2785, 0.0
        %2787 = vst.msk [vmem:[#allocation2 + $0x8] sm:$0xff] %vm2785, 0.0
        %vm2788 = vcmask 123904
        %2789 = vst.msk [vmem:[#allocation2 + $0x10] sm:$0x3] %vm2788, 0.0
        %2790 = vst.msk [vmem:[#allocation2 + $0x18] sm:$0xff] %vm2785, 0.0
        %2791 = vst.msk [vmem:[#allocation2 + $0x20] sm:$0xff] %vm2785, 0.0
        %2792 = vst.msk [vmem:[#allocation2 + $0x28] sm:$0x3] %vm2788, 0.0
        %2793 = vst.msk [vmem:[#allocation2 + $0x30] sm:$0xff] %vm2785, 0.0
        %2794 = vst.msk [vmem:[#allocation2 + $0x38] sm:$0xff] %vm2785, 0.0
        %2795 = vst.msk [vmem:[#allocation2 + $0x40] sm:$0x3] %vm2788, 0.0
        %2796 = vst.msk [vmem:[#allocation2 + $0x48] sm:$0xff] %vm2785, 0.0
        %2797 = vst.msk [vmem:[#allocation2 + $0x50] sm:$0xff] %vm2785, 0.0
        %2798 = vst.msk [vmem:[#allocation2 + $0x58] sm:$0x3] %vm2788, 0.0
        %2799 = vst.msk [vmem:[#allocation2 + $0x60] sm:$0xff] %vm2785, 0.0
        %2800 = vst.msk [vmem:[#allocation2 + $0x68] sm:$0xff] %vm2785, 0.0
        %2801 = vst.msk [vmem:[#allocation2 + $0x70] sm:$0x3] %vm2788, 0.0
        %2802 = vst.msk [vmem:[#allocation2 + $0x78] sm:$0xff] %vm2785, 0.0
        %2803 = vst.msk [vmem:[#allocation2 + $0x80] sm:$0xff] %vm2785, 0.0
        %2804 = vst.msk [vmem:[#allocation2 + $0x88] sm:$0x3] %vm2788, 0.0
        %2805 = vst.msk [vmem:[#allocation2 + $0x90] sm:$0xff] %vm2785, 0.0
        %2806 = vst.msk [vmem:[#allocation2 + $0x98] sm:$0xff] %vm2785, 0.0
        %2807 = vst.msk [vmem:[#allocation2 + $0xa0] sm:$0x3] %vm2788, 0.0
        %2808 = vst.msk [vmem:[#allocation2 + $0xa8] sm:$0xff] %vm2785, 0.0
        %2809 = vst.msk [vmem:[#allocation2 + $0xb0] sm:$0xff] %vm2785, 0.0
        %2810 = vst.msk [vmem:[#allocation2 + $0xb8] sm:$0x3] %vm2788, 0.0
        %2811 = vst.msk [vmem:[#allocation2 + $0xc0] sm:$0xff] %vm2785, 0.0
        %2812 = vst.msk [vmem:[#allocation2 + $0xc8] sm:$0xff] %vm2785, 0.0
        %2813 = vst.msk [vmem:[#allocation2 + $0xd0] sm:$0x3] %vm2788, 0.0
        %2814 = vst.msk [vmem:[#allocation2 + $0xd8] sm:$0xff] %vm2785, 0.0
        %2815 = vst.msk [vmem:[#allocation2 + $0xe0] sm:$0xff] %vm2785, 0.0
        %2816 = vst.msk [vmem:[#allocation2 + $0xe8] sm:$0x3] %vm2788, 0.0
        %2817 = vst.msk [vmem:[#allocation2 + $0xf0] sm:$0xff] %vm2785, 0.0
        %2818 = vst.msk [vmem:[#allocation2 + $0xf8] sm:$0xff] %vm2785, 0.0
        %2819 = vst.msk [vmem:[#allocation2 + $0x100] sm:$0x3] %vm2788, 0.0
        %2820 = vst.msk [vmem:[#allocation2 + $0x108] sm:$0xff] %vm2785, 0.0
        %2821 = vst.msk [vmem:[#allocation2 + $0x110] sm:$0xff] %vm2785, 0.0
        %2822 = vst.msk [vmem:[#allocation2 + $0x118] sm:$0x3] %vm2788, 0.0
        %2823 = vst.msk [vmem:[#allocation2 + $0x120] sm:$0xff] %vm2785, 0.0
        %2824 = vst.msk [vmem:[#allocation2 + $0x128] sm:$0xff] %vm2785, 0.0
        %2825 = vst.msk [vmem:[#allocation2 + $0x130] sm:$0x3] %vm2788, 0.0
        %2826 = vst.msk [vmem:[#allocation2 + $0x138] sm:$0xff] %vm2785, 0.0
        %2827 = vst.msk [vmem:[#allocation2 + $0x140] sm:$0xff] %vm2785, 0.0
        %2828 = vst.msk [vmem:[#allocation2 + $0x148] sm:$0x3] %vm2788, 0.0
        %2829 = vst.msk [vmem:[#allocation2 + $0x150] sm:$0xff] %vm2785, 0.0
        %2830 = vst.msk [vmem:[#allocation2 + $0x158] sm:$0xff] %vm2785, 0.0
        %2831 = vst.msk [vmem:[#allocation2 + $0x160] sm:$0x3] %vm2788, 0.0
        %2832 = vst.msk [vmem:[#allocation2 + $0x168] sm:$0xff] %vm2785, 0.0
        %2833 = vst.msk [vmem:[#allocation2 + $0x170] sm:$0xff] %vm2785, 0.0
        %2834 = vst.msk [vmem:[#allocation2 + $0x178] sm:$0x3] %vm2788, 0.0
        %2835 = vst.msk [vmem:[#allocation2 + $0x180] sm:$0xff] %vm2785, 0.0
        %2836 = vst.msk [vmem:[#allocation2 + $0x188] sm:$0xff] %vm2785, 0.0
        %2837 = vst.msk [vmem:[#allocation2 + $0x190] sm:$0x3] %vm2788, 0.0
        %2838 = vst.msk [vmem:[#allocation2 + $0x198] sm:$0xff] %vm2785, 0.0
        %2839 = vst.msk [vmem:[#allocation2 + $0x1a0] sm:$0xff] %vm2785, 0.0
        %2840 = vst.msk [vmem:[#allocation2 + $0x1a8] sm:$0x3] %vm2788, 0.0
        %s2841 = scalar_lea.vmem [#allocation2], 24
        %2842 = vst.msk [vmem:[%s2841 + $0x1] sm:$0xff] %vm2785, %v2753
        %2843 = vst.msk [vmem:[%s2841 + $0x9] sm:$0xff] %vm2785, %v2754
        %2844 = vst.msk [vmem:[%s2841 + $0x19] sm:$0xff] %vm2785, %v2755
        %2845 = vst.msk [vmem:[%s2841 + $0x21] sm:$0xff] %vm2785, %v2756
        %2846 = vst.msk [vmem:[%s2841 + $0x31] sm:$0xff] %vm2785, %v2757
        %2847 = vst.msk [vmem:[%s2841 + $0x39] sm:$0xff] %vm2785, %v2758
        %2848 = vst.msk [vmem:[%s2841 + $0x49] sm:$0xff] %vm2785, %v2759
        %2849 = vst.msk [vmem:[%s2841 + $0x51] sm:$0xff] %vm2785, %v2760
        %2850 = vst.msk [vmem:[%s2841 + $0x61] sm:$0xff] %vm2785, %v2761
        %2851 = vst.msk [vmem:[%s2841 + $0x69] sm:$0xff] %vm2785, %v2762
        %2852 = vst.msk [vmem:[%s2841 + $0x79] sm:$0xff] %vm2785, %v2763
        %2853 = vst.msk [vmem:[%s2841 + $0x81] sm:$0xff] %vm2785, %v2764
        %2854 = vst.msk [vmem:[%s2841 + $0x91] sm:$0xff] %vm2785, %v2765
        %2855 = vst.msk [vmem:[%s2841 + $0x99] sm:$0xff] %vm2785, %v2766
        %2856 = vst.msk [vmem:[%s2841 + $0xa9] sm:$0xff] %vm2785, %v2767
        %2857 = vst.msk [vmem:[%s2841 + $0xb1] sm:$0xff] %vm2785, %v2768
        %2858 = vst.msk [vmem:[%s2841 + $0xc1] sm:$0xff] %vm2785, %v2769
        %2859 = vst.msk [vmem:[%s2841 + $0xc9] sm:$0xff] %vm2785, %v2770
        %2860 = vst.msk [vmem:[%s2841 + $0xd9] sm:$0xff] %vm2785, %v2771
        %2861 = vst.msk [vmem:[%s2841 + $0xe1] sm:$0xff] %vm2785, %v2772
        %2862 = vst.msk [vmem:[%s2841 + $0xf1] sm:$0xff] %vm2785, %v2773
        %2863 = vst.msk [vmem:[%s2841 + $0xf9] sm:$0xff] %vm2785, %v2774
        %2864 = vst.msk [vmem:[%s2841 + $0x109] sm:$0xff] %vm2785, %v2775
        %2865 = vst.msk [vmem:[%s2841 + $0x111] sm:$0xff] %vm2785, %v2776
        %2866 = vst.msk [vmem:[%s2841 + $0x121] sm:$0xff] %vm2785, %v2777
        %2867 = vst.msk [vmem:[%s2841 + $0x129] sm:$0xff] %vm2785, %v2778
        %2868 = vst.msk [vmem:[%s2841 + $0x139] sm:$0xff] %vm2785, %v2779
        %2869 = vst.msk [vmem:[%s2841 + $0x141] sm:$0xff] %vm2785, %v2780
        %2870 = vst.msk [vmem:[%s2841 + $0x151] sm:$0xff] %vm2785, %v2781
        %2871 = vst.msk [vmem:[%s2841 + $0x159] sm:$0xff] %vm2785, %v2782
        %2872 = vst.msk [vmem:[%s2841 + $0x169] sm:$0xff] %vm2785, %v2783
        %2873 = vst.msk [vmem:[%s2841 + $0x171] sm:$0xff] %vm2785, %v2784
        %v2874 = vld [vmem:[#allocation2] sm:$0xff]
        %v2875 = vld [vmem:[#allocation2 + $0x8] sm:$0xff]
        %v2876 = vld [vmem:[#allocation2 + $0x18] sm:$0xff]
        %v2877 = vld [vmem:[#allocation2 + $0x20] sm:$0xff]
        %v2878 = vld [vmem:[#allocation2 + $0x30] sm:$0xff]
        %v2879 = vld [vmem:[#allocation2 + $0x38] sm:$0xff]
        %v2880 = vld [vmem:[#allocation2 + $0x48] sm:$0xff]
        %v2881 = vld [vmem:[#allocation2 + $0x50] sm:$0xff]
        %v2882 = vld [vmem:[#allocation2 + $0x60] sm:$0xff]
        %v2883 = vld [vmem:[#allocation2 + $0x68] sm:$0xff]
        %v2884 = vld [vmem:[#allocation2 + $0x78] sm:$0xff]
        %v2885 = vld [vmem:[#allocation2 + $0x80] sm:$0xff]
        %v2886 = vld [vmem:[#allocation2 + $0x90] sm:$0xff]
        %v2887 = vld [vmem:[#allocation2 + $0x98] sm:$0xff]
        %v2888 = vld [vmem:[#allocation2 + $0xa8] sm:$0xff]
        %v2889 = vld [vmem:[#allocation2 + $0xb0] sm:$0xff]
        %v2890 = vld [vmem:[#allocation2 + $0xc0] sm:$0xff]
        %v2891 = vld [vmem:[#allocation2 + $0xc8] sm:$0xff]
        %v2892 = vld [vmem:[#allocation2 + $0xd8] sm:$0xff]
        %v2893 = vld [vmem:[#allocation2 + $0xe0] sm:$0xff]
        %v2894 = vld [vmem:[#allocation2 + $0xf0] sm:$0xff]
        %v2895 = vld [vmem:[#allocation2 + $0xf8] sm:$0xff]
        %v2896 = vld [vmem:[#allocation2 + $0x108] sm:$0xff]
        %v2897 = vld [vmem:[#allocation2 + $0x110] sm:$0xff]
        %v2898 = vld [vmem:[#allocation2 + $0x120] sm:$0xff]
        %v2899 = vld [vmem:[#allocation2 + $0x128] sm:$0xff]
        %v2900 = vld [vmem:[#allocation2 + $0x138] sm:$0xff]
        %v2901 = vld [vmem:[#allocation2 + $0x140] sm:$0xff]
        %v2902 = vld [vmem:[#allocation2 + $0x150] sm:$0xff]
        %v2903 = vld [vmem:[#allocation2 + $0x158] sm:$0xff]
        %v2904 = vld [vmem:[#allocation2 + $0x168] sm:$0xff]
        %v2905 = vld [vmem:[#allocation2 + $0x170] sm:$0xff]
        %v2906 = vld [vmem:[%s3] sm:$0xff]
        %v2907 = vld [vmem:[%s3 + $0x8] sm:$0xff]
        %v2908 = vld [vmem:[#allocation2 + $0x1] sm:$0xff]
        %v2909 = vld [vmem:[#allocation2 + $0x9] sm:$0xff]
        %v2910 = vld [vmem:[#allocation2 + $0x19] sm:$0xff]
        %v2911 = vld [vmem:[#allocation2 + $0x21] sm:$0xff]
        %v2912 = vld [vmem:[#allocation2 + $0x31] sm:$0xff]
        %v2913 = vld [vmem:[#allocation2 + $0x39] sm:$0xff]
        %v2914 = vld [vmem:[#allocation2 + $0x49] sm:$0xff]
        %v2915 = vld [vmem:[#allocation2 + $0x51] sm:$0xff]
        %v2916 = vld [vmem:[#allocation2 + $0x61] sm:$0xff]
        %v2917 = vld [vmem:[#allocation2 + $0x69] sm:$0xff]
        %v2918 = vld [vmem:[#allocation2 + $0x79] sm:$0xff]
        %v2919 = vld [vmem:[#allocation2 + $0x81] sm:$0xff]
        %v2920 = vld [vmem:[#allocation2 + $0x91] sm:$0xff]
        %v2921 = vld [vmem:[#allocation2 + $0x99] sm:$0xff]
        %v2922 = vld [vmem:[#allocation2 + $0xa9] sm:$0xff]
        %v2923 = vld [vmem:[#allocation2 + $0xb1] sm:$0xff]
        %v2924 = vld [vmem:[#allocation2 + $0xc1] sm:$0xff]
        %v2925 = vld [vmem:[#allocation2 + $0xc9] sm:$0xff]
        %v2926 = vld [vmem:[#allocation2 + $0xd9] sm:$0xff]
        %v2927 = vld [vmem:[#allocation2 + $0xe1] sm:$0xff]
        %v2928 = vld [vmem:[#allocation2 + $0xf1] sm:$0xff]
        %v2929 = vld [vmem:[#allocation2 + $0xf9] sm:$0xff]
        %v2930 = vld [vmem:[#allocation2 + $0x109] sm:$0xff]
        %v2931 = vld [vmem:[#allocation2 + $0x111] sm:$0xff]
        %v2932 = vld [vmem:[#allocation2 + $0x121] sm:$0xff]
        %v2933 = vld [vmem:[#allocation2 + $0x129] sm:$0xff]
        %v2934 = vld [vmem:[#allocation2 + $0x139] sm:$0xff]
        %v2935 = vld [vmem:[#allocation2 + $0x141] sm:$0xff]
        %v2936 = vld [vmem:[#allocation2 + $0x151] sm:$0xff]
        %v2937 = vld [vmem:[#allocation2 + $0x159] sm:$0xff]
        %v2938 = vld [vmem:[#allocation2 + $0x169] sm:$0xff]
        %v2939 = vld [vmem:[#allocation2 + $0x171] sm:$0xff]
        %s2940 = scalar_lea.vmem %s3, 16
        %v2941 = vld [vmem:[%s2940] sm:$0xff]
        %v2942 = vld [vmem:[%s2940 + $0x8] sm:$0xff]
        %v2944 = vsel %vm2785, %v2908, 0
        %v2947 = vsel %vm2785, %v2909, 0
        %v2950 = vsel %vm2785, %v2910, 0
        %v2953 = vsel %vm2785, %v2911, 0
        %v2956 = vsel %vm2785, %v2912, 0
        %v2959 = vsel %vm2785, %v2913, 0
        %v2962 = vsel %vm2785, %v2914, 0
        %v2965 = vsel %vm2785, %v2915, 0
        %v2968 = vsel %vm2785, %v2916, 0
        %v2971 = vsel %vm2785, %v2917, 0
        %v2974 = vsel %vm2785, %v2918, 0
        %v2977 = vsel %vm2785, %v2919, 0
        %v2980 = vsel %vm2785, %v2920, 0
        %v2983 = vsel %vm2785, %v2921, 0
        %v2986 = vsel %vm2785, %v2922, 0
        %v2989 = vsel %vm2785, %v2923, 0
        %v2992 = vsel %vm2785, %v2924, 0
        %v2995 = vsel %vm2785, %v2925, 0
        %v2998 = vsel %vm2785, %v2926, 0
        %v3001 = vsel %vm2785, %v2927, 0
        %v3004 = vsel %vm2785, %v2928, 0
        %v3007 = vsel %vm2785, %v2929, 0
        %v3010 = vsel %vm2785, %v2930, 0
        %v3013 = vsel %vm2785, %v2931, 0
        %v3016 = vsel %vm2785, %v2932, 0
        %v3019 = vsel %vm2785, %v2933, 0
        %v3022 = vsel %vm2785, %v2934, 0
        %v3025 = vsel %vm2785, %v2935, 0
        %v3028 = vsel %vm2785, %v2936, 0
        %v3031 = vsel %vm2785, %v2937, 0
        %v3034 = vsel %vm2785, %v2938, 0
        %v3037 = vsel %vm2785, %v2939, 0
        %3039 = vmatpush.msra.mxu0 0.0
        %3040 = vmatpush.msra.mxu0 0.0
        %3041 = vmatpush.msra.mxu0 0.0
        %3042 = vmatpush.msra.mxu0 0.0
        %3043 = vmatpush.msra.mxu0 0.0
        %3044 = vmatpush.msra.mxu0 0.0
        %3045 = vmatpush.msra.mxu0 0.0
        %3046 = vmatpush.msra.mxu0 0.0
        %3047 = vmatpush.msra.mxu0 0.0
        %3048 = vmatpush.msra.mxu0 0.0
        %3049 = vmatpush.msra.mxu0 0.0
        %3050 = vmatpush.msra.mxu0 0.0
        %3051 = vmatpush.msra.mxu0 0.0
        %3052 = vmatpush.msra.mxu0 0.0
        %3053 = vmatpush.msra.mxu0 %v2942
        %3054 = vmatpush.msra.mxu0 %v2941
        %3055 = vmatmul.f32.gmra.mxu0 %v2944
        %v3056 = vpop.f32.mrf.mxu0
        %v3057 = vadd.f32 0.0, %v3056
        %3058 = vmatmul.f32.gmra.mxu0 %v2947
        %v3059 = vpop.f32.mrf.mxu0
        %v3060 = vadd.f32 0.0, %v3059
        %3061 = vmatmul.f32.gmra.mxu0 %v2950
        %v3062 = vpop.f32.mrf.mxu0
        %v3063 = vadd.f32 0.0, %v3062
        %3064 = vmatmul.f32.gmra.mxu0 %v2953
        %v3065 = vpop.f32.mrf.mxu0
        %v3066 = vadd.f32 0.0, %v3065
        %3067 = vmatmul.f32.gmra.mxu0 %v2956
        %v3068 = vpop.f32.mrf.mxu0
        %v3069 = vadd.f32 0.0, %v3068
        %3070 = vmatmul.f32.gmra.mxu0 %v2959
        %v3071 = vpop.f32.mrf.mxu0
        %v3072 = vadd.f32 0.0, %v3071
        %3073 = vmatmul.f32.gmra.mxu0 %v2962
        %v3074 = vpop.f32.mrf.mxu0
        %v3075 = vadd.f32 0.0, %v3074
        %3076 = vmatmul.f32.gmra.mxu0 %v2965
        %v3077 = vpop.f32.mrf.mxu0
        %v3078 = vadd.f32 0.0, %v3077
        %3079 = vmatmul.f32.gmra.mxu0 %v2968
        %v3080 = vpop.f32.mrf.mxu0
        %v3081 = vadd.f32 0.0, %v3080
        %3082 = vmatmul.f32.gmra.mxu0 %v2971
        %v3083 = vpop.f32.mrf.mxu0
        %v3084 = vadd.f32 0.0, %v3083
        %3085 = vmatmul.f32.gmra.mxu0 %v2974
        %v3086 = vpop.f32.mrf.mxu0
        %v3087 = vadd.f32 0.0, %v3086
        %3088 = vmatmul.f32.gmra.mxu0 %v2977
        %v3089 = vpop.f32.mrf.mxu0
        %v3090 = vadd.f32 0.0, %v3089
        %3091 = vmatmul.f32.gmra.mxu0 %v2980
        %v3092 = vpop.f32.mrf.mxu0
        %v3093 = vadd.f32 0.0, %v3092
        %3094 = vmatmul.f32.gmra.mxu0 %v2983
        %v3095 = vpop.f32.mrf.mxu0
        %v3096 = vadd.f32 0.0, %v3095
        %3097 = vmatmul.f32.gmra.mxu0 %v2986
        %v3098 = vpop.f32.mrf.mxu0
        %v3099 = vadd.f32 0.0, %v3098
        %3100 = vmatmul.f32.gmra.mxu0 %v2989
        %v3101 = vpop.f32.mrf.mxu0
        %v3102 = vadd.f32 0.0, %v3101
        %3103 = vmatmul.f32.gmra.mxu0 %v2992
        %v3104 = vpop.f32.mrf.mxu0
        %v3105 = vadd.f32 0.0, %v3104
        %3106 = vmatmul.f32.gmra.mxu0 %v2995
        %v3107 = vpop.f32.mrf.mxu0
        %v3108 = vadd.f32 0.0, %v3107
        %3109 = vmatmul.f32.gmra.mxu0 %v2998
        %v3110 = vpop.f32.mrf.mxu0
        %v3111 = vadd.f32 0.0, %v3110
        %3112 = vmatmul.f32.gmra.mxu0 %v3001
        %v3113 = vpop.f32.mrf.mxu0
        %v3114 = vadd.f32 0.0, %v3113
        %3115 = vmatmul.f32.gmra.mxu0 %v3004
        %v3116 = vpop.f32.mrf.mxu0
        %v3117 = vadd.f32 0.0, %v3116
        %3118 = vmatmul.f32.gmra.mxu0 %v3007
        %v3119 = vpop.f32.mrf.mxu0
        %v3120 = vadd.f32 0.0, %v3119
        %3121 = vmatmul.f32.gmra.mxu0 %v3010
        %v3122 = vpop.f32.mrf.mxu0
        %v3123 = vadd.f32 0.0, %v3122
        %3124 = vmatmul.f32.gmra.mxu0 %v3013
        %v3125 = vpop.f32.mrf.mxu0
        %v3126 = vadd.f32 0.0, %v3125
        %3127 = vmatmul.f32.gmra.mxu0 %v3016
        %v3128 = vpop.f32.mrf.mxu0
        %v3129 = vadd.f32 0.0, %v3128
        %3130 = vmatmul.f32.gmra.mxu0 %v3019
        %v3131 = vpop.f32.mrf.mxu0
        %v3132 = vadd.f32 0.0, %v3131
        %3133 = vmatmul.f32.gmra.mxu0 %v3022
        %v3134 = vpop.f32.mrf.mxu0
        %v3135 = vadd.f32 0.0, %v3134
        %3136 = vmatmul.f32.gmra.mxu0 %v3025
        %v3137 = vpop.f32.mrf.mxu0
        %v3138 = vadd.f32 0.0, %v3137
        %3139 = vmatmul.f32.gmra.mxu0 %v3028
        %v3140 = vpop.f32.mrf.mxu0
        %v3141 = vadd.f32 0.0, %v3140
        %3142 = vmatmul.f32.gmra.mxu0 %v3031
        %v3143 = vpop.f32.mrf.mxu0
        %v3144 = vadd.f32 0.0, %v3143
        %3145 = vmatmul.f32.gmra.mxu0 %v3034
        %v3146 = vpop.f32.mrf.mxu0
        %v3147 = vadd.f32 0.0, %v3146
        %3148 = vmatmul.f32.gmra.mxu0 %v3037
        %v3149 = vpop.f32.mrf.mxu0
        %v3150 = vadd.f32 0.0, %v3149
        %3151 = vdwg.mxu0
        %v3153 = vsel %vm2785, %v2874, 0
        %v3156 = vsel %vm2785, %v2875, 0
        %v3159 = vsel %vm2785, %v2876, 0
        %v3162 = vsel %vm2785, %v2877, 0
        %v3165 = vsel %vm2785, %v2878, 0
        %v3168 = vsel %vm2785, %v2879, 0
        %v3171 = vsel %vm2785, %v2880, 0
        %v3174 = vsel %vm2785, %v2881, 0
        %v3177 = vsel %vm2785, %v2882, 0
        %v3180 = vsel %vm2785, %v2883, 0
        %v3183 = vsel %vm2785, %v2884, 0
        %v3186 = vsel %vm2785, %v2885, 0
        %v3189 = vsel %vm2785, %v2886, 0
        %v3192 = vsel %vm2785, %v2887, 0
        %v3195 = vsel %vm2785, %v2888, 0
        %v3198 = vsel %vm2785, %v2889, 0
        %v3201 = vsel %vm2785, %v2890, 0
        %v3204 = vsel %vm2785, %v2891, 0
        %v3207 = vsel %vm2785, %v2892, 0
        %v3210 = vsel %vm2785, %v2893, 0
        %v3213 = vsel %vm2785, %v2894, 0
        %v3216 = vsel %vm2785, %v2895, 0
        %v3219 = vsel %vm2785, %v2896, 0
        %v3222 = vsel %vm2785, %v2897, 0
        %v3225 = vsel %vm2785, %v2898, 0
        %v3228 = vsel %vm2785, %v2899, 0
        %v3231 = vsel %vm2785, %v2900, 0
        %v3234 = vsel %vm2785, %v2901, 0
        %v3237 = vsel %vm2785, %v2902, 0
        %v3240 = vsel %vm2785, %v2903, 0
        %v3243 = vsel %vm2785, %v2904, 0
        %v3246 = vsel %vm2785, %v2905, 0
        %3248 = vmatpush.msra.mxu0 0.0
        %3249 = vmatpush.msra.mxu0 0.0
        %3250 = vmatpush.msra.mxu0 0.0
        %3251 = vmatpush.msra.mxu0 0.0
        %3252 = vmatpush.msra.mxu0 0.0
        %3253 = vmatpush.msra.mxu0 0.0
        %3254 = vmatpush.msra.mxu0 0.0
        %3255 = vmatpush.msra.mxu0 0.0
        %3256 = vmatpush.msra.mxu0 0.0
        %3257 = vmatpush.msra.mxu0 0.0
        %3258 = vmatpush.msra.mxu0 0.0
        %3259 = vmatpush.msra.mxu0 0.0
        %3260 = vmatpush.msra.mxu0 0.0
        %3261 = vmatpush.msra.mxu0 0.0
        %3262 = vmatpush.msra.mxu0 %v2907
        %3263 = vmatpush.msra.mxu0 %v2906
        %3264 = vmatmul.f32.gmra.mxu0 %v3153
        %v3265 = vpop.f32.mrf.mxu0
        %v3266 = vadd.f32 %v3057, %v3265
        %3267 = vmatmul.f32.gmra.mxu0 %v3156
        %v3268 = vpop.f32.mrf.mxu0
        %v3269 = vadd.f32 %v3060, %v3268
        %3270 = vmatmul.f32.gmra.mxu0 %v3159
        %v3271 = vpop.f32.mrf.mxu0
        %v3272 = vadd.f32 %v3063, %v3271
        %3273 = vmatmul.f32.gmra.mxu0 %v3162
        %v3274 = vpop.f32.mrf.mxu0
        %v3275 = vadd.f32 %v3066, %v3274
        %3276 = vmatmul.f32.gmra.mxu0 %v3165
        %v3277 = vpop.f32.mrf.mxu0
        %v3278 = vadd.f32 %v3069, %v3277
        %3279 = vmatmul.f32.gmra.mxu0 %v3168
        %v3280 = vpop.f32.mrf.mxu0
        %v3281 = vadd.f32 %v3072, %v3280
        %3282 = vmatmul.f32.gmra.mxu0 %v3171
        %v3283 = vpop.f32.mrf.mxu0
        %v3284 = vadd.f32 %v3075, %v3283
        %3285 = vmatmul.f32.gmra.mxu0 %v3174
        %v3286 = vpop.f32.mrf.mxu0
        %v3287 = vadd.f32 %v3078, %v3286
        %3288 = vmatmul.f32.gmra.mxu0 %v3177
        %v3289 = vpop.f32.mrf.mxu0
        %v3290 = vadd.f32 %v3081, %v3289
        %3291 = vmatmul.f32.gmra.mxu0 %v3180
        %v3292 = vpop.f32.mrf.mxu0
        %v3293 = vadd.f32 %v3084, %v3292
        %3294 = vmatmul.f32.gmra.mxu0 %v3183
        %v3295 = vpop.f32.mrf.mxu0
        %v3296 = vadd.f32 %v3087, %v3295
        %3297 = vmatmul.f32.gmra.mxu0 %v3186
        %v3298 = vpop.f32.mrf.mxu0
        %v3299 = vadd.f32 %v3090, %v3298
        %3300 = vmatmul.f32.gmra.mxu0 %v3189
        %v3301 = vpop.f32.mrf.mxu0
        %v3302 = vadd.f32 %v3093, %v3301
        %3303 = vmatmul.f32.gmra.mxu0 %v3192
        %v3304 = vpop.f32.mrf.mxu0
        %v3305 = vadd.f32 %v3096, %v3304
        %3306 = vmatmul.f32.gmra.mxu0 %v3195
        %v3307 = vpop.f32.mrf.mxu0
        %v3308 = vadd.f32 %v3099, %v3307
        %3309 = vmatmul.f32.gmra.mxu0 %v3198
        %v3310 = vpop.f32.mrf.mxu0
        %v3311 = vadd.f32 %v3102, %v3310
        %3312 = vmatmul.f32.gmra.mxu0 %v3201
        %v3313 = vpop.f32.mrf.mxu0
        %v3314 = vadd.f32 %v3105, %v3313
        %3315 = vmatmul.f32.gmra.mxu0 %v3204
        %v3316 = vpop.f32.mrf.mxu0
        %v3317 = vadd.f32 %v3108, %v3316
        %3318 = vmatmul.f32.gmra.mxu0 %v3207
        %v3319 = vpop.f32.mrf.mxu0
        %v3320 = vadd.f32 %v3111, %v3319
        %3321 = vmatmul.f32.gmra.mxu0 %v3210
        %v3322 = vpop.f32.mrf.mxu0
        %v3323 = vadd.f32 %v3114, %v3322
        %3324 = vmatmul.f32.gmra.mxu0 %v3213
        %v3325 = vpop.f32.mrf.mxu0
        %v3326 = vadd.f32 %v3117, %v3325
        %3327 = vmatmul.f32.gmra.mxu0 %v3216
        %v3328 = vpop.f32.mrf.mxu0
        %v3329 = vadd.f32 %v3120, %v3328
        %3330 = vmatmul.f32.gmra.mxu0 %v3219
        %v3331 = vpop.f32.mrf.mxu0
        %v3332 = vadd.f32 %v3123, %v3331
        %3333 = vmatmul.f32.gmra.mxu0 %v3222
        %v3334 = vpop.f32.mrf.mxu0
        %v3335 = vadd.f32 %v3126, %v3334
        %3336 = vmatmul.f32.gmra.mxu0 %v3225
        %v3337 = vpop.f32.mrf.mxu0
        %v3338 = vadd.f32 %v3129, %v3337
        %3339 = vmatmul.f32.gmra.mxu0 %v3228
        %v3340 = vpop.f32.mrf.mxu0
        %v3341 = vadd.f32 %v3132, %v3340
        %3342 = vmatmul.f32.gmra.mxu0 %v3231
        %v3343 = vpop.f32.mrf.mxu0
        %v3344 = vadd.f32 %v3135, %v3343
        %3345 = vmatmul.f32.gmra.mxu0 %v3234
        %v3346 = vpop.f32.mrf.mxu0
        %v3347 = vadd.f32 %v3138, %v3346
        %3348 = vmatmul.f32.gmra.mxu0 %v3237
        %v3349 = vpop.f32.mrf.mxu0
        %v3350 = vadd.f32 %v3141, %v3349
        %3351 = vmatmul.f32.gmra.mxu0 %v3240
        %v3352 = vpop.f32.mrf.mxu0
        %v3353 = vadd.f32 %v3144, %v3352
        %3354 = vmatmul.f32.gmra.mxu0 %v3243
        %v3355 = vpop.f32.mrf.mxu0
        %v3356 = vadd.f32 %v3147, %v3355
        %3357 = vmatmul.f32.gmra.mxu0 %v3246
        %v3358 = vpop.f32.mrf.mxu0
        %v3359 = vadd.f32 %v3150, %v3358
        %3360 = vdwg.mxu0
        %v3361 = vld [vmem:[#allocation2 + $0x2] sm:$0xff]
        %v3362 = vld [vmem:[#allocation2 + $0xa] sm:$0xff]
        %v3363 = vld [vmem:[#allocation2 + $0x1a] sm:$0xff]
        %v3364 = vld [vmem:[#allocation2 + $0x22] sm:$0xff]
        %v3365 = vld [vmem:[#allocation2 + $0x32] sm:$0xff]
        %v3366 = vld [vmem:[#allocation2 + $0x3a] sm:$0xff]
        %v3367 = vld [vmem:[#allocation2 + $0x4a] sm:$0xff]
        %v3368 = vld [vmem:[#allocation2 + $0x52] sm:$0xff]
        %v3369 = vld [vmem:[#allocation2 + $0x62] sm:$0xff]
        %v3370 = vld [vmem:[#allocation2 + $0x6a] sm:$0xff]
        %v3371 = vld [vmem:[#allocation2 + $0x7a] sm:$0xff]
        %v3372 = vld [vmem:[#allocation2 + $0x82] sm:$0xff]
        %v3373 = vld [vmem:[#allocation2 + $0x92] sm:$0xff]
        %v3374 = vld [vmem:[#allocation2 + $0x9a] sm:$0xff]
        %v3375 = vld [vmem:[#allocation2 + $0xaa] sm:$0xff]
        %v3376 = vld [vmem:[#allocation2 + $0xb2] sm:$0xff]
        %v3377 = vld [vmem:[#allocation2 + $0xc2] sm:$0xff]
        %v3378 = vld [vmem:[#allocation2 + $0xca] sm:$0xff]
        %v3379 = vld [vmem:[#allocation2 + $0xda] sm:$0xff]
        %v3380 = vld [vmem:[#allocation2 + $0xe2] sm:$0xff]
        %v3381 = vld [vmem:[#allocation2 + $0xf2] sm:$0xff]
        %v3382 = vld [vmem:[#allocation2 + $0xfa] sm:$0xff]
        %v3383 = vld [vmem:[#allocation2 + $0x10a] sm:$0xff]
        %v3384 = vld [vmem:[#allocation2 + $0x112] sm:$0xff]
        %v3385 = vld [vmem:[#allocation2 + $0x122] sm:$0xff]
        %v3386 = vld [vmem:[#allocation2 + $0x12a] sm:$0xff]
        %v3387 = vld [vmem:[#allocation2 + $0x13a] sm:$0xff]
        %v3388 = vld [vmem:[#allocation2 + $0x142] sm:$0xff]
        %v3389 = vld [vmem:[#allocation2 + $0x152] sm:$0xff]
        %v3390 = vld [vmem:[#allocation2 + $0x15a] sm:$0xff]
        %v3391 = vld [vmem:[#allocation2 + $0x16a] sm:$0xff]
        %v3392 = vld [vmem:[#allocation2 + $0x172] sm:$0xff]
        %s3393 = scalar_lea.vmem %s3, 32
        %v3394 = vld [vmem:[%s3393] sm:$0xff]
        %v3395 = vld [vmem:[%s3393 + $0x8] sm:$0xff]
        %v3397 = vsel %vm2785, %v3361, 0
        %v3400 = vsel %vm2785, %v3362, 0
        %v3403 = vsel %vm2785, %v3363, 0
        %v3406 = vsel %vm2785, %v3364, 0
        %v3409 = vsel %vm2785, %v3365, 0
        %v3412 = vsel %vm2785, %v3366, 0
        %v3415 = vsel %vm2785, %v3367, 0
        %v3418 = vsel %vm2785, %v3368, 0
        %v3421 = vsel %vm2785, %v3369, 0
        %v3424 = vsel %vm2785, %v3370, 0
        %v3427 = vsel %vm2785, %v3371, 0
        %v3430 = vsel %vm2785, %v3372, 0
        %v3433 = vsel %vm2785, %v3373, 0
        %v3436 = vsel %vm2785, %v3374, 0
        %v3439 = vsel %vm2785, %v3375, 0
        %v3442 = vsel %vm2785, %v3376, 0
        %v3445 = vsel %vm2785, %v3377, 0
        %v3448 = vsel %vm2785, %v3378, 0
        %v3451 = vsel %vm2785, %v3379, 0
        %v3454 = vsel %vm2785, %v3380, 0
        %v3457 = vsel %vm2785, %v3381, 0
        %v3460 = vsel %vm2785, %v3382, 0
        %v3463 = vsel %vm2785, %v3383, 0
        %v3466 = vsel %vm2785, %v3384, 0
        %v3469 = vsel %vm2785, %v3385, 0
        %v3472 = vsel %vm2785, %v3386, 0
        %v3475 = vsel %vm2785, %v3387, 0
        %v3478 = vsel %vm2785, %v3388, 0
        %v3481 = vsel %vm2785, %v3389, 0
        %v3484 = vsel %vm2785, %v3390, 0
        %v3487 = vsel %vm2785, %v3391, 0
        %v3490 = vsel %vm2785, %v3392, 0
        %3492 = vmatpush.msra.mxu0 0.0
        %3493 = vmatpush.msra.mxu0 0.0
        %3494 = vmatpush.msra.mxu0 0.0
        %3495 = vmatpush.msra.mxu0 0.0
        %3496 = vmatpush.msra.mxu0 0.0
        %3497 = vmatpush.msra.mxu0 0.0
        %3498 = vmatpush.msra.mxu0 0.0
        %3499 = vmatpush.msra.mxu0 0.0
        %3500 = vmatpush.msra.mxu0 0.0
        %3501 = vmatpush.msra.mxu0 0.0
        %3502 = vmatpush.msra.mxu0 0.0
        %3503 = vmatpush.msra.mxu0 0.0
        %3504 = vmatpush.msra.mxu0 0.0
        %3505 = vmatpush.msra.mxu0 0.0
        %3506 = vmatpush.msra.mxu0 %v3395
        %3507 = vmatpush.msra.mxu0 %v3394
        %3508 = vmatmul.f32.gmra.mxu0 %v3397
        %v3509 = vpop.f32.mrf.mxu0
        %v3510 = vadd.f32 0.0, %v3509
        %3511 = vmatmul.f32.gmra.mxu0 %v3400
        %v3512 = vpop.f32.mrf.mxu0
        %v3513 = vadd.f32 0.0, %v3512
        %3514 = vmatmul.f32.gmra.mxu0 %v3403
        %v3515 = vpop.f32.mrf.mxu0
        %v3516 = vadd.f32 0.0, %v3515
        %3517 = vmatmul.f32.gmra.mxu0 %v3406
        %v3518 = vpop.f32.mrf.mxu0
        %v3519 = vadd.f32 0.0, %v3518
        %3520 = vmatmul.f32.gmra.mxu0 %v3409
        %v3521 = vpop.f32.mrf.mxu0
        %v3522 = vadd.f32 0.0, %v3521
        %3523 = vmatmul.f32.gmra.mxu0 %v3412
        %v3524 = vpop.f32.mrf.mxu0
        %v3525 = vadd.f32 0.0, %v3524
        %3526 = vmatmul.f32.gmra.mxu0 %v3415
        %v3527 = vpop.f32.mrf.mxu0
        %v3528 = vadd.f32 0.0, %v3527
        %3529 = vmatmul.f32.gmra.mxu0 %v3418
        %v3530 = vpop.f32.mrf.mxu0
        %v3531 = vadd.f32 0.0, %v3530
        %3532 = vmatmul.f32.gmra.mxu0 %v3421
        %v3533 = vpop.f32.mrf.mxu0
        %v3534 = vadd.f32 0.0, %v3533
        %3535 = vmatmul.f32.gmra.mxu0 %v3424
        %v3536 = vpop.f32.mrf.mxu0
        %v3537 = vadd.f32 0.0, %v3536
        %3538 = vmatmul.f32.gmra.mxu0 %v3427
        %v3539 = vpop.f32.mrf.mxu0
        %v3540 = vadd.f32 0.0, %v3539
        %3541 = vmatmul.f32.gmra.mxu0 %v3430
        %v3542 = vpop.f32.mrf.mxu0
        %v3543 = vadd.f32 0.0, %v3542
        %3544 = vmatmul.f32.gmra.mxu0 %v3433
        %v3545 = vpop.f32.mrf.mxu0
        %v3546 = vadd.f32 0.0, %v3545
        %3547 = vmatmul.f32.gmra.mxu0 %v3436
        %v3548 = vpop.f32.mrf.mxu0
        %v3549 = vadd.f32 0.0, %v3548
        %3550 = vmatmul.f32.gmra.mxu0 %v3439
        %v3551 = vpop.f32.mrf.mxu0
        %v3552 = vadd.f32 0.0, %v3551
        %3553 = vmatmul.f32.gmra.mxu0 %v3442
        %v3554 = vpop.f32.mrf.mxu0
        %v3555 = vadd.f32 0.0, %v3554
        %3556 = vmatmul.f32.gmra.mxu0 %v3445
        %v3557 = vpop.f32.mrf.mxu0
        %v3558 = vadd.f32 0.0, %v3557
        %3559 = vmatmul.f32.gmra.mxu0 %v3448
        %v3560 = vpop.f32.mrf.mxu0
        %v3561 = vadd.f32 0.0, %v3560
        %3562 = vmatmul.f32.gmra.mxu0 %v3451
        %v3563 = vpop.f32.mrf.mxu0
        %v3564 = vadd.f32 0.0, %v3563
        %3565 = vmatmul.f32.gmra.mxu0 %v3454
        %v3566 = vpop.f32.mrf.mxu0
        %v3567 = vadd.f32 0.0, %v3566
        %3568 = vmatmul.f32.gmra.mxu0 %v3457
        %v3569 = vpop.f32.mrf.mxu0
        %v3570 = vadd.f32 0.0, %v3569
        %3571 = vmatmul.f32.gmra.mxu0 %v3460
        %v3572 = vpop.f32.mrf.mxu0
        %v3573 = vadd.f32 0.0, %v3572
        %3574 = vmatmul.f32.gmra.mxu0 %v3463
        %v3575 = vpop.f32.mrf.mxu0
        %v3576 = vadd.f32 0.0, %v3575
        %3577 = vmatmul.f32.gmra.mxu0 %v3466
        %v3578 = vpop.f32.mrf.mxu0
        %v3579 = vadd.f32 0.0, %v3578
        %3580 = vmatmul.f32.gmra.mxu0 %v3469
        %v3581 = vpop.f32.mrf.mxu0
        %v3582 = vadd.f32 0.0, %v3581
        %3583 = vmatmul.f32.gmra.mxu0 %v3472
        %v3584 = vpop.f32.mrf.mxu0
        %v3585 = vadd.f32 0.0, %v3584
        %3586 = vmatmul.f32.gmra.mxu0 %v3475
        %v3587 = vpop.f32.mrf.mxu0
        %v3588 = vadd.f32 0.0, %v3587
        %3589 = vmatmul.f32.gmra.mxu0 %v3478
        %v3590 = vpop.f32.mrf.mxu0
        %v3591 = vadd.f32 0.0, %v3590
        %3592 = vmatmul.f32.gmra.mxu0 %v3481
        %v3593 = vpop.f32.mrf.mxu0
        %v3594 = vadd.f32 0.0, %v3593
        %3595 = vmatmul.f32.gmra.mxu0 %v3484
        %v3596 = vpop.f32.mrf.mxu0
        %v3597 = vadd.f32 0.0, %v3596
        %3598 = vmatmul.f32.gmra.mxu0 %v3487
        %v3599 = vpop.f32.mrf.mxu0
        %v3600 = vadd.f32 0.0, %v3599
        %3601 = vmatmul.f32.gmra.mxu0 %v3490
        %v3602 = vpop.f32.mrf.mxu0
        %v3603 = vadd.f32 0.0, %v3602
        %3604 = vdwg.mxu0
        %v3605 = vadd.f32 %v3266, %v3510
        %v3606 = vadd.f32 %v3269, %v3513
        %v3607 = vadd.f32 %v3272, %v3516
        %v3608 = vadd.f32 %v3275, %v3519
        %v3609 = vadd.f32 %v3278, %v3522
        %v3610 = vadd.f32 %v3281, %v3525
        %v3611 = vadd.f32 %v3284, %v3528
        %v3612 = vadd.f32 %v3287, %v3531
        %v3613 = vadd.f32 %v3290, %v3534
        %v3614 = vadd.f32 %v3293, %v3537
        %v3615 = vadd.f32 %v3296, %v3540
        %v3616 = vadd.f32 %v3299, %v3543
        %v3617 = vadd.f32 %v3302, %v3546
        %v3618 = vadd.f32 %v3305, %v3549
        %v3619 = vadd.f32 %v3308, %v3552
        %v3620 = vadd.f32 %v3311, %v3555
        %v3621 = vadd.f32 %v3314, %v3558
        %v3622 = vadd.f32 %v3317, %v3561
        %v3623 = vadd.f32 %v3320, %v3564
        %v3624 = vadd.f32 %v3323, %v3567
        %v3625 = vadd.f32 %v3326, %v3570
        %v3626 = vadd.f32 %v3329, %v3573
        %v3627 = vadd.f32 %v3332, %v3576
        %v3628 = vadd.f32 %v3335, %v3579
        %v3629 = vadd.f32 %v3338, %v3582
        %v3630 = vadd.f32 %v3341, %v3585
        %v3631 = vadd.f32 %v3344, %v3588
        %v3632 = vadd.f32 %v3347, %v3591
        %v3633 = vadd.f32 %v3350, %v3594
        %v3634 = vadd.f32 %v3353, %v3597
        %v3635 = vadd.f32 %v3356, %v3600
        %v3636 = vadd.f32 %v3359, %v3603
        %v3637 = vld [vmem:[%s2841] sm:$0xff]
        %v3638 = vld [vmem:[%s2841 + $0x8] sm:$0xff]
        %v3639 = vld [vmem:[%s2841 + $0x18] sm:$0xff]
        %v3640 = vld [vmem:[%s2841 + $0x20] sm:$0xff]
        %v3641 = vld [vmem:[%s2841 + $0x30] sm:$0xff]
        %v3642 = vld [vmem:[%s2841 + $0x38] sm:$0xff]
        %v3643 = vld [vmem:[%s2841 + $0x48] sm:$0xff]
        %v3644 = vld [vmem:[%s2841 + $0x50] sm:$0xff]
        %v3645 = vld [vmem:[%s2841 + $0x60] sm:$0xff]
        %v3646 = vld [vmem:[%s2841 + $0x68] sm:$0xff]
        %v3647 = vld [vmem:[%s2841 + $0x78] sm:$0xff]
        %v3648 = vld [vmem:[%s2841 + $0x80] sm:$0xff]
        %v3649 = vld [vmem:[%s2841 + $0x90] sm:$0xff]
        %v3650 = vld [vmem:[%s2841 + $0x98] sm:$0xff]
        %v3651 = vld [vmem:[%s2841 + $0xa8] sm:$0xff]
        %v3652 = vld [vmem:[%s2841 + $0xb0] sm:$0xff]
        %v3653 = vld [vmem:[%s2841 + $0xc0] sm:$0xff]
        %v3654 = vld [vmem:[%s2841 + $0xc8] sm:$0xff]
        %v3655 = vld [vmem:[%s2841 + $0xd8] sm:$0xff]
        %v3656 = vld [vmem:[%s2841 + $0xe0] sm:$0xff]
        %v3657 = vld [vmem:[%s2841 + $0xf0] sm:$0xff]
        %v3658 = vld [vmem:[%s2841 + $0xf8] sm:$0xff]
        %v3659 = vld [vmem:[%s2841 + $0x108] sm:$0xff]
        %v3660 = vld [vmem:[%s2841 + $0x110] sm:$0xff]
        %v3661 = vld [vmem:[%s2841 + $0x120] sm:$0xff]
        %v3662 = vld [vmem:[%s2841 + $0x128] sm:$0xff]
        %v3663 = vld [vmem:[%s2841 + $0x138] sm:$0xff]
        %v3664 = vld [vmem:[%s2841 + $0x140] sm:$0xff]
        %v3665 = vld [vmem:[%s2841 + $0x150] sm:$0xff]
        %v3666 = vld [vmem:[%s2841 + $0x158] sm:$0xff]
        %v3667 = vld [vmem:[%s2841 + $0x168] sm:$0xff]
        %v3668 = vld [vmem:[%s2841 + $0x170] sm:$0xff]
        %s3669 = scalar_lea.vmem %s3, 48
        %v3670 = vld [vmem:[%s3669] sm:$0xff]
        %v3671 = vld [vmem:[%s3669 + $0x8] sm:$0xff]
        %v3673 = vsel %vm2785, %v3637, 0
        %v3676 = vsel %vm2785, %v3638, 0
        %v3679 = vsel %vm2785, %v3639, 0
        %v3682 = vsel %vm2785, %v3640, 0
        %v3685 = vsel %vm2785, %v3641, 0
        %v3688 = vsel %vm2785, %v3642, 0
        %v3691 = vsel %vm2785, %v3643, 0
        %v3694 = vsel %vm2785, %v3644, 0
        %v3697 = vsel %vm2785, %v3645, 0
        %v3700 = vsel %vm2785, %v3646, 0
        %v3703 = vsel %vm2785, %v3647, 0
        %v3706 = vsel %vm2785, %v3648, 0
        %v3709 = vsel %vm2785, %v3649, 0
        %v3712 = vsel %vm2785, %v3650, 0
        %v3715 = vsel %vm2785, %v3651, 0
        %v3718 = vsel %vm2785, %v3652, 0
        %v3721 = vsel %vm2785, %v3653, 0
        %v3724 = vsel %vm2785, %v3654, 0
        %v3727 = vsel %vm2785, %v3655, 0
        %v3730 = vsel %vm2785, %v3656, 0
        %v3733 = vsel %vm2785, %v3657, 0
        %v3736 = vsel %vm2785, %v3658, 0
        %v3739 = vsel %vm2785, %v3659, 0
        %v3742 = vsel %vm2785, %v3660, 0
        %v3745 = vsel %vm2785, %v3661, 0
        %v3748 = vsel %vm2785, %v3662, 0
        %v3751 = vsel %vm2785, %v3663, 0
        %v3754 = vsel %vm2785, %v3664, 0
        %v3757 = vsel %vm2785, %v3665, 0
        %v3760 = vsel %vm2785, %v3666, 0
        %v3763 = vsel %vm2785, %v3667, 0
        %v3766 = vsel %vm2785, %v3668, 0
        %3768 = vmatpush.msra.mxu0 0.0
        %3769 = vmatpush.msra.mxu0 0.0
        %3770 = vmatpush.msra.mxu0 0.0
        %3771 = vmatpush.msra.mxu0 0.0
        %3772 = vmatpush.msra.mxu0 0.0
        %3773 = vmatpush.msra.mxu0 0.0
        %3774 = vmatpush.msra.mxu0 0.0
        %3775 = vmatpush.msra.mxu0 0.0
        %3776 = vmatpush.msra.mxu0 0.0
        %3777 = vmatpush.msra.mxu0 0.0
        %3778 = vmatpush.msra.mxu0 0.0
        %3779 = vmatpush.msra.mxu0 0.0
        %3780 = vmatpush.msra.mxu0 0.0
        %3781 = vmatpush.msra.mxu0 0.0
        %3782 = vmatpush.msra.mxu0 %v3671
        %3783 = vmatpush.msra.mxu0 %v3670
        %3784 = vmatmul.f32.gmra.mxu0 %v3673
        %v3785 = vpop.f32.mrf.mxu0
        %v3786 = vadd.f32 0.0, %v3785
        %3787 = vmatmul.f32.gmra.mxu0 %v3676
        %v3788 = vpop.f32.mrf.mxu0
        %v3789 = vadd.f32 0.0, %v3788
        %3790 = vmatmul.f32.gmra.mxu0 %v3679
        %v3791 = vpop.f32.mrf.mxu0
        %v3792 = vadd.f32 0.0, %v3791
        %3793 = vmatmul.f32.gmra.mxu0 %v3682
        %v3794 = vpop.f32.mrf.mxu0
        %v3795 = vadd.f32 0.0, %v3794
        %3796 = vmatmul.f32.gmra.mxu0 %v3685
        %v3797 = vpop.f32.mrf.mxu0
        %v3798 = vadd.f32 0.0, %v3797
        %3799 = vmatmul.f32.gmra.mxu0 %v3688
        %v3800 = vpop.f32.mrf.mxu0
        %v3801 = vadd.f32 0.0, %v3800
        %3802 = vmatmul.f32.gmra.mxu0 %v3691
        %v3803 = vpop.f32.mrf.mxu0
        %v3804 = vadd.f32 0.0, %v3803
        %3805 = vmatmul.f32.gmra.mxu0 %v3694
        %v3806 = vpop.f32.mrf.mxu0
        %v3807 = vadd.f32 0.0, %v3806
        %3808 = vmatmul.f32.gmra.mxu0 %v3697
        %v3809 = vpop.f32.mrf.mxu0
        %v3810 = vadd.f32 0.0, %v3809
        %3811 = vmatmul.f32.gmra.mxu0 %v3700
        %v3812 = vpop.f32.mrf.mxu0
        %v3813 = vadd.f32 0.0, %v3812
        %3814 = vmatmul.f32.gmra.mxu0 %v3703
        %v3815 = vpop.f32.mrf.mxu0
        %v3816 = vadd.f32 0.0, %v3815
        %3817 = vmatmul.f32.gmra.mxu0 %v3706
        %v3818 = vpop.f32.mrf.mxu0
        %v3819 = vadd.f32 0.0, %v3818
        %3820 = vmatmul.f32.gmra.mxu0 %v3709
        %v3821 = vpop.f32.mrf.mxu0
        %v3822 = vadd.f32 0.0, %v3821
        %3823 = vmatmul.f32.gmra.mxu0 %v3712
        %v3824 = vpop.f32.mrf.mxu0
        %v3825 = vadd.f32 0.0, %v3824
        %3826 = vmatmul.f32.gmra.mxu0 %v3715
        %v3827 = vpop.f32.mrf.mxu0
        %v3828 = vadd.f32 0.0, %v3827
        %3829 = vmatmul.f32.gmra.mxu0 %v3718
        %v3830 = vpop.f32.mrf.mxu0
        %v3831 = vadd.f32 0.0, %v3830
        %3832 = vmatmul.f32.gmra.mxu0 %v3721
        %v3833 = vpop.f32.mrf.mxu0
        %v3834 = vadd.f32 0.0, %v3833
        %3835 = vmatmul.f32.gmra.mxu0 %v3724
        %v3836 = vpop.f32.mrf.mxu0
        %v3837 = vadd.f32 0.0, %v3836
        %3838 = vmatmul.f32.gmra.mxu0 %v3727
        %v3839 = vpop.f32.mrf.mxu0
        %v3840 = vadd.f32 0.0, %v3839
        %3841 = vmatmul.f32.gmra.mxu0 %v3730
        %v3842 = vpop.f32.mrf.mxu0
        %v3843 = vadd.f32 0.0, %v3842
        %3844 = vmatmul.f32.gmra.mxu0 %v3733
        %v3845 = vpop.f32.mrf.mxu0
        %v3846 = vadd.f32 0.0, %v3845
        %3847 = vmatmul.f32.gmra.mxu0 %v3736
        %v3848 = vpop.f32.mrf.mxu0
        %v3849 = vadd.f32 0.0, %v3848
        %3850 = vmatmul.f32.gmra.mxu0 %v3739
        %v3851 = vpop.f32.mrf.mxu0
        %v3852 = vadd.f32 0.0, %v3851
        %3853 = vmatmul.f32.gmra.mxu0 %v3742
        %v3854 = vpop.f32.mrf.mxu0
        %v3855 = vadd.f32 0.0, %v3854
        %3856 = vmatmul.f32.gmra.mxu0 %v3745
        %v3857 = vpop.f32.mrf.mxu0
        %v3858 = vadd.f32 0.0, %v3857
        %3859 = vmatmul.f32.gmra.mxu0 %v3748
        %v3860 = vpop.f32.mrf.mxu0
        %v3861 = vadd.f32 0.0, %v3860
        %3862 = vmatmul.f32.gmra.mxu0 %v3751
        %v3863 = vpop.f32.mrf.mxu0
        %v3864 = vadd.f32 0.0, %v3863
        %3865 = vmatmul.f32.gmra.mxu0 %v3754
        %v3866 = vpop.f32.mrf.mxu0
        %v3867 = vadd.f32 0.0, %v3866
        %3868 = vmatmul.f32.gmra.mxu0 %v3757
        %v3869 = vpop.f32.mrf.mxu0
        %v3870 = vadd.f32 0.0, %v3869
        %3871 = vmatmul.f32.gmra.mxu0 %v3760
        %v3872 = vpop.f32.mrf.mxu0
        %v3873 = vadd.f32 0.0, %v3872
        %3874 = vmatmul.f32.gmra.mxu0 %v3763
        %v3875 = vpop.f32.mrf.mxu0
        %v3876 = vadd.f32 0.0, %v3875
        %3877 = vmatmul.f32.gmra.mxu0 %v3766
        %v3878 = vpop.f32.mrf.mxu0
        %v3879 = vadd.f32 0.0, %v3878
        %3880 = vdwg.mxu0
        %v3881 = vadd.f32 %v3605, %v3786
        %v3882 = vadd.f32 %v3606, %v3789
        %v3883 = vadd.f32 %v3607, %v3792
        %v3884 = vadd.f32 %v3608, %v3795
        %v3885 = vadd.f32 %v3609, %v3798
        %v3886 = vadd.f32 %v3610, %v3801
        %v3887 = vadd.f32 %v3611, %v3804
        %v3888 = vadd.f32 %v3612, %v3807
        %v3889 = vadd.f32 %v3613, %v3810
        %v3890 = vadd.f32 %v3614, %v3813
        %v3891 = vadd.f32 %v3615, %v3816
        %v3892 = vadd.f32 %v3616, %v3819
        %v3893 = vadd.f32 %v3617, %v3822
        %v3894 = vadd.f32 %v3618, %v3825
        %v3895 = vadd.f32 %v3619, %v3828
        %v3896 = vadd.f32 %v3620, %v3831
        %v3897 = vadd.f32 %v3621, %v3834
        %v3898 = vadd.f32 %v3622, %v3837
        %v3899 = vadd.f32 %v3623, %v3840
        %v3900 = vadd.f32 %v3624, %v3843
        %v3901 = vadd.f32 %v3625, %v3846
        %v3902 = vadd.f32 %v3626, %v3849
        %v3903 = vadd.f32 %v3627, %v3852
        %v3904 = vadd.f32 %v3628, %v3855
        %v3905 = vadd.f32 %v3629, %v3858
        %v3906 = vadd.f32 %v3630, %v3861
        %v3907 = vadd.f32 %v3631, %v3864
        %v3908 = vadd.f32 %v3632, %v3867
        %v3909 = vadd.f32 %v3633, %v3870
        %v3910 = vadd.f32 %v3634, %v3873
        %v3911 = vadd.f32 %v3635, %v3876
        %v3912 = vadd.f32 %v3636, %v3879
        %v3913 = vld [vmem:[%s2841 + $0x1] sm:$0xff]
        %v3914 = vld [vmem:[%s2841 + $0x9] sm:$0xff]
        %v3915 = vld [vmem:[%s2841 + $0x19] sm:$0xff]
        %v3916 = vld [vmem:[%s2841 + $0x21] sm:$0xff]
        %v3917 = vld [vmem:[%s2841 + $0x31] sm:$0xff]
        %v3918 = vld [vmem:[%s2841 + $0x39] sm:$0xff]
        %v3919 = vld [vmem:[%s2841 + $0x49] sm:$0xff]
        %v3920 = vld [vmem:[%s2841 + $0x51] sm:$0xff]
        %v3921 = vld [vmem:[%s2841 + $0x61] sm:$0xff]
        %v3922 = vld [vmem:[%s2841 + $0x69] sm:$0xff]
        %v3923 = vld [vmem:[%s2841 + $0x79] sm:$0xff]
        %v3924 = vld [vmem:[%s2841 + $0x81] sm:$0xff]
        %v3925 = vld [vmem:[%s2841 + $0x91] sm:$0xff]
        %v3926 = vld [vmem:[%s2841 + $0x99] sm:$0xff]
        %v3927 = vld [vmem:[%s2841 + $0xa9] sm:$0xff]
        %v3928 = vld [vmem:[%s2841 + $0xb1] sm:$0xff]
        %v3929 = vld [vmem:[%s2841 + $0xc1] sm:$0xff]
        %v3930 = vld [vmem:[%s2841 + $0xc9] sm:$0xff]
        %v3931 = vld [vmem:[%s2841 + $0xd9] sm:$0xff]
        %v3932 = vld [vmem:[%s2841 + $0xe1] sm:$0xff]
        %v3933 = vld [vmem:[%s2841 + $0xf1] sm:$0xff]
        %v3934 = vld [vmem:[%s2841 + $0xf9] sm:$0xff]
        %v3935 = vld [vmem:[%s2841 + $0x109] sm:$0xff]
        %v3936 = vld [vmem:[%s2841 + $0x111] sm:$0xff]
        %v3937 = vld [vmem:[%s2841 + $0x121] sm:$0xff]
        %v3938 = vld [vmem:[%s2841 + $0x129] sm:$0xff]
        %v3939 = vld [vmem:[%s2841 + $0x139] sm:$0xff]
        %v3940 = vld [vmem:[%s2841 + $0x141] sm:$0xff]
        %v3941 = vld [vmem:[%s2841 + $0x151] sm:$0xff]
        %v3942 = vld [vmem:[%s2841 + $0x159] sm:$0xff]
        %v3943 = vld [vmem:[%s2841 + $0x169] sm:$0xff]
        %v3944 = vld [vmem:[%s2841 + $0x171] sm:$0xff]
        %s3945 = scalar_lea.vmem %s3, 64
        %v3946 = vld [vmem:[%s3945] sm:$0xff]
        %v3947 = vld [vmem:[%s3945 + $0x8] sm:$0xff]
        %v3949 = vsel %vm2785, %v3913, 0
        %v3952 = vsel %vm2785, %v3914, 0
        %v3955 = vsel %vm2785, %v3915, 0
        %v3958 = vsel %vm2785, %v3916, 0
        %v3961 = vsel %vm2785, %v3917, 0
        %v3964 = vsel %vm2785, %v3918, 0
        %v3967 = vsel %vm2785, %v3919, 0
        %v3970 = vsel %vm2785, %v3920, 0
        %v3973 = vsel %vm2785, %v3921, 0
        %v3976 = vsel %vm2785, %v3922, 0
        %v3979 = vsel %vm2785, %v3923, 0
        %v3982 = vsel %vm2785, %v3924, 0
        %v3985 = vsel %vm2785, %v3925, 0
        %v3988 = vsel %vm2785, %v3926, 0
        %v3991 = vsel %vm2785, %v3927, 0
        %v3994 = vsel %vm2785, %v3928, 0
        %v3997 = vsel %vm2785, %v3929, 0
        %v4000 = vsel %vm2785, %v3930, 0
        %v4003 = vsel %vm2785, %v3931, 0
        %v4006 = vsel %vm2785, %v3932, 0
        %v4009 = vsel %vm2785, %v3933, 0
        %v4012 = vsel %vm2785, %v3934, 0
        %v4015 = vsel %vm2785, %v3935, 0
        %v4018 = vsel %vm2785, %v3936, 0
        %v4021 = vsel %vm2785, %v3937, 0
        %v4024 = vsel %vm2785, %v3938, 0
        %v4027 = vsel %vm2785, %v3939, 0
        %v4030 = vsel %vm2785, %v3940, 0
        %v4033 = vsel %vm2785, %v3941, 0
        %v4036 = vsel %vm2785, %v3942, 0
        %v4039 = vsel %vm2785, %v3943, 0
        %v4042 = vsel %vm2785, %v3944, 0
        %4044 = vmatpush.msra.mxu0 0.0
        %4045 = vmatpush.msra.mxu0 0.0
        %4046 = vmatpush.msra.mxu0 0.0
        %4047 = vmatpush.msra.mxu0 0.0
        %4048 = vmatpush.msra.mxu0 0.0
        %4049 = vmatpush.msra.mxu0 0.0
        %4050 = vmatpush.msra.mxu0 0.0
        %4051 = vmatpush.msra.mxu0 0.0
        %4052 = vmatpush.msra.mxu0 0.0
        %4053 = vmatpush.msra.mxu0 0.0
        %4054 = vmatpush.msra.mxu0 0.0
        %4055 = vmatpush.msra.mxu0 0.0
        %4056 = vmatpush.msra.mxu0 0.0
        %4057 = vmatpush.msra.mxu0 0.0
        %4058 = vmatpush.msra.mxu0 %v3947
        %4059 = vmatpush.msra.mxu0 %v3946
        %4060 = vmatmul.f32.gmra.mxu0 %v3949
        %v4061 = vpop.f32.mrf.mxu0
        %v4062 = vadd.f32 0.0, %v4061
        %4063 = vmatmul.f32.gmra.mxu0 %v3952
        %v4064 = vpop.f32.mrf.mxu0
        %v4065 = vadd.f32 0.0, %v4064
        %4066 = vmatmul.f32.gmra.mxu0 %v3955
        %v4067 = vpop.f32.mrf.mxu0
        %v4068 = vadd.f32 0.0, %v4067
        %4069 = vmatmul.f32.gmra.mxu0 %v3958
        %v4070 = vpop.f32.mrf.mxu0
        %v4071 = vadd.f32 0.0, %v4070
        %4072 = vmatmul.f32.gmra.mxu0 %v3961
        %v4073 = vpop.f32.mrf.mxu0
        %v4074 = vadd.f32 0.0, %v4073
        %4075 = vmatmul.f32.gmra.mxu0 %v3964
        %v4076 = vpop.f32.mrf.mxu0
        %v4077 = vadd.f32 0.0, %v4076
        %4078 = vmatmul.f32.gmra.mxu0 %v3967
        %v4079 = vpop.f32.mrf.mxu0
        %v4080 = vadd.f32 0.0, %v4079
        %4081 = vmatmul.f32.gmra.mxu0 %v3970
        %v4082 = vpop.f32.mrf.mxu0
        %v4083 = vadd.f32 0.0, %v4082
        %4084 = vmatmul.f32.gmra.mxu0 %v3973
        %v4085 = vpop.f32.mrf.mxu0
        %v4086 = vadd.f32 0.0, %v4085
        %4087 = vmatmul.f32.gmra.mxu0 %v3976
        %v4088 = vpop.f32.mrf.mxu0
        %v4089 = vadd.f32 0.0, %v4088
        %4090 = vmatmul.f32.gmra.mxu0 %v3979
        %v4091 = vpop.f32.mrf.mxu0
        %v4092 = vadd.f32 0.0, %v4091
        %4093 = vmatmul.f32.gmra.mxu0 %v3982
        %v4094 = vpop.f32.mrf.mxu0
        %v4095 = vadd.f32 0.0, %v4094
        %4096 = vmatmul.f32.gmra.mxu0 %v3985
        %v4097 = vpop.f32.mrf.mxu0
        %v4098 = vadd.f32 0.0, %v4097
        %4099 = vmatmul.f32.gmra.mxu0 %v3988
        %v4100 = vpop.f32.mrf.mxu0
        %v4101 = vadd.f32 0.0, %v4100
        %4102 = vmatmul.f32.gmra.mxu0 %v3991
        %v4103 = vpop.f32.mrf.mxu0
        %v4104 = vadd.f32 0.0, %v4103
        %4105 = vmatmul.f32.gmra.mxu0 %v3994
        %v4106 = vpop.f32.mrf.mxu0
        %v4107 = vadd.f32 0.0, %v4106
        %4108 = vmatmul.f32.gmra.mxu0 %v3997
        %v4109 = vpop.f32.mrf.mxu0
        %v4110 = vadd.f32 0.0, %v4109
        %4111 = vmatmul.f32.gmra.mxu0 %v4000
        %v4112 = vpop.f32.mrf.mxu0
        %v4113 = vadd.f32 0.0, %v4112
        %4114 = vmatmul.f32.gmra.mxu0 %v4003
        %v4115 = vpop.f32.mrf.mxu0
        %v4116 = vadd.f32 0.0, %v4115
        %4117 = vmatmul.f32.gmra.mxu0 %v4006
        %v4118 = vpop.f32.mrf.mxu0
        %v4119 = vadd.f32 0.0, %v4118
        %4120 = vmatmul.f32.gmra.mxu0 %v4009
        %v4121 = vpop.f32.mrf.mxu0
        %v4122 = vadd.f32 0.0, %v4121
        %4123 = vmatmul.f32.gmra.mxu0 %v4012
        %v4124 = vpop.f32.mrf.mxu0
        %v4125 = vadd.f32 0.0, %v4124
        %4126 = vmatmul.f32.gmra.mxu0 %v4015
        %v4127 = vpop.f32.mrf.mxu0
        %v4128 = vadd.f32 0.0, %v4127
        %4129 = vmatmul.f32.gmra.mxu0 %v4018
        %v4130 = vpop.f32.mrf.mxu0
        %v4131 = vadd.f32 0.0, %v4130
        %4132 = vmatmul.f32.gmra.mxu0 %v4021
        %v4133 = vpop.f32.mrf.mxu0
        %v4134 = vadd.f32 0.0, %v4133
        %4135 = vmatmul.f32.gmra.mxu0 %v4024
        %v4136 = vpop.f32.mrf.mxu0
        %v4137 = vadd.f32 0.0, %v4136
        %4138 = vmatmul.f32.gmra.mxu0 %v4027
        %v4139 = vpop.f32.mrf.mxu0
        %v4140 = vadd.f32 0.0, %v4139
        %4141 = vmatmul.f32.gmra.mxu0 %v4030
        %v4142 = vpop.f32.mrf.mxu0
        %v4143 = vadd.f32 0.0, %v4142
        %4144 = vmatmul.f32.gmra.mxu0 %v4033
        %v4145 = vpop.f32.mrf.mxu0
        %v4146 = vadd.f32 0.0, %v4145
        %4147 = vmatmul.f32.gmra.mxu0 %v4036
        %v4148 = vpop.f32.mrf.mxu0
        %v4149 = vadd.f32 0.0, %v4148
        %4150 = vmatmul.f32.gmra.mxu0 %v4039
        %v4151 = vpop.f32.mrf.mxu0
        %v4152 = vadd.f32 0.0, %v4151
        %4153 = vmatmul.f32.gmra.mxu0 %v4042
        %v4154 = vpop.f32.mrf.mxu0
        %v4155 = vadd.f32 0.0, %v4154
        %4156 = vdwg.mxu0
        %v4157 = vadd.f32 %v3881, %v4062
        %v4158 = vadd.f32 %v3882, %v4065
        %v4159 = vadd.f32 %v3883, %v4068
        %v4160 = vadd.f32 %v3884, %v4071
        %v4161 = vadd.f32 %v3885, %v4074
        %v4162 = vadd.f32 %v3886, %v4077
        %v4163 = vadd.f32 %v3887, %v4080
        %v4164 = vadd.f32 %v3888, %v4083
        %v4165 = vadd.f32 %v3889, %v4086
        %v4166 = vadd.f32 %v3890, %v4089
        %v4167 = vadd.f32 %v3891, %v4092
        %v4168 = vadd.f32 %v3892, %v4095
        %v4169 = vadd.f32 %v3893, %v4098
        %v4170 = vadd.f32 %v3894, %v4101
        %v4171 = vadd.f32 %v3895, %v4104
        %v4172 = vadd.f32 %v3896, %v4107
        %v4173 = vadd.f32 %v3897, %v4110
        %v4174 = vadd.f32 %v3898, %v4113
        %v4175 = vadd.f32 %v3899, %v4116
        %v4176 = vadd.f32 %v3900, %v4119
        %v4177 = vadd.f32 %v3901, %v4122
        %v4178 = vadd.f32 %v3902, %v4125
        %v4179 = vadd.f32 %v3903, %v4128
        %v4180 = vadd.f32 %v3904, %v4131
        %v4181 = vadd.f32 %v3905, %v4134
        %v4182 = vadd.f32 %v3906, %v4137
        %v4183 = vadd.f32 %v3907, %v4140
        %v4184 = vadd.f32 %v3908, %v4143
        %v4185 = vadd.f32 %v3909, %v4146
        %v4186 = vadd.f32 %v3910, %v4149
        %v4187 = vadd.f32 %v3911, %v4152
        %v4188 = vadd.f32 %v3912, %v4155
        %v4189 = vld [vmem:[%s2841 + $0x2] sm:$0xff]
        %v4190 = vld [vmem:[%s2841 + $0xa] sm:$0xff]
        %v4191 = vld [vmem:[%s2841 + $0x1a] sm:$0xff]
        %v4192 = vld [vmem:[%s2841 + $0x22] sm:$0xff]
        %v4193 = vld [vmem:[%s2841 + $0x32] sm:$0xff]
        %v4194 = vld [vmem:[%s2841 + $0x3a] sm:$0xff]
        %v4195 = vld [vmem:[%s2841 + $0x4a] sm:$0xff]
        %v4196 = vld [vmem:[%s2841 + $0x52] sm:$0xff]
        %v4197 = vld [vmem:[%s2841 + $0x62] sm:$0xff]
        %v4198 = vld [vmem:[%s2841 + $0x6a] sm:$0xff]
        %v4199 = vld [vmem:[%s2841 + $0x7a] sm:$0xff]
        %v4200 = vld [vmem:[%s2841 + $0x82] sm:$0xff]
        %v4201 = vld [vmem:[%s2841 + $0x92] sm:$0xff]
        %v4202 = vld [vmem:[%s2841 + $0x9a] sm:$0xff]
        %v4203 = vld [vmem:[%s2841 + $0xaa] sm:$0xff]
        %v4204 = vld [vmem:[%s2841 + $0xb2] sm:$0xff]
        %v4205 = vld [vmem:[%s2841 + $0xc2] sm:$0xff]
        %v4206 = vld [vmem:[%s2841 + $0xca] sm:$0xff]
        %v4207 = vld [vmem:[%s2841 + $0xda] sm:$0xff]
        %v4208 = vld [vmem:[%s2841 + $0xe2] sm:$0xff]
        %v4209 = vld [vmem:[%s2841 + $0xf2] sm:$0xff]
        %v4210 = vld [vmem:[%s2841 + $0xfa] sm:$0xff]
        %v4211 = vld [vmem:[%s2841 + $0x10a] sm:$0xff]
        %v4212 = vld [vmem:[%s2841 + $0x112] sm:$0xff]
        %v4213 = vld [vmem:[%s2841 + $0x122] sm:$0xff]
        %v4214 = vld [vmem:[%s2841 + $0x12a] sm:$0xff]
        %v4215 = vld [vmem:[%s2841 + $0x13a] sm:$0xff]
        %v4216 = vld [vmem:[%s2841 + $0x142] sm:$0xff]
        %v4217 = vld [vmem:[%s2841 + $0x152] sm:$0xff]
        %v4218 = vld [vmem:[%s2841 + $0x15a] sm:$0xff]
        %v4219 = vld [vmem:[%s2841 + $0x16a] sm:$0xff]
        %v4220 = vld [vmem:[%s2841 + $0x172] sm:$0xff]
        %s4221 = scalar_lea.vmem %s3, 80
        %v4222 = vld [vmem:[%s4221] sm:$0xff]
        %v4223 = vld [vmem:[%s4221 + $0x8] sm:$0xff]
        %v4225 = vsel %vm2785, %v4189, 0
        %v4228 = vsel %vm2785, %v4190, 0
        %v4231 = vsel %vm2785, %v4191, 0
        %v4234 = vsel %vm2785, %v4192, 0
        %v4237 = vsel %vm2785, %v4193, 0
        %v4240 = vsel %vm2785, %v4194, 0
        %v4243 = vsel %vm2785, %v4195, 0
        %v4246 = vsel %vm2785, %v4196, 0
        %v4249 = vsel %vm2785, %v4197, 0
        %v4252 = vsel %vm2785, %v4198, 0
        %v4255 = vsel %vm2785, %v4199, 0
        %v4258 = vsel %vm2785, %v4200, 0
        %v4261 = vsel %vm2785, %v4201, 0
        %v4264 = vsel %vm2785, %v4202, 0
        %v4267 = vsel %vm2785, %v4203, 0
        %v4270 = vsel %vm2785, %v4204, 0
        %v4273 = vsel %vm2785, %v4205, 0
        %v4276 = vsel %vm2785, %v4206, 0
        %v4279 = vsel %vm2785, %v4207, 0
        %v4282 = vsel %vm2785, %v4208, 0
        %v4285 = vsel %vm2785, %v4209, 0
        %v4288 = vsel %vm2785, %v4210, 0
        %v4291 = vsel %vm2785, %v4211, 0
        %v4294 = vsel %vm2785, %v4212, 0
        %v4297 = vsel %vm2785, %v4213, 0
        %v4300 = vsel %vm2785, %v4214, 0
        %v4303 = vsel %vm2785, %v4215, 0
        %v4306 = vsel %vm2785, %v4216, 0
        %v4309 = vsel %vm2785, %v4217, 0
        %v4312 = vsel %vm2785, %v4218, 0
        %v4315 = vsel %vm2785, %v4219, 0
        %v4318 = vsel %vm2785, %v4220, 0
        %4320 = vmatpush.msra.mxu0 0.0
        %4321 = vmatpush.msra.mxu0 0.0
        %4322 = vmatpush.msra.mxu0 0.0
        %4323 = vmatpush.msra.mxu0 0.0
        %4324 = vmatpush.msra.mxu0 0.0
        %4325 = vmatpush.msra.mxu0 0.0
        %4326 = vmatpush.msra.mxu0 0.0
        %4327 = vmatpush.msra.mxu0 0.0
        %4328 = vmatpush.msra.mxu0 0.0
        %4329 = vmatpush.msra.mxu0 0.0
        %4330 = vmatpush.msra.mxu0 0.0
        %4331 = vmatpush.msra.mxu0 0.0
        %4332 = vmatpush.msra.mxu0 0.0
        %4333 = vmatpush.msra.mxu0 0.0
        %4334 = vmatpush.msra.mxu0 %v4223
        %4335 = vmatpush.msra.mxu0 %v4222
        %4336 = vmatmul.f32.gmra.mxu0 %v4225
        %v4337 = vpop.f32.mrf.mxu0
        %v4338 = vadd.f32 0.0, %v4337
        %4339 = vmatmul.f32.gmra.mxu0 %v4228
        %v4340 = vpop.f32.mrf.mxu0
        %v4341 = vadd.f32 0.0, %v4340
        %4342 = vmatmul.f32.gmra.mxu0 %v4231
        %v4343 = vpop.f32.mrf.mxu0
        %v4344 = vadd.f32 0.0, %v4343
        %4345 = vmatmul.f32.gmra.mxu0 %v4234
        %v4346 = vpop.f32.mrf.mxu0
        %v4347 = vadd.f32 0.0, %v4346
        %4348 = vmatmul.f32.gmra.mxu0 %v4237
        %v4349 = vpop.f32.mrf.mxu0
        %v4350 = vadd.f32 0.0, %v4349
        %4351 = vmatmul.f32.gmra.mxu0 %v4240
        %v4352 = vpop.f32.mrf.mxu0
        %v4353 = vadd.f32 0.0, %v4352
        %4354 = vmatmul.f32.gmra.mxu0 %v4243
        %v4355 = vpop.f32.mrf.mxu0
        %v4356 = vadd.f32 0.0, %v4355
        %4357 = vmatmul.f32.gmra.mxu0 %v4246
        %v4358 = vpop.f32.mrf.mxu0
        %v4359 = vadd.f32 0.0, %v4358
        %4360 = vmatmul.f32.gmra.mxu0 %v4249
        %v4361 = vpop.f32.mrf.mxu0
        %v4362 = vadd.f32 0.0, %v4361
        %4363 = vmatmul.f32.gmra.mxu0 %v4252
        %v4364 = vpop.f32.mrf.mxu0
        %v4365 = vadd.f32 0.0, %v4364
        %4366 = vmatmul.f32.gmra.mxu0 %v4255
        %v4367 = vpop.f32.mrf.mxu0
        %v4368 = vadd.f32 0.0, %v4367
        %4369 = vmatmul.f32.gmra.mxu0 %v4258
        %v4370 = vpop.f32.mrf.mxu0
        %v4371 = vadd.f32 0.0, %v4370
        %4372 = vmatmul.f32.gmra.mxu0 %v4261
        %v4373 = vpop.f32.mrf.mxu0
        %v4374 = vadd.f32 0.0, %v4373
        %4375 = vmatmul.f32.gmra.mxu0 %v4264
        %v4376 = vpop.f32.mrf.mxu0
        %v4377 = vadd.f32 0.0, %v4376
        %4378 = vmatmul.f32.gmra.mxu0 %v4267
        %v4379 = vpop.f32.mrf.mxu0
        %v4380 = vadd.f32 0.0, %v4379
        %4381 = vmatmul.f32.gmra.mxu0 %v4270
        %v4382 = vpop.f32.mrf.mxu0
        %v4383 = vadd.f32 0.0, %v4382
        %4384 = vmatmul.f32.gmra.mxu0 %v4273
        %v4385 = vpop.f32.mrf.mxu0
        %v4386 = vadd.f32 0.0, %v4385
        %4387 = vmatmul.f32.gmra.mxu0 %v4276
        %v4388 = vpop.f32.mrf.mxu0
        %v4389 = vadd.f32 0.0, %v4388
        %4390 = vmatmul.f32.gmra.mxu0 %v4279
        %v4391 = vpop.f32.mrf.mxu0
        %v4392 = vadd.f32 0.0, %v4391
        %4393 = vmatmul.f32.gmra.mxu0 %v4282
        %v4394 = vpop.f32.mrf.mxu0
        %v4395 = vadd.f32 0.0, %v4394
        %4396 = vmatmul.f32.gmra.mxu0 %v4285
        %v4397 = vpop.f32.mrf.mxu0
        %v4398 = vadd.f32 0.0, %v4397
        %4399 = vmatmul.f32.gmra.mxu0 %v4288
        %v4400 = vpop.f32.mrf.mxu0
        %v4401 = vadd.f32 0.0, %v4400
        %4402 = vmatmul.f32.gmra.mxu0 %v4291
        %v4403 = vpop.f32.mrf.mxu0
        %v4404 = vadd.f32 0.0, %v4403
        %4405 = vmatmul.f32.gmra.mxu0 %v4294
        %v4406 = vpop.f32.mrf.mxu0
        %v4407 = vadd.f32 0.0, %v4406
        %4408 = vmatmul.f32.gmra.mxu0 %v4297
        %v4409 = vpop.f32.mrf.mxu0
        %v4410 = vadd.f32 0.0, %v4409
        %4411 = vmatmul.f32.gmra.mxu0 %v4300
        %v4412 = vpop.f32.mrf.mxu0
        %v4413 = vadd.f32 0.0, %v4412
        %4414 = vmatmul.f32.gmra.mxu0 %v4303
        %v4415 = vpop.f32.mrf.mxu0
        %v4416 = vadd.f32 0.0, %v4415
        %4417 = vmatmul.f32.gmra.mxu0 %v4306
        %v4418 = vpop.f32.mrf.mxu0
        %v4419 = vadd.f32 0.0, %v4418
        %4420 = vmatmul.f32.gmra.mxu0 %v4309
        %v4421 = vpop.f32.mrf.mxu0
        %v4422 = vadd.f32 0.0, %v4421
        %4423 = vmatmul.f32.gmra.mxu0 %v4312
        %v4424 = vpop.f32.mrf.mxu0
        %v4425 = vadd.f32 0.0, %v4424
        %4426 = vmatmul.f32.gmra.mxu0 %v4315
        %v4427 = vpop.f32.mrf.mxu0
        %v4428 = vadd.f32 0.0, %v4427
        %4429 = vmatmul.f32.gmra.mxu0 %v4318
        %v4430 = vpop.f32.mrf.mxu0
        %v4431 = vadd.f32 0.0, %v4430
        %4432 = vdwg.mxu0
        %v4433 = vadd.f32 %v4157, %v4338
        %v4434 = vadd.f32 %v4158, %v4341
        %v4435 = vadd.f32 %v4159, %v4344
        %v4436 = vadd.f32 %v4160, %v4347
        %v4437 = vadd.f32 %v4161, %v4350
        %v4438 = vadd.f32 %v4162, %v4353
        %v4439 = vadd.f32 %v4163, %v4356
        %v4440 = vadd.f32 %v4164, %v4359
        %v4441 = vadd.f32 %v4165, %v4362
        %v4442 = vadd.f32 %v4166, %v4365
        %v4443 = vadd.f32 %v4167, %v4368
        %v4444 = vadd.f32 %v4168, %v4371
        %v4445 = vadd.f32 %v4169, %v4374
        %v4446 = vadd.f32 %v4170, %v4377
        %v4447 = vadd.f32 %v4171, %v4380
        %v4448 = vadd.f32 %v4172, %v4383
        %v4449 = vadd.f32 %v4173, %v4386
        %v4450 = vadd.f32 %v4174, %v4389
        %v4451 = vadd.f32 %v4175, %v4392
        %v4452 = vadd.f32 %v4176, %v4395
        %v4453 = vadd.f32 %v4177, %v4398
        %v4454 = vadd.f32 %v4178, %v4401
        %v4455 = vadd.f32 %v4179, %v4404
        %v4456 = vadd.f32 %v4180, %v4407
        %v4457 = vadd.f32 %v4181, %v4410
        %v4458 = vadd.f32 %v4182, %v4413
        %v4459 = vadd.f32 %v4183, %v4416
        %v4460 = vadd.f32 %v4184, %v4419
        %v4461 = vadd.f32 %v4185, %v4422
        %v4462 = vadd.f32 %v4186, %v4425
        %v4463 = vadd.f32 %v4187, %v4428
        %v4464 = vadd.f32 %v4188, %v4431
        %s4465 = scalar_lea.vmem [#allocation2], 48
        %v4466 = vld [vmem:[%s4465] sm:$0xff]
        %v4467 = vld [vmem:[%s4465 + $0x8] sm:$0xff]
        %v4468 = vld [vmem:[%s4465 + $0x18] sm:$0xff]
        %v4469 = vld [vmem:[%s4465 + $0x20] sm:$0xff]
        %v4470 = vld [vmem:[%s4465 + $0x30] sm:$0xff]
        %v4471 = vld [vmem:[%s4465 + $0x38] sm:$0xff]
        %v4472 = vld [vmem:[%s4465 + $0x48] sm:$0xff]
        %v4473 = vld [vmem:[%s4465 + $0x50] sm:$0xff]
        %v4474 = vld [vmem:[%s4465 + $0x60] sm:$0xff]
        %v4475 = vld [vmem:[%s4465 + $0x68] sm:$0xff]
        %v4476 = vld [vmem:[%s4465 + $0x78] sm:$0xff]
        %v4477 = vld [vmem:[%s4465 + $0x80] sm:$0xff]
        %v4478 = vld [vmem:[%s4465 + $0x90] sm:$0xff]
        %v4479 = vld [vmem:[%s4465 + $0x98] sm:$0xff]
        %v4480 = vld [vmem:[%s4465 + $0xa8] sm:$0xff]
        %v4481 = vld [vmem:[%s4465 + $0xb0] sm:$0xff]
        %v4482 = vld [vmem:[%s4465 + $0xc0] sm:$0xff]
        %v4483 = vld [vmem:[%s4465 + $0xc8] sm:$0xff]
        %v4484 = vld [vmem:[%s4465 + $0xd8] sm:$0xff]
        %v4485 = vld [vmem:[%s4465 + $0xe0] sm:$0xff]
        %v4486 = vld [vmem:[%s4465 + $0xf0] sm:$0xff]
        %v4487 = vld [vmem:[%s4465 + $0xf8] sm:$0xff]
        %v4488 = vld [vmem:[%s4465 + $0x108] sm:$0xff]
        %v4489 = vld [vmem:[%s4465 + $0x110] sm:$0xff]
        %v4490 = vld [vmem:[%s4465 + $0x120] sm:$0xff]
        %v4491 = vld [vmem:[%s4465 + $0x128] sm:$0xff]
        %v4492 = vld [vmem:[%s4465 + $0x138] sm:$0xff]
        %v4493 = vld [vmem:[%s4465 + $0x140] sm:$0xff]
        %v4494 = vld [vmem:[%s4465 + $0x150] sm:$0xff]
        %v4495 = vld [vmem:[%s4465 + $0x158] sm:$0xff]
        %v4496 = vld [vmem:[%s4465 + $0x168] sm:$0xff]
        %v4497 = vld [vmem:[%s4465 + $0x170] sm:$0xff]
        %s4498 = scalar_lea.vmem %s3, 96
        %v4499 = vld [vmem:[%s4498] sm:$0xff]
        %v4500 = vld [vmem:[%s4498 + $0x8] sm:$0xff]
        %v4502 = vsel %vm2785, %v4466, 0
        %v4505 = vsel %vm2785, %v4467, 0
        %v4508 = vsel %vm2785, %v4468, 0
        %v4511 = vsel %vm2785, %v4469, 0
        %v4514 = vsel %vm2785, %v4470, 0
        %v4517 = vsel %vm2785, %v4471, 0
        %v4520 = vsel %vm2785, %v4472, 0
        %v4523 = vsel %vm2785, %v4473, 0
        %v4526 = vsel %vm2785, %v4474, 0
        %v4529 = vsel %vm2785, %v4475, 0
        %v4532 = vsel %vm2785, %v4476, 0
        %v4535 = vsel %vm2785, %v4477, 0
        %v4538 = vsel %vm2785, %v4478, 0
        %v4541 = vsel %vm2785, %v4479, 0
        %v4544 = vsel %vm2785, %v4480, 0
        %v4547 = vsel %vm2785, %v4481, 0
        %v4550 = vsel %vm2785, %v4482, 0
        %v4553 = vsel %vm2785, %v4483, 0
        %v4556 = vsel %vm2785, %v4484, 0
        %v4559 = vsel %vm2785, %v4485, 0
        %v4562 = vsel %vm2785, %v4486, 0
        %v4565 = vsel %vm2785, %v4487, 0
        %v4568 = vsel %vm2785, %v4488, 0
        %v4571 = vsel %vm2785, %v4489, 0
        %v4574 = vsel %vm2785, %v4490, 0
        %v4577 = vsel %vm2785, %v4491, 0
        %v4580 = vsel %vm2785, %v4492, 0
        %v4583 = vsel %vm2785, %v4493, 0
        %v4586 = vsel %vm2785, %v4494, 0
        %v4589 = vsel %vm2785, %v4495, 0
        %v4592 = vsel %vm2785, %v4496, 0
        %v4595 = vsel %vm2785, %v4497, 0
        %4597 = vmatpush.msra.mxu0 0.0
        %4598 = vmatpush.msra.mxu0 0.0
        %4599 = vmatpush.msra.mxu0 0.0
        %4600 = vmatpush.msra.mxu0 0.0
        %4601 = vmatpush.msra.mxu0 0.0
        %4602 = vmatpush.msra.mxu0 0.0
        %4603 = vmatpush.msra.mxu0 0.0
        %4604 = vmatpush.msra.mxu0 0.0
        %4605 = vmatpush.msra.mxu0 0.0
        %4606 = vmatpush.msra.mxu0 0.0
        %4607 = vmatpush.msra.mxu0 0.0
        %4608 = vmatpush.msra.mxu0 0.0
        %4609 = vmatpush.msra.mxu0 0.0
        %4610 = vmatpush.msra.mxu0 0.0
        %4611 = vmatpush.msra.mxu0 %v4500
        %4612 = vmatpush.msra.mxu0 %v4499
        %4613 = vmatmul.f32.gmra.mxu0 %v4502
        %v4614 = vpop.f32.mrf.mxu0
        %v4615 = vadd.f32 0.0, %v4614
        %4616 = vmatmul.f32.gmra.mxu0 %v4505
        %v4617 = vpop.f32.mrf.mxu0
        %v4618 = vadd.f32 0.0, %v4617
        %4619 = vmatmul.f32.gmra.mxu0 %v4508
        %v4620 = vpop.f32.mrf.mxu0
        %v4621 = vadd.f32 0.0, %v4620
        %4622 = vmatmul.f32.gmra.mxu0 %v4511
        %v4623 = vpop.f32.mrf.mxu0
        %v4624 = vadd.f32 0.0, %v4623
        %4625 = vmatmul.f32.gmra.mxu0 %v4514
        %v4626 = vpop.f32.mrf.mxu0
        %v4627 = vadd.f32 0.0, %v4626
        %4628 = vmatmul.f32.gmra.mxu0 %v4517
        %v4629 = vpop.f32.mrf.mxu0
        %v4630 = vadd.f32 0.0, %v4629
        %4631 = vmatmul.f32.gmra.mxu0 %v4520
        %v4632 = vpop.f32.mrf.mxu0
        %v4633 = vadd.f32 0.0, %v4632
        %4634 = vmatmul.f32.gmra.mxu0 %v4523
        %v4635 = vpop.f32.mrf.mxu0
        %v4636 = vadd.f32 0.0, %v4635
        %4637 = vmatmul.f32.gmra.mxu0 %v4526
        %v4638 = vpop.f32.mrf.mxu0
        %v4639 = vadd.f32 0.0, %v4638
        %4640 = vmatmul.f32.gmra.mxu0 %v4529
        %v4641 = vpop.f32.mrf.mxu0
        %v4642 = vadd.f32 0.0, %v4641
        %4643 = vmatmul.f32.gmra.mxu0 %v4532
        %v4644 = vpop.f32.mrf.mxu0
        %v4645 = vadd.f32 0.0, %v4644
        %4646 = vmatmul.f32.gmra.mxu0 %v4535
        %v4647 = vpop.f32.mrf.mxu0
        %v4648 = vadd.f32 0.0, %v4647
        %4649 = vmatmul.f32.gmra.mxu0 %v4538
        %v4650 = vpop.f32.mrf.mxu0
        %v4651 = vadd.f32 0.0, %v4650
        %4652 = vmatmul.f32.gmra.mxu0 %v4541
        %v4653 = vpop.f32.mrf.mxu0
        %v4654 = vadd.f32 0.0, %v4653
        %4655 = vmatmul.f32.gmra.mxu0 %v4544
        %v4656 = vpop.f32.mrf.mxu0
        %v4657 = vadd.f32 0.0, %v4656
        %4658 = vmatmul.f32.gmra.mxu0 %v4547
        %v4659 = vpop.f32.mrf.mxu0
        %v4660 = vadd.f32 0.0, %v4659
        %4661 = vmatmul.f32.gmra.mxu0 %v4550
        %v4662 = vpop.f32.mrf.mxu0
        %v4663 = vadd.f32 0.0, %v4662
        %4664 = vmatmul.f32.gmra.mxu0 %v4553
        %v4665 = vpop.f32.mrf.mxu0
        %v4666 = vadd.f32 0.0, %v4665
        %4667 = vmatmul.f32.gmra.mxu0 %v4556
        %v4668 = vpop.f32.mrf.mxu0
        %v4669 = vadd.f32 0.0, %v4668
        %4670 = vmatmul.f32.gmra.mxu0 %v4559
        %v4671 = vpop.f32.mrf.mxu0
        %v4672 = vadd.f32 0.0, %v4671
        %4673 = vmatmul.f32.gmra.mxu0 %v4562
        %v4674 = vpop.f32.mrf.mxu0
        %v4675 = vadd.f32 0.0, %v4674
        %4676 = vmatmul.f32.gmra.mxu0 %v4565
        %v4677 = vpop.f32.mrf.mxu0
        %v4678 = vadd.f32 0.0, %v4677
        %4679 = vmatmul.f32.gmra.mxu0 %v4568
        %v4680 = vpop.f32.mrf.mxu0
        %v4681 = vadd.f32 0.0, %v4680
        %4682 = vmatmul.f32.gmra.mxu0 %v4571
        %v4683 = vpop.f32.mrf.mxu0
        %v4684 = vadd.f32 0.0, %v4683
        %4685 = vmatmul.f32.gmra.mxu0 %v4574
        %v4686 = vpop.f32.mrf.mxu0
        %v4687 = vadd.f32 0.0, %v4686
        %4688 = vmatmul.f32.gmra.mxu0 %v4577
        %v4689 = vpop.f32.mrf.mxu0
        %v4690 = vadd.f32 0.0, %v4689
        %4691 = vmatmul.f32.gmra.mxu0 %v4580
        %v4692 = vpop.f32.mrf.mxu0
        %v4693 = vadd.f32 0.0, %v4692
        %4694 = vmatmul.f32.gmra.mxu0 %v4583
        %v4695 = vpop.f32.mrf.mxu0
        %v4696 = vadd.f32 0.0, %v4695
        %4697 = vmatmul.f32.gmra.mxu0 %v4586
        %v4698 = vpop.f32.mrf.mxu0
        %v4699 = vadd.f32 0.0, %v4698
        %4700 = vmatmul.f32.gmra.mxu0 %v4589
        %v4701 = vpop.f32.mrf.mxu0
        %v4702 = vadd.f32 0.0, %v4701
        %4703 = vmatmul.f32.gmra.mxu0 %v4592
        %v4704 = vpop.f32.mrf.mxu0
        %v4705 = vadd.f32 0.0, %v4704
        %4706 = vmatmul.f32.gmra.mxu0 %v4595
        %v4707 = vpop.f32.mrf.mxu0
        %v4708 = vadd.f32 0.0, %v4707
        %4709 = vdwg.mxu0
        %v4710 = vadd.f32 %v4433, %v4615
        %v4711 = vadd.f32 %v4434, %v4618
        %v4712 = vadd.f32 %v4435, %v4621
        %v4713 = vadd.f32 %v4436, %v4624
        %v4714 = vadd.f32 %v4437, %v4627
        %v4715 = vadd.f32 %v4438, %v4630
        %v4716 = vadd.f32 %v4439, %v4633
        %v4717 = vadd.f32 %v4440, %v4636
        %v4718 = vadd.f32 %v4441, %v4639
        %v4719 = vadd.f32 %v4442, %v4642
        %v4720 = vadd.f32 %v4443, %v4645
        %v4721 = vadd.f32 %v4444, %v4648
        %v4722 = vadd.f32 %v4445, %v4651
        %v4723 = vadd.f32 %v4446, %v4654
        %v4724 = vadd.f32 %v4447, %v4657
        %v4725 = vadd.f32 %v4448, %v4660
        %v4726 = vadd.f32 %v4449, %v4663
        %v4727 = vadd.f32 %v4450, %v4666
        %v4728 = vadd.f32 %v4451, %v4669
        %v4729 = vadd.f32 %v4452, %v4672
        %v4730 = vadd.f32 %v4453, %v4675
        %v4731 = vadd.f32 %v4454, %v4678
        %v4732 = vadd.f32 %v4455, %v4681
        %v4733 = vadd.f32 %v4456, %v4684
        %v4734 = vadd.f32 %v4457, %v4687
        %v4735 = vadd.f32 %v4458, %v4690
        %v4736 = vadd.f32 %v4459, %v4693
        %v4737 = vadd.f32 %v4460, %v4696
        %v4738 = vadd.f32 %v4461, %v4699
        %v4739 = vadd.f32 %v4462, %v4702
        %v4740 = vadd.f32 %v4463, %v4705
        %v4741 = vadd.f32 %v4464, %v4708
        %v4742 = vld [vmem:[%s4465 + $0x1] sm:$0xff]
        %v4743 = vld [vmem:[%s4465 + $0x9] sm:$0xff]
        %v4744 = vld [vmem:[%s4465 + $0x19] sm:$0xff]
        %v4745 = vld [vmem:[%s4465 + $0x21] sm:$0xff]
        %v4746 = vld [vmem:[%s4465 + $0x31] sm:$0xff]
        %v4747 = vld [vmem:[%s4465 + $0x39] sm:$0xff]
        %v4748 = vld [vmem:[%s4465 + $0x49] sm:$0xff]
        %v4749 = vld [vmem:[%s4465 + $0x51] sm:$0xff]
        %v4750 = vld [vmem:[%s4465 + $0x61] sm:$0xff]
        %v4751 = vld [vmem:[%s4465 + $0x69] sm:$0xff]
        %v4752 = vld [vmem:[%s4465 + $0x79] sm:$0xff]
        %v4753 = vld [vmem:[%s4465 + $0x81] sm:$0xff]
        %v4754 = vld [vmem:[%s4465 + $0x91] sm:$0xff]
        %v4755 = vld [vmem:[%s4465 + $0x99] sm:$0xff]
        %v4756 = vld [vmem:[%s4465 + $0xa9] sm:$0xff]
        %v4757 = vld [vmem:[%s4465 + $0xb1] sm:$0xff]
        %v4758 = vld [vmem:[%s4465 + $0xc1] sm:$0xff]
        %v4759 = vld [vmem:[%s4465 + $0xc9] sm:$0xff]
        %v4760 = vld [vmem:[%s4465 + $0xd9] sm:$0xff]
        %v4761 = vld [vmem:[%s4465 + $0xe1] sm:$0xff]
        %v4762 = vld [vmem:[%s4465 + $0xf1] sm:$0xff]
        %v4763 = vld [vmem:[%s4465 + $0xf9] sm:$0xff]
        %v4764 = vld [vmem:[%s4465 + $0x109] sm:$0xff]
        %v4765 = vld [vmem:[%s4465 + $0x111] sm:$0xff]
        %v4766 = vld [vmem:[%s4465 + $0x121] sm:$0xff]
        %v4767 = vld [vmem:[%s4465 + $0x129] sm:$0xff]
        %v4768 = vld [vmem:[%s4465 + $0x139] sm:$0xff]
        %v4769 = vld [vmem:[%s4465 + $0x141] sm:$0xff]
        %v4770 = vld [vmem:[%s4465 + $0x151] sm:$0xff]
        %v4771 = vld [vmem:[%s4465 + $0x159] sm:$0xff]
        %v4772 = vld [vmem:[%s4465 + $0x169] sm:$0xff]
        %v4773 = vld [vmem:[%s4465 + $0x171] sm:$0xff]
        %s4774 = scalar_lea.vmem %s3, 112
        %v4775 = vld [vmem:[%s4774] sm:$0xff]
        %v4776 = vld [vmem:[%s4774 + $0x8] sm:$0xff]
        %v4778 = vsel %vm2785, %v4742, 0
        %v4781 = vsel %vm2785, %v4743, 0
        %v4784 = vsel %vm2785, %v4744, 0
        %v4787 = vsel %vm2785, %v4745, 0
        %v4790 = vsel %vm2785, %v4746, 0
        %v4793 = vsel %vm2785, %v4747, 0
        %v4796 = vsel %vm2785, %v4748, 0
        %v4799 = vsel %vm2785, %v4749, 0
        %v4802 = vsel %vm2785, %v4750, 0
        %v4805 = vsel %vm2785, %v4751, 0
        %v4808 = vsel %vm2785, %v4752, 0
        %v4811 = vsel %vm2785, %v4753, 0
        %v4814 = vsel %vm2785, %v4754, 0
        %v4817 = vsel %vm2785, %v4755, 0
        %v4820 = vsel %vm2785, %v4756, 0
        %v4823 = vsel %vm2785, %v4757, 0
        %v4826 = vsel %vm2785, %v4758, 0
        %v4829 = vsel %vm2785, %v4759, 0
        %v4832 = vsel %vm2785, %v4760, 0
        %v4835 = vsel %vm2785, %v4761, 0
        %v4838 = vsel %vm2785, %v4762, 0
        %v4841 = vsel %vm2785, %v4763, 0
        %v4844 = vsel %vm2785, %v4764, 0
        %v4847 = vsel %vm2785, %v4765, 0
        %v4850 = vsel %vm2785, %v4766, 0
        %v4853 = vsel %vm2785, %v4767, 0
        %v4856 = vsel %vm2785, %v4768, 0
        %v4859 = vsel %vm2785, %v4769, 0
        %v4862 = vsel %vm2785, %v4770, 0
        %v4865 = vsel %vm2785, %v4771, 0
        %v4868 = vsel %vm2785, %v4772, 0
        %v4871 = vsel %vm2785, %v4773, 0
        %4873 = vmatpush.msra.mxu0 0.0
        %4874 = vmatpush.msra.mxu0 0.0
        %4875 = vmatpush.msra.mxu0 0.0
        %4876 = vmatpush.msra.mxu0 0.0
        %4877 = vmatpush.msra.mxu0 0.0
        %4878 = vmatpush.msra.mxu0 0.0
        %4879 = vmatpush.msra.mxu0 0.0
        %4880 = vmatpush.msra.mxu0 0.0
        %4881 = vmatpush.msra.mxu0 0.0
        %4882 = vmatpush.msra.mxu0 0.0
        %4883 = vmatpush.msra.mxu0 0.0
        %4884 = vmatpush.msra.mxu0 0.0
        %4885 = vmatpush.msra.mxu0 0.0
        %4886 = vmatpush.msra.mxu0 0.0
        %4887 = vmatpush.msra.mxu0 %v4776
        %4888 = vmatpush.msra.mxu0 %v4775
        %4889 = vmatmul.f32.gmra.mxu0 %v4778
        %v4890 = vpop.f32.mrf.mxu0
        %v4891 = vadd.f32 0.0, %v4890
        %4892 = vmatmul.f32.gmra.mxu0 %v4781
        %v4893 = vpop.f32.mrf.mxu0
        %v4894 = vadd.f32 0.0, %v4893
        %4895 = vmatmul.f32.gmra.mxu0 %v4784
        %v4896 = vpop.f32.mrf.mxu0
        %v4897 = vadd.f32 0.0, %v4896
        %4898 = vmatmul.f32.gmra.mxu0 %v4787
        %v4899 = vpop.f32.mrf.mxu0
        %v4900 = vadd.f32 0.0, %v4899
        %4901 = vmatmul.f32.gmra.mxu0 %v4790
        %v4902 = vpop.f32.mrf.mxu0
        %v4903 = vadd.f32 0.0, %v4902
        %4904 = vmatmul.f32.gmra.mxu0 %v4793
        %v4905 = vpop.f32.mrf.mxu0
        %v4906 = vadd.f32 0.0, %v4905
        %4907 = vmatmul.f32.gmra.mxu0 %v4796
        %v4908 = vpop.f32.mrf.mxu0
        %v4909 = vadd.f32 0.0, %v4908
        %4910 = vmatmul.f32.gmra.mxu0 %v4799
        %v4911 = vpop.f32.mrf.mxu0
        %v4912 = vadd.f32 0.0, %v4911
        %4913 = vmatmul.f32.gmra.mxu0 %v4802
        %v4914 = vpop.f32.mrf.mxu0
        %v4915 = vadd.f32 0.0, %v4914
        %4916 = vmatmul.f32.gmra.mxu0 %v4805
        %v4917 = vpop.f32.mrf.mxu0
        %v4918 = vadd.f32 0.0, %v4917
        %4919 = vmatmul.f32.gmra.mxu0 %v4808
        %v4920 = vpop.f32.mrf.mxu0
        %v4921 = vadd.f32 0.0, %v4920
        %4922 = vmatmul.f32.gmra.mxu0 %v4811
        %v4923 = vpop.f32.mrf.mxu0
        %v4924 = vadd.f32 0.0, %v4923
        %4925 = vmatmul.f32.gmra.mxu0 %v4814
        %v4926 = vpop.f32.mrf.mxu0
        %v4927 = vadd.f32 0.0, %v4926
        %4928 = vmatmul.f32.gmra.mxu0 %v4817
        %v4929 = vpop.f32.mrf.mxu0
        %v4930 = vadd.f32 0.0, %v4929
        %4931 = vmatmul.f32.gmra.mxu0 %v4820
        %v4932 = vpop.f32.mrf.mxu0
        %v4933 = vadd.f32 0.0, %v4932
        %4934 = vmatmul.f32.gmra.mxu0 %v4823
        %v4935 = vpop.f32.mrf.mxu0
        %v4936 = vadd.f32 0.0, %v4935
        %4937 = vmatmul.f32.gmra.mxu0 %v4826
        %v4938 = vpop.f32.mrf.mxu0
        %v4939 = vadd.f32 0.0, %v4938
        %4940 = vmatmul.f32.gmra.mxu0 %v4829
        %v4941 = vpop.f32.mrf.mxu0
        %v4942 = vadd.f32 0.0, %v4941
        %4943 = vmatmul.f32.gmra.mxu0 %v4832
        %v4944 = vpop.f32.mrf.mxu0
        %v4945 = vadd.f32 0.0, %v4944
        %4946 = vmatmul.f32.gmra.mxu0 %v4835
        %v4947 = vpop.f32.mrf.mxu0
        %v4948 = vadd.f32 0.0, %v4947
        %4949 = vmatmul.f32.gmra.mxu0 %v4838
        %v4950 = vpop.f32.mrf.mxu0
        %v4951 = vadd.f32 0.0, %v4950
        %4952 = vmatmul.f32.gmra.mxu0 %v4841
        %v4953 = vpop.f32.mrf.mxu0
        %v4954 = vadd.f32 0.0, %v4953
        %4955 = vmatmul.f32.gmra.mxu0 %v4844
        %v4956 = vpop.f32.mrf.mxu0
        %v4957 = vadd.f32 0.0, %v4956
        %4958 = vmatmul.f32.gmra.mxu0 %v4847
        %v4959 = vpop.f32.mrf.mxu0
        %v4960 = vadd.f32 0.0, %v4959
        %4961 = vmatmul.f32.gmra.mxu0 %v4850
        %v4962 = vpop.f32.mrf.mxu0
        %v4963 = vadd.f32 0.0, %v4962
        %4964 = vmatmul.f32.gmra.mxu0 %v4853
        %v4965 = vpop.f32.mrf.mxu0
        %v4966 = vadd.f32 0.0, %v4965
        %4967 = vmatmul.f32.gmra.mxu0 %v4856
        %v4968 = vpop.f32.mrf.mxu0
        %v4969 = vadd.f32 0.0, %v4968
        %4970 = vmatmul.f32.gmra.mxu0 %v4859
        %v4971 = vpop.f32.mrf.mxu0
        %v4972 = vadd.f32 0.0, %v4971
        %4973 = vmatmul.f32.gmra.mxu0 %v4862
        %v4974 = vpop.f32.mrf.mxu0
        %v4975 = vadd.f32 0.0, %v4974
        %4976 = vmatmul.f32.gmra.mxu0 %v4865
        %v4977 = vpop.f32.mrf.mxu0
        %v4978 = vadd.f32 0.0, %v4977
        %4979 = vmatmul.f32.gmra.mxu0 %v4868
        %v4980 = vpop.f32.mrf.mxu0
        %v4981 = vadd.f32 0.0, %v4980
        %4982 = vmatmul.f32.gmra.mxu0 %v4871
        %v4983 = vpop.f32.mrf.mxu0
        %v4984 = vadd.f32 0.0, %v4983
        %4985 = vdwg.mxu0
        %v4986 = vadd.f32 %v4710, %v4891
        %v4987 = vadd.f32 %v4711, %v4894
        %v4988 = vadd.f32 %v4712, %v4897
        %v4989 = vadd.f32 %v4713, %v4900
        %v4990 = vadd.f32 %v4714, %v4903
        %v4991 = vadd.f32 %v4715, %v4906
        %v4992 = vadd.f32 %v4716, %v4909
        %v4993 = vadd.f32 %v4717, %v4912
        %v4994 = vadd.f32 %v4718, %v4915
        %v4995 = vadd.f32 %v4719, %v4918
        %v4996 = vadd.f32 %v4720, %v4921
        %v4997 = vadd.f32 %v4721, %v4924
        %v4998 = vadd.f32 %v4722, %v4927
        %v4999 = vadd.f32 %v4723, %v4930
        %v5000 = vadd.f32 %v4724, %v4933
        %v5001 = vadd.f32 %v4725, %v4936
        %v5002 = vadd.f32 %v4726, %v4939
        %v5003 = vadd.f32 %v4727, %v4942
        %v5004 = vadd.f32 %v4728, %v4945
        %v5005 = vadd.f32 %v4729, %v4948
        %v5006 = vadd.f32 %v4730, %v4951
        %v5007 = vadd.f32 %v4731, %v4954
        %v5008 = vadd.f32 %v4732, %v4957
        %v5009 = vadd.f32 %v4733, %v4960
        %v5010 = vadd.f32 %v4734, %v4963
        %v5011 = vadd.f32 %v4735, %v4966
        %v5012 = vadd.f32 %v4736, %v4969
        %v5013 = vadd.f32 %v4737, %v4972
        %v5014 = vadd.f32 %v4738, %v4975
        %v5015 = vadd.f32 %v4739, %v4978
        %v5016 = vadd.f32 %v4740, %v4981
        %v5017 = vadd.f32 %v4741, %v4984
        %v5018 = vld [vmem:[%s4465 + $0x2] sm:$0xff]
        %v5019 = vld [vmem:[%s4465 + $0xa] sm:$0xff]
        %v5020 = vld [vmem:[%s4465 + $0x1a] sm:$0xff]
        %v5021 = vld [vmem:[%s4465 + $0x22] sm:$0xff]
        %v5022 = vld [vmem:[%s4465 + $0x32] sm:$0xff]
        %v5023 = vld [vmem:[%s4465 + $0x3a] sm:$0xff]
        %v5024 = vld [vmem:[%s4465 + $0x4a] sm:$0xff]
        %v5025 = vld [vmem:[%s4465 + $0x52] sm:$0xff]
        %v5026 = vld [vmem:[%s4465 + $0x62] sm:$0xff]
        %v5027 = vld [vmem:[%s4465 + $0x6a] sm:$0xff]
        %v5028 = vld [vmem:[%s4465 + $0x7a] sm:$0xff]
        %v5029 = vld [vmem:[%s4465 + $0x82] sm:$0xff]
        %v5030 = vld [vmem:[%s4465 + $0x92] sm:$0xff]
        %v5031 = vld [vmem:[%s4465 + $0x9a] sm:$0xff]
        %v5032 = vld [vmem:[%s4465 + $0xaa] sm:$0xff]
        %v5033 = vld [vmem:[%s4465 + $0xb2] sm:$0xff]
        %v5034 = vld [vmem:[%s4465 + $0xc2] sm:$0xff]
        %v5035 = vld [vmem:[%s4465 + $0xca] sm:$0xff]
        %v5036 = vld [vmem:[%s4465 + $0xda] sm:$0xff]
        %v5037 = vld [vmem:[%s4465 + $0xe2] sm:$0xff]
        %v5038 = vld [vmem:[%s4465 + $0xf2] sm:$0xff]
        %v5039 = vld [vmem:[%s4465 + $0xfa] sm:$0xff]
        %v5040 = vld [vmem:[%s4465 + $0x10a] sm:$0xff]
        %v5041 = vld [vmem:[%s4465 + $0x112] sm:$0xff]
        %v5042 = vld [vmem:[%s4465 + $0x122] sm:$0xff]
        %v5043 = vld [vmem:[%s4465 + $0x12a] sm:$0xff]
        %v5044 = vld [vmem:[%s4465 + $0x13a] sm:$0xff]
        %v5045 = vld [vmem:[%s4465 + $0x142] sm:$0xff]
        %v5046 = vld [vmem:[%s4465 + $0x152] sm:$0xff]
        %v5047 = vld [vmem:[%s4465 + $0x15a] sm:$0xff]
        %v5048 = vld [vmem:[%s4465 + $0x16a] sm:$0xff]
        %v5049 = vld [vmem:[%s4465 + $0x172] sm:$0xff]
        %s5050 = scalar_lea.vmem %s3, 128
        %v5051 = vld [vmem:[%s5050] sm:$0xff]
        %v5052 = vld [vmem:[%s5050 + $0x8] sm:$0xff]
        %v5054 = vsel %vm2785, %v5018, 0
        %v5057 = vsel %vm2785, %v5019, 0
        %v5060 = vsel %vm2785, %v5020, 0
        %v5063 = vsel %vm2785, %v5021, 0
        %v5066 = vsel %vm2785, %v5022, 0
        %v5069 = vsel %vm2785, %v5023, 0
        %v5072 = vsel %vm2785, %v5024, 0
        %v5075 = vsel %vm2785, %v5025, 0
        %v5078 = vsel %vm2785, %v5026, 0
        %v5081 = vsel %vm2785, %v5027, 0
        %v5084 = vsel %vm2785, %v5028, 0
        %v5087 = vsel %vm2785, %v5029, 0
        %v5090 = vsel %vm2785, %v5030, 0
        %v5093 = vsel %vm2785, %v5031, 0
        %v5096 = vsel %vm2785, %v5032, 0
        %v5099 = vsel %vm2785, %v5033, 0
        %v5102 = vsel %vm2785, %v5034, 0
        %v5105 = vsel %vm2785, %v5035, 0
        %v5108 = vsel %vm2785, %v5036, 0
        %v5111 = vsel %vm2785, %v5037, 0
        %v5114 = vsel %vm2785, %v5038, 0
        %v5117 = vsel %vm2785, %v5039, 0
        %v5120 = vsel %vm2785, %v5040, 0
        %v5123 = vsel %vm2785, %v5041, 0
        %v5126 = vsel %vm2785, %v5042, 0
        %v5129 = vsel %vm2785, %v5043, 0
        %v5132 = vsel %vm2785, %v5044, 0
        %v5135 = vsel %vm2785, %v5045, 0
        %v5138 = vsel %vm2785, %v5046, 0
        %v5141 = vsel %vm2785, %v5047, 0
        %v5144 = vsel %vm2785, %v5048, 0
        %v5147 = vsel %vm2785, %v5049, 0
        %5149 = vmatpush.msra.mxu0 0.0
        %5150 = vmatpush.msra.mxu0 0.0
        %5151 = vmatpush.msra.mxu0 0.0
        %5152 = vmatpush.msra.mxu0 0.0
        %5153 = vmatpush.msra.mxu0 0.0
        %5154 = vmatpush.msra.mxu0 0.0
        %5155 = vmatpush.msra.mxu0 0.0
        %5156 = vmatpush.msra.mxu0 0.0
        %5157 = vmatpush.msra.mxu0 0.0
        %5158 = vmatpush.msra.mxu0 0.0
        %5159 = vmatpush.msra.mxu0 0.0
        %5160 = vmatpush.msra.mxu0 0.0
        %5161 = vmatpush.msra.mxu0 0.0
        %5162 = vmatpush.msra.mxu0 0.0
        %5163 = vmatpush.msra.mxu0 %v5052
        %5164 = vmatpush.msra.mxu0 %v5051
        %5165 = vmatmul.f32.gmra.mxu0 %v5054
        %v5166 = vpop.f32.mrf.mxu0
        %v5167 = vadd.f32 0.0, %v5166
        %5168 = vmatmul.f32.gmra.mxu0 %v5057
        %v5169 = vpop.f32.mrf.mxu0
        %v5170 = vadd.f32 0.0, %v5169
        %5171 = vmatmul.f32.gmra.mxu0 %v5060
        %v5172 = vpop.f32.mrf.mxu0
        %v5173 = vadd.f32 0.0, %v5172
        %5174 = vmatmul.f32.gmra.mxu0 %v5063
        %v5175 = vpop.f32.mrf.mxu0
        %v5176 = vadd.f32 0.0, %v5175
        %5177 = vmatmul.f32.gmra.mxu0 %v5066
        %v5178 = vpop.f32.mrf.mxu0
        %v5179 = vadd.f32 0.0, %v5178
        %5180 = vmatmul.f32.gmra.mxu0 %v5069
        %v5181 = vpop.f32.mrf.mxu0
        %v5182 = vadd.f32 0.0, %v5181
        %5183 = vmatmul.f32.gmra.mxu0 %v5072
        %v5184 = vpop.f32.mrf.mxu0
        %v5185 = vadd.f32 0.0, %v5184
        %5186 = vmatmul.f32.gmra.mxu0 %v5075
        %v5187 = vpop.f32.mrf.mxu0
        %v5188 = vadd.f32 0.0, %v5187
        %5189 = vmatmul.f32.gmra.mxu0 %v5078
        %v5190 = vpop.f32.mrf.mxu0
        %v5191 = vadd.f32 0.0, %v5190
        %5192 = vmatmul.f32.gmra.mxu0 %v5081
        %v5193 = vpop.f32.mrf.mxu0
        %v5194 = vadd.f32 0.0, %v5193
        %5195 = vmatmul.f32.gmra.mxu0 %v5084
        %v5196 = vpop.f32.mrf.mxu0
        %v5197 = vadd.f32 0.0, %v5196
        %5198 = vmatmul.f32.gmra.mxu0 %v5087
        %v5199 = vpop.f32.mrf.mxu0
        %v5200 = vadd.f32 0.0, %v5199
        %5201 = vmatmul.f32.gmra.mxu0 %v5090
        %v5202 = vpop.f32.mrf.mxu0
        %v5203 = vadd.f32 0.0, %v5202
        %5204 = vmatmul.f32.gmra.mxu0 %v5093
        %v5205 = vpop.f32.mrf.mxu0
        %v5206 = vadd.f32 0.0, %v5205
        %5207 = vmatmul.f32.gmra.mxu0 %v5096
        %v5208 = vpop.f32.mrf.mxu0
        %v5209 = vadd.f32 0.0, %v5208
        %5210 = vmatmul.f32.gmra.mxu0 %v5099
        %v5211 = vpop.f32.mrf.mxu0
        %v5212 = vadd.f32 0.0, %v5211
        %5213 = vmatmul.f32.gmra.mxu0 %v5102
        %v5214 = vpop.f32.mrf.mxu0
        %v5215 = vadd.f32 0.0, %v5214
        %5216 = vmatmul.f32.gmra.mxu0 %v5105
        %v5217 = vpop.f32.mrf.mxu0
        %v5218 = vadd.f32 0.0, %v5217
        %5219 = vmatmul.f32.gmra.mxu0 %v5108
        %v5220 = vpop.f32.mrf.mxu0
        %v5221 = vadd.f32 0.0, %v5220
        %5222 = vmatmul.f32.gmra.mxu0 %v5111
        %v5223 = vpop.f32.mrf.mxu0
        %v5224 = vadd.f32 0.0, %v5223
        %5225 = vmatmul.f32.gmra.mxu0 %v5114
        %v5226 = vpop.f32.mrf.mxu0
        %v5227 = vadd.f32 0.0, %v5226
        %5228 = vmatmul.f32.gmra.mxu0 %v5117
        %v5229 = vpop.f32.mrf.mxu0
        %v5230 = vadd.f32 0.0, %v5229
        %5231 = vmatmul.f32.gmra.mxu0 %v5120
        %v5232 = vpop.f32.mrf.mxu0
        %v5233 = vadd.f32 0.0, %v5232
        %5234 = vmatmul.f32.gmra.mxu0 %v5123
        %v5235 = vpop.f32.mrf.mxu0
        %v5236 = vadd.f32 0.0, %v5235
        %5237 = vmatmul.f32.gmra.mxu0 %v5126
        %v5238 = vpop.f32.mrf.mxu0
        %v5239 = vadd.f32 0.0, %v5238
        %5240 = vmatmul.f32.gmra.mxu0 %v5129
        %v5241 = vpop.f32.mrf.mxu0
        %v5242 = vadd.f32 0.0, %v5241
        %5243 = vmatmul.f32.gmra.mxu0 %v5132
        %v5244 = vpop.f32.mrf.mxu0
        %v5245 = vadd.f32 0.0, %v5244
        %5246 = vmatmul.f32.gmra.mxu0 %v5135
        %v5247 = vpop.f32.mrf.mxu0
        %v5248 = vadd.f32 0.0, %v5247
        %5249 = vmatmul.f32.gmra.mxu0 %v5138
        %v5250 = vpop.f32.mrf.mxu0
        %v5251 = vadd.f32 0.0, %v5250
        %5252 = vmatmul.f32.gmra.mxu0 %v5141
        %v5253 = vpop.f32.mrf.mxu0
        %v5254 = vadd.f32 0.0, %v5253
        %5255 = vmatmul.f32.gmra.mxu0 %v5144
        %v5256 = vpop.f32.mrf.mxu0
        %v5257 = vadd.f32 0.0, %v5256
        %5258 = vmatmul.f32.gmra.mxu0 %v5147
        %v5259 = vpop.f32.mrf.mxu0
        %v5260 = vadd.f32 0.0, %v5259
        %5261 = vdwg.mxu0
        %v5262 = vadd.f32 %v4986, %v5167
        %v5263 = vadd.f32 %v4987, %v5170
        %v5264 = vadd.f32 %v4988, %v5173
        %v5265 = vadd.f32 %v4989, %v5176
        %v5266 = vadd.f32 %v4990, %v5179
        %v5267 = vadd.f32 %v4991, %v5182
        %v5268 = vadd.f32 %v4992, %v5185
        %v5269 = vadd.f32 %v4993, %v5188
        %v5270 = vadd.f32 %v4994, %v5191
        %v5271 = vadd.f32 %v4995, %v5194
        %v5272 = vadd.f32 %v4996, %v5197
        %v5273 = vadd.f32 %v4997, %v5200
        %v5274 = vadd.f32 %v4998, %v5203
        %v5275 = vadd.f32 %v4999, %v5206
        %v5276 = vadd.f32 %v5000, %v5209
        %v5277 = vadd.f32 %v5001, %v5212
        %v5278 = vadd.f32 %v5002, %v5215
        %v5279 = vadd.f32 %v5003, %v5218
        %v5280 = vadd.f32 %v5004, %v5221
        %v5281 = vadd.f32 %v5005, %v5224
        %v5282 = vadd.f32 %v5006, %v5227
        %v5283 = vadd.f32 %v5007, %v5230
        %v5284 = vadd.f32 %v5008, %v5233
        %v5285 = vadd.f32 %v5009, %v5236
        %v5286 = vadd.f32 %v5010, %v5239
        %v5287 = vadd.f32 %v5011, %v5242
        %v5288 = vadd.f32 %v5012, %v5245
        %v5289 = vadd.f32 %v5013, %v5248
        %v5290 = vadd.f32 %v5014, %v5251
        %v5291 = vadd.f32 %v5015, %v5254
        %v5292 = vadd.f32 %v5016, %v5257
        %v5293 = vadd.f32 %v5017, %v5260
        %v5294 = vld [vmem:[%s4] sm:$0x1]
        %v5296 = vperm.slane %v5294, 0
        %v5298 = vadd.f32 %v5262, %v5296
        %v5299 = vadd.f32 %v5263, %v5296
        %v5300 = vadd.f32 %v5264, %v5296
        %v5301 = vadd.f32 %v5265, %v5296
        %v5302 = vadd.f32 %v5266, %v5296
        %v5303 = vadd.f32 %v5267, %v5296
        %v5304 = vadd.f32 %v5268, %v5296
        %v5305 = vadd.f32 %v5269, %v5296
        %v5306 = vadd.f32 %v5270, %v5296
        %v5307 = vadd.f32 %v5271, %v5296
        %v5308 = vadd.f32 %v5272, %v5296
        %v5309 = vadd.f32 %v5273, %v5296
        %v5310 = vadd.f32 %v5274, %v5296
        %v5311 = vadd.f32 %v5275, %v5296
        %v5312 = vadd.f32 %v5276, %v5296
        %v5313 = vadd.f32 %v5277, %v5296
        %v5314 = vadd.f32 %v5278, %v5296
        %v5315 = vadd.f32 %v5279, %v5296
        %v5316 = vadd.f32 %v5280, %v5296
        %v5317 = vadd.f32 %v5281, %v5296
        %v5318 = vadd.f32 %v5282, %v5296
        %v5319 = vadd.f32 %v5283, %v5296
        %v5320 = vadd.f32 %v5284, %v5296
        %v5321 = vadd.f32 %v5285, %v5296
        %v5322 = vadd.f32 %v5286, %v5296
        %v5323 = vadd.f32 %v5287, %v5296
        %v5324 = vadd.f32 %v5288, %v5296
        %v5325 = vadd.f32 %v5289, %v5296
        %v5326 = vadd.f32 %v5290, %v5296
        %v5327 = vadd.f32 %v5291, %v5296
        %v5328 = vadd.f32 %v5292, %v5296
        %v5329 = vadd.f32 %v5293, %v5296
        %v5330 = vmax.f32 %v5298, 0.0
        %v5331 = vmax.f32 %v5299, 0.0
        %v5332 = vmax.f32 %v5300, 0.0
        %v5333 = vmax.f32 %v5301, 0.0
        %v5334 = vmax.f32 %v5302, 0.0
        %v5335 = vmax.f32 %v5303, 0.0
        %v5336 = vmax.f32 %v5304, 0.0
        %v5337 = vmax.f32 %v5305, 0.0
        %v5338 = vmax.f32 %v5306, 0.0
        %v5339 = vmax.f32 %v5307, 0.0
        %v5340 = vmax.f32 %v5308, 0.0
        %v5341 = vmax.f32 %v5309, 0.0
        %v5342 = vmax.f32 %v5310, 0.0
        %v5343 = vmax.f32 %v5311, 0.0
        %v5344 = vmax.f32 %v5312, 0.0
        %v5345 = vmax.f32 %v5313, 0.0
        %v5346 = vmax.f32 %v5314, 0.0
        %v5347 = vmax.f32 %v5315, 0.0
        %v5348 = vmax.f32 %v5316, 0.0
        %v5349 = vmax.f32 %v5317, 0.0
        %v5350 = vmax.f32 %v5318, 0.0
        %v5351 = vmax.f32 %v5319, 0.0
        %v5352 = vmax.f32 %v5320, 0.0
        %v5353 = vmax.f32 %v5321, 0.0
        %v5354 = vmax.f32 %v5322, 0.0
        %v5355 = vmax.f32 %v5323, 0.0
        %v5356 = vmax.f32 %v5324, 0.0
        %v5357 = vmax.f32 %v5325, 0.0
        %v5358 = vmax.f32 %v5326, 0.0
        %v5359 = vmax.f32 %v5327, 0.0
        %v5360 = vmax.f32 %v5328, 0.0
        %v5361 = vmax.f32 %v5329, 0.0
        %vm5362 = vcmask 261120
        %v5363 = vsel %vm5362, %v5330, 0.0
        %v5364 = vsel %vm5362, %v5331, 0.0
        %v5365 = vadd.f32 %v5363, %v5364
        %v5366 = vsel %vm5362, %v5332, 0.0
        %v5367 = vadd.f32 %v5365, %v5366
        %v5368 = vsel %vm5362, %v5333, 0.0
        %v5369 = vadd.f32 %v5367, %v5368
        %v5370 = vsel %vm5362, %v5334, 0.0
        %v5371 = vadd.f32 %v5369, %v5370
        %v5372 = vsel %vm5362, %v5335, 0.0
        %v5373 = vadd.f32 %v5371, %v5372
        %v5374 = vsel %vm5362, %v5336, 0.0
        %v5375 = vadd.f32 %v5373, %v5374
        %v5376 = vsel %vm5362, %v5337, 0.0
        %v5377 = vadd.f32 %v5375, %v5376
        %v5378 = vsel %vm5362, %v5338, 0.0
        %v5379 = vadd.f32 %v5377, %v5378
        %v5380 = vsel %vm5362, %v5339, 0.0
        %v5381 = vadd.f32 %v5379, %v5380
        %v5382 = vsel %vm5362, %v5340, 0.0
        %v5383 = vadd.f32 %v5381, %v5382
        %v5384 = vsel %vm5362, %v5341, 0.0
        %v5385 = vadd.f32 %v5383, %v5384
        %v5386 = vsel %vm5362, %v5342, 0.0
        %v5387 = vadd.f32 %v5385, %v5386
        %v5388 = vsel %vm5362, %v5343, 0.0
        %v5389 = vadd.f32 %v5387, %v5388
        %v5390 = vsel %vm5362, %v5344, 0.0
        %v5391 = vadd.f32 %v5389, %v5390
        %v5392 = vsel %vm5362, %v5345, 0.0
        %v5393 = vadd.f32 %v5391, %v5392
        %v5394 = vsel %vm5362, %v5346, 0.0
        %v5395 = vadd.f32 %v5393, %v5394
        %v5396 = vsel %vm5362, %v5347, 0.0
        %v5397 = vadd.f32 %v5395, %v5396
        %v5398 = vsel %vm5362, %v5348, 0.0
        %v5399 = vadd.f32 %v5397, %v5398
        %v5400 = vsel %vm5362, %v5349, 0.0
        %v5401 = vadd.f32 %v5399, %v5400
        %v5402 = vsel %vm5362, %v5350, 0.0
        %v5403 = vadd.f32 %v5401, %v5402
        %v5404 = vsel %vm5362, %v5351, 0.0
        %v5405 = vadd.f32 %v5403, %v5404
        %v5406 = vsel %vm5362, %v5352, 0.0
        %v5407 = vadd.f32 %v5405, %v5406
        %v5408 = vsel %vm5362, %v5353, 0.0
        %v5409 = vadd.f32 %v5407, %v5408
        %v5410 = vsel %vm5362, %v5354, 0.0
        %v5411 = vadd.f32 %v5409, %v5410
        %v5412 = vsel %vm5362, %v5355, 0.0
        %v5413 = vadd.f32 %v5411, %v5412
        %v5414 = vsel %vm5362, %v5356, 0.0
        %v5415 = vadd.f32 %v5413, %v5414
        %v5416 = vsel %vm5362, %v5357, 0.0
        %v5417 = vadd.f32 %v5415, %v5416
        %v5418 = vsel %vm5362, %v5358, 0.0
        %v5419 = vadd.f32 %v5417, %v5418
        %v5420 = vsel %vm5362, %v5359, 0.0
        %v5421 = vadd.f32 %v5419, %v5420
        %v5422 = vsel %vm5362, %v5360, 0.0
        %v5423 = vadd.f32 %v5421, %v5422
        %v5424 = vsel %vm5362, %v5361, 0.0
        %v5425 = vadd.f32 %v5423, %v5424
        %v5426 = vrot.slane %v5425, 4
        %v5427 = vadd.f32 %v5425, %v5426
        %v5428 = vrot.slane %v5427, 2
        %v5429 = vadd.f32 %v5427, %v5428
        %v5430 = vrot.slane %v5429, 1
        %v5431 = vadd.f32 %v5429, %v5430
        %v5432 = vmul.f32 %v5431, 0.00390625
        %v5433 = vld [vmem:[%s5] sm:$0xff]
        %v5434 = vld [vmem:[%s5 + $0x8] sm:$0xff]
        %v5435 = vld [vmem:[%s5 + $0x10] sm:$0xff]
        %v5436 = vld [vmem:[%s5 + $0x18] sm:$0xff]
        %v5437 = vld [vmem:[%s6] sm:$0x1]
        %v5439 = vsel %vm5362, %v5432, 0
        %5441 = vmatpush.msra.mxu0 0.0
        %5442 = vmatpush.msra.mxu0 0.0
        %5443 = vmatpush.msra.mxu0 0.0
        %5444 = vmatpush.msra.mxu0 0.0
        %5445 = vmatpush.msra.mxu0 0.0
        %5446 = vmatpush.msra.mxu0 0.0
        %5447 = vmatpush.msra.mxu0 0.0
        %5448 = vmatpush.msra.mxu0 0.0
        %5449 = vmatpush.msra.mxu0 0.0
        %5450 = vmatpush.msra.mxu0 0.0
        %5451 = vmatpush.msra.mxu0 0.0
        %5452 = vmatpush.msra.mxu0 0.0
        %5453 = vmatpush.msra.mxu0 %v5436
        %5454 = vmatpush.msra.mxu0 %v5435
        %5455 = vmatpush.msra.mxu0 %v5434
        %5456 = vmatpush.msra.mxu0 %v5433
        %5457 = vmatmul.f32.gmra.mxu0 %v5439
        %v5458 = vpop.f32.mrf.mxu0
        %v5459 = vadd.f32 %v5437, %v5458
        %5460 = vdwg.mxu0
        %vm5461 = vcmask 8192
        %5462 = vst.msk [vmem:[%s270] sm:$0x1] %vm5461, %v5459
        %s5463 = sand.u32 %s181, 1
        %s5464 = scalar_lea.sflag [#allocation4], %s5463
        %s5465 = sand.u32 %s181, 1
        %s5466 = scalar_lea.vmem [#allocation3], %s5465
        // Predicated region
        $region49: #{tpu_custom_call.1} parent=47 // pred_check
          %p5467 = pneg %p191
        $region50: #{tpu_custom_call.1} parent=47 // pred_check_branch
          %5469 = sbr.rel (%p5467) target = $region52
        $region51: #{tpu_custom_call.1} parent=47 // pred_region
          %5471 = vsyncadd %s5464, 0
          %s5472 = scalar_lea.hbm %s7, %s21
          %s5474 = sshll.u32 %s5466, 4
          %s5475 = int_to_ptr.vmem [resolvable:$true] %s5474
          %s5476 = sshll.u32 %s5472, 4
          %s5477 = int_to_ptr.hbm [resolvable:$true] %s5476
          %5479 = dma.vmem_to_hbm [thread:$0]  %s5475, 16, %s5477, %s5464
        $region52: #{tpu_custom_call.1} parent=47 // pred_fallthru
          _
      $region48: #{tpu_custom_call.1} parent=5 // pred_fallthru
        _
      %p5480 = scmp.le.s32.totalorder 2, %s16
      // Predicated region
      $region53: #{tpu_custom_call.1} parent=5 // pred_check
        %p5481 = pneg %p5480
      $region54: #{tpu_custom_call.1} parent=5 // pred_check_branch
        %5483 = sbr.rel (%p5481) target = $region56
      $region55: #{tpu_custom_call.1} parent=5 // pred_region
        %s5484 = ssub.s32 %s16, 2
        // Predicated region
        $region57: #{tpu_custom_call.1} parent=55 // pred_check
          %p5485 = pneg %p197
        $region58: #{tpu_custom_call.1} parent=55 // pred_check_branch
          %5487 = sbr.rel (%p5485) target = $region60
        $region59: #{tpu_custom_call.1} parent=55 // pred_region
          %s5488 = sand.u32 %s182, 1
          %s5489 = scalar_lea.sflag [#allocation4], %s5488
          %s5490 = sand.u32 %s182, 1
          %s5491 = scalar_lea.vmem [#allocation3], %s5490
          %5493 = dma.done %s5489, 16
        $region60: #{tpu_custom_call.1} parent=55 // pred_fallthru
          _
      $region56: #{tpu_custom_call.1} parent=5 // pred_fallthru
        _
    $region6: #{tpu_custom_call.1} parent=1 // loop_footer
      %s20 = sadd.s32 1, %s16
    $region7: #{tpu_custom_call.1} parent=1 // loop_footer_branch
      %15 = sbr.rel target = $region3
    $region8: #{tpu_custom_call.1} parent=1 // loop_exit
      _
    %5494 = vsyncpa [#allocation4], 1
    %s5495 = scalar_lea.sflag [#allocation4], 1
    %5496 = vsyncpa %s5495, 1

</llo_original>
